<compile_context>
chip_gen: v7x
topology: tpu7x:2x2x1
jax: 0.10.0
libtpu: 0.0.40
codegen_flags: <defaults>
</compile_context>

<pallas_src>
import numpy as np
import jax
import jax.numpy as jnp
from jax.experimental import pallas as pl
from jax.experimental.pallas import tpu as pltpu


# ----------------------------------------------------------------------------
# The single fused kernel (built by a factory so all shapes are static)
# ----------------------------------------------------------------------------
def _make_kernel(batch, n_out, blocks, *, strided_taps=True):
    n_blk = len(blocks)

    def _taps(pad, b, oh):
        """Gather the 3 ky row-taps of the stride-2 conv from the zero-padded
        scratch of image b and concatenate them along lanes -> (oh, 3*lanes)."""
        pieces = []
        for ky in range(3):
            if oh == 1:
                t = pad[b, ky:ky + 1, :]
            elif strided_taps:
                t = pad[b, pl.ds(ky, oh, stride=2), :]          # strided sublane read
            else:
                t = jnp.concatenate(
                    [pad[b, ky + 2 * oy:ky + 2 * oy + 1, :] for oy in range(oh)],
                    axis=0)
            pieces.append(t)
        return jnp.concatenate(pieces, axis=-1)

    def kernel(img_ref, w_ref, bs_ref, wh_ref, out_ref, *pads):
        # ---- image relayout: NCHW -> zero-padded (B, H+2, lanes=(c,x)) scratch ----
        blk0 = blocks[0]
        pad0 = pads[0]
        pad0[...] = jnp.zeros(pad0.shape, jnp.float32)
        for b in range(batch):
            chans = [img_ref[b, c, :, :] for c in range(blk0['cin'])]
            pad0[b, 1:blk0['H'] + 1, 0:blk0['lane_in']] = jnp.concatenate(chans, axis=-1)

        # ---- 4 conv blocks: one (B*OH, 3*lanes) @ (3*lanes, OW*Cout) matmul each ----
        acc = None
        for l, blk in enumerate(blocks):
            pad, oh = pads[l], blk['oh']
            if batch == 1:
                lhs = _taps(pad, 0, oh)
            else:
                lhs = jnp.concatenate([_taps(pad, b, oh) for b in range(batch)], axis=0)
            w_blk = w_ref[blk['k_off']:blk['k_off'] + blk['k'], :]
            acc = jnp.dot(lhs.astype(jnp.bfloat16), w_blk,
                          preferred_element_type=jnp.float32)
            acc = acc + bs_ref[l:l + 1, :]                  # conv bias (BN scale folded in)
            acc = jnp.maximum(acc, 0.2 * acc)               # LeakyReLU(0.2)
            # TODO(synk): Dropout2d(p=0.25) is identity in eval mode (no train-mode mask).
            if l > 0:                                       # eval-mode BatchNorm shift
                acc = acc + bs_ref[n_blk + l - 1:n_blk + l, :]
            if l + 1 < n_blk:                               # stage into next padded scratch
                nxt, pad_n = blocks[l + 1], pads[l + 1]
                pad_n[...] = jnp.zeros(pad_n.shape, jnp.float32)
                for b in range(batch):
                    pad_n[b, 1:nxt['H'] + 1, 0:nxt['lane_in']] = acc[b * oh:(b + 1) * oh, :]

        # ---- merged heads: one (B, feat) @ (feat, 1+n_classes) matmul ----
        logits = jnp.dot(acc.astype(jnp.bfloat16), wh_ref[...],
                         preferred_element_type=jnp.float32)
        logits = logits + bs_ref[2 * n_blk - 1:2 * n_blk, 0:n_out]

        adv = logits[:, 0:1]                                # numerically stable sigmoid
        pos = adv >= 0.0
        ea = jnp.exp(jnp.where(pos, -adv, adv))             # exp of a non-positive number
        sig = jnp.where(pos, 1.0 / (1.0 + ea), ea / (1.0 + ea))
        cls = logits[:, 1:n_out]                            # exact softmax
        ex = jnp.exp(cls - jnp.max(cls, axis=-1, keepdims=True))
        sm = ex / jnp.sum(ex, axis=-1, keepdims=True)
        out_ref[...] = jnp.concatenate([sig, sm], axis=-1)

    return kernel


# ----------------------------------------------------------------------------
# One-time weight preparation (host-side numpy): fold eval-BN scale, build the
# K-concatenated block-banded conv weights, pack epilogue vectors, merge heads.
# ----------------------------------------------------------------------------
def prepare_discriminator(blocks, head_params, *, img_size):
    n_blk = len(blocks)
    metas, w2_list, bias_rows, shift_rows = [], [], [], []
    k_off = 0
    for l, (w, b, scale, shift) in enumerate(blocks):
        w = np.asarray(w, np.float32)
        b = np.asarray(b, np.float32)
        scale = np.asarray(scale, np.float32)
        shift = np.asarray(shift, np.float32)
        _, _, cin, cout = w.shape
        H = W = img_size // (2 ** l)
        oh, ow = H // 2, W // 2
        n = ow * cout
        lane_in = W * cin
        lane_pad = ((lane_in + 127) // 128) * 128
        # BN-scale fold is exact because LeakyReLU(s*z) = s*LeakyReLU(z) for s > 0.
        assert np.all(scale > 0.0), "BN-scale fold into conv weights needs scale > 0"
        w_s = w * scale[None, None, None, :]
        w2 = np.zeros((3, lane_pad, n), np.float32)
        for ky in range(3):
            for ox in range(ow):
                for kx in range(3):
                    x = 2 * ox + kx - 1
                    if not (0 <= x < W):
                        continue                              # left/right zero padding
                    if l == 0:                                # block-0 lanes are (c, x)
                        for c in range(cin):
                            w2[ky, c * W + x, ox * cout:(ox + 1) * cout] = w_s[ky, kx, c]
                    else:                                     # other blocks: lanes are (x, c)
                        w2[ky, x * cin:(x + 1) * cin, ox * cout:(ox + 1) * cout] = w_s[ky, kx]
        k = 3 * lane_pad
        w2_list.append(w2.reshape(k, n))
        bias_rows.append(np.tile(b * scale, ow))
        shift_rows.append(np.tile(shift, ow))
        metas.append(dict(H=H, W=W, cin=cin, cout=cout, oh=oh, ow=ow, n=n,
                          lane_in=lane_in, lane_pad=lane_pad, k=k, k_off=k_off))
        k_off += k

    n_common = metas[0]['n']
    assert all(m['n'] == n_common for m in metas), \
        "conv blocks must share one output lane width (true for base_feature_maps=16)"

    wa, ba, wc, bc = [np.asarray(a, np.float32) for a in head_params]
    n_out = 1 + wc.shape[1]
    ds = img_size // (2 ** n_blk)
    # TODO(synk): ds > 1 would need the NCHW-flatten permutation of the head rows.
    assert ds == 1, "head only implemented for img_size // 16 == 1"
    assert wa.shape[0] == n_common
    w_head = np.concatenate([wa, wc], axis=1)                 # (feat, 1 + n_classes)

    # One (2*n_blk, n) f32 epilogue slab:
    #   rows 0..3  conv bias rows (BN scale folded in)
    #   rows 4..6  BatchNorm(eval) shift rows for blocks 1..3
    #   row  7     head bias, zero padded to n lanes
    bs = np.zeros((2 * n_blk, n_common), np.float32)
    for l in range(n_blk):
        bs[l] = bias_rows[l]
    for l in range(1, n_blk):
        bs[n_blk + l - 1] = shift_rows[l]
    bs[2 * n_blk - 1, :n_out] = np.concatenate([ba, bc])

    meta = dict(blocks=metas, n_out=n_out)
    return (meta,
            jnp.asarray(np.concatenate(w2_list, axis=0), dtype=jnp.bfloat16),
            jnp.asarray(bs, dtype=jnp.float32),
            jnp.asarray(w_head, dtype=jnp.bfloat16))


# ----------------------------------------------------------------------------
# Forward pass: ONE pallas_call, kernel consumes the raw NCHW image.
# ----------------------------------------------------------------------------
def discriminator_forward(img_nchw, prepared):
    """img_nchw: (B, C, H, W) float32.  Returns (validity (B,1), label (B,n_classes))."""
    meta, w_all, bs, wh = prepared
    batch = int(img_nchw.shape[0])
    n_out = meta['n_out']
    img = img_nchw if img_nchw.dtype == jnp.float32 else img_nchw.astype(jnp.float32)
    vmem = pltpu.MemorySpace.VMEM

    def run(strided):
        kern = _make_kernel(batch, n_out, meta['blocks'], strided_taps=strided)
        out = pl.pallas_call(
            kern,
            out_shape=jax.ShapeDtypeStruct((batch, n_out), jnp.float32),
            in_specs=[pl.BlockSpec(memory_space=vmem)] * 4,
            out_specs=pl.BlockSpec(memory_space=vmem),
            scratch_shapes=[pltpu.VMEM((batch, m['H'] + 2, m['lane_pad']), jnp.float32)
                            for m in meta['blocks']],
        )(img, w_all, bs, wh)
        return jax.block_until_ready(out)

    try:
        out = run(strided=True)
    except Exception:
        # Fallback: gather the stride-2 row taps as static single-row reads if
        # strided sublane loads do not lower on this backend.
        out = run(strided=False)
    return out[:, 0:1], out[:, 1:]


# ----------------------------------------------------------------------------
# Parameter construction (deterministic, mirrors the nn.Module shapes)
# ----------------------------------------------------------------------------
def init_params(key, n_classes, n_channels, img_size, base_feature_maps=16):
    chans = [n_channels, base_feature_maps, base_feature_maps * 2,
             base_feature_maps * 4, base_feature_maps * 8]
    keys = jax.random.split(key, 10)
    ki = 0
    blocks = []
    for i in range(4):
        cin, cout = chans[i], chans[i + 1]
        w = 0.15 * jax.random.normal(keys[ki], (3, 3, cin, cout), jnp.float32); ki += 1
        b = 0.10 * jax.random.normal(keys[ki], (cout,), jnp.float32); ki += 1
        if i == 0:
            scale = jnp.ones((cout,), jnp.float32)
            shift = jnp.zeros((cout,), jnp.float32)
        else:
            # BatchNorm2d(eps=0.8), PyTorch defaults: gamma=1, beta=0, rm=0, rv=1
            gamma = jnp.ones((cout,), jnp.float32)
            beta = jnp.zeros((cout,), jnp.float32)
            r_mean = jnp.zeros((cout,), jnp.float32)
            r_var = jnp.ones((cout,), jnp.float32)
            scale = gamma / jnp.sqrt(r_var + 0.8)
            shift = beta - r_mean * scale
        blocks.append((w, b, scale, shift))
    ds = img_size // (2 ** 4)
    # NOTE: 128*ds*ds mirrors the module's hard-coded head width; it matches the
    # conv stack only when base_feature_maps == 16 (same latent bug as the spec).
    feat = 128 * ds * ds
    wa = 0.15 * jax.random.normal(keys[ki], (feat, 1), jnp.float32); ki += 1
    ba = jnp.zeros((1,), jnp.float32)
    wc = 0.15 * jax.random.normal(keys[ki], (feat, n_classes), jnp.float32); ki += 1
    bc = jnp.zeros((n_classes,), jnp.float32)
    return blocks, (wa, ba, wc, bc)


# ----------------------------------------------------------------------------
# Plain-JAX eval-mode reference of the PyTorch module (f32), for a sanity check
# ----------------------------------------------------------------------------
def reference_forward(img_nchw, blocks, head_params):
    x = jnp.transpose(img_nchw, (0, 2, 3, 1)).astype(jnp.float32)   # NHWC
    for w, b, scale, shift in blocks:
        y = jax.lax.conv_general_dilated(
            x, w, window_strides=(2, 2), padding=((1, 1), (1, 1)),
            dimension_numbers=("NHWC", "HWIO", "NHWC"))
        y = y + b
        y = jnp.where(y >= 0.0, y, 0.2 * y)                         # LeakyReLU
        x = y * scale + shift                                       # Dropout=id, BN(eval)
    bsz = x.shape[0]
    feats = jnp.transpose(x, (0, 3, 1, 2)).reshape(bsz, -1)         # NCHW flatten
    wa, ba, wc, bc = head_params
    validity = jax.nn.sigmoid(feats @ wa + ba)
    label = jax.nn.softmax(feats @ wc + bc, axis=-1)
    return validity, label


if __name__ == "__main__":
    key = jax.random.PRNGKey(0)
    k_img, k_par = jax.random.split(key)

    n_classes, n_channels, img_size, batch = 10, 4, 16, 2
    img = jax.random.normal(k_img, (batch, n_channels, img_size, img_size),
                            jnp.float32)

    blocks, head_params = init_params(k_par, n_classes, n_channels, img_size)
    prepared = prepare_discriminator(blocks, head_params, img_size=img_size)

    validity, label = discriminator_forward(img, prepared)
    jax.block_until_ready((validity, label))

    assert validity.shape == (batch, 1)
    assert label.shape == (batch, n_classes)

    # Sanity check vs. the f32 reference (bf16 MXU inputs => loose tolerance on
    # the [0, 1] outputs).
    v_ref, l_ref = reference_forward(img, blocks, head_params)
    assert jnp.allclose(validity, v_ref, atol=4e-2)
    assert jnp.allclose(label, l_ref, atol=4e-2)

    print("KERNEL_OK")
</pallas_src>

<mosaic_0001>
module attributes {stable_mosaic.version = 11 : i64} {
  func.func @kernel(%arg0: memref<2x4x16x16xf32, #tpu.memory_space<vmem>>, %arg1: memref<1536x128xbf16, #tpu.memory_space<vmem>>, %arg2: memref<8x128xf32, #tpu.memory_space<vmem>>, %arg3: memref<128x11xbf16, #tpu.memory_space<vmem>>, %arg4: memref<2x11xf32, #tpu.memory_space<vmem>>, %arg5: memref<2x18x128xf32, #tpu.memory_space<vmem>>, %arg6: memref<2x10x128xf32, #tpu.memory_space<vmem>>, %arg7: memref<2x6x128xf32, #tpu.memory_space<vmem>>, %arg8: memref<2x4x128xf32, #tpu.memory_space<vmem>>) attributes {dimension_semantics = [], scalar_prefetch = 0 : i64, scratch_operands = 4 : i64, tpu.core_type = #tpu.core_type<tc>} {
    %cst = arith.constant 0.000000e+00 : f32
    %0 = vector.broadcast %cst : f32 to vector<2x18x128xf32>
    %c0 = arith.constant 0 : index
    %c0_0 = arith.constant 0 : index
    %c0_1 = arith.constant 0 : index
    %1 = vector.load %arg5[%c0, %c0_0, %c0_1] : memref<2x18x128xf32, #tpu.memory_space<vmem>>, vector<2x18x128xf32>
    tpu.vector_store %arg5[%c0, %c0_0, %c0_1], %0 {strides = array<i32>} : memref<2x18x128xf32, #tpu.memory_space<vmem>>, vector<2x18x128xf32>,
    %c0_2 = arith.constant 0 : index
    %c0_3 = arith.constant 0 : index
    %c0_4 = arith.constant 0 : index
    %c0_5 = arith.constant 0 : index
    %2 = vector.load %arg0[%c0_2, %c0_3, %c0_4, %c0_5] : memref<2x4x16x16xf32, #tpu.memory_space<vmem>>, vector<1x1x16x16xf32>
    %3 = vector.shape_cast %2 : vector<1x1x16x16xf32> to vector<16x16xf32>
    %c0_6 = arith.constant 0 : index
    %c1 = arith.constant 1 : index
    %c0_7 = arith.constant 0 : index
    %c0_8 = arith.constant 0 : index
    %4 = vector.load %arg0[%c0_6, %c1, %c0_7, %c0_8] : memref<2x4x16x16xf32, #tpu.memory_space<vmem>>, vector<1x1x16x16xf32>
    %5 = vector.shape_cast %4 : vector<1x1x16x16xf32> to vector<16x16xf32>
    %c0_9 = arith.constant 0 : index
    %c2 = arith.constant 2 : index
    %c0_10 = arith.constant 0 : index
    %c0_11 = arith.constant 0 : index
    %6 = vector.load %arg0[%c0_9, %c2, %c0_10, %c0_11] : memref<2x4x16x16xf32, #tpu.memory_space<vmem>>, vector<1x1x16x16xf32>
    %7 = vector.shape_cast %6 : vector<1x1x16x16xf32> to vector<16x16xf32>
    %c0_12 = arith.constant 0 : index
    %c3 = arith.constant 3 : index
    %c0_13 = arith.constant 0 : index
    %c0_14 = arith.constant 0 : index
    %8 = vector.load %arg0[%c0_12, %c3, %c0_13, %c0_14] : memref<2x4x16x16xf32, #tpu.memory_space<vmem>>, vector<1x1x16x16xf32>
    %9 = vector.shape_cast %8 : vector<1x1x16x16xf32> to vector<16x16xf32>
    %10 = tpu.concatenate %3, %5, %7, %9 in 1 : vector<16x16xf32>, vector<16x16xf32>, vector<16x16xf32>, vector<16x16xf32> -> vector<16x64xf32>
    %c0_15 = arith.constant 0 : index
    %c1_16 = arith.constant 1 : index
    %c0_17 = arith.constant 0 : index
    %11 = vector.load %arg5[%c0_15, %c1_16, %c0_17] : memref<2x18x128xf32, #tpu.memory_space<vmem>>, vector<1x16x64xf32>
    %12 = vector.shape_cast %11 : vector<1x16x64xf32> to vector<16x64xf32>
    %13 = vector.shape_cast %10 : vector<16x64xf32> to vector<1x16x64xf32>
    tpu.vector_store %arg5[%c0_15, %c1_16, %c0_17], %13 {strides = array<i32>} : memref<2x18x128xf32, #tpu.memory_space<vmem>>, vector<1x16x64xf32>,
    %c1_18 = arith.constant 1 : index
    %c0_19 = arith.constant 0 : index
    %c0_20 = arith.constant 0 : index
    %c0_21 = arith.constant 0 : index
    %14 = vector.load %arg0[%c1_18, %c0_19, %c0_20, %c0_21] : memref<2x4x16x16xf32, #tpu.memory_space<vmem>>, vector<1x1x16x16xf32>
    %15 = vector.shape_cast %14 : vector<1x1x16x16xf32> to vector<16x16xf32>
    %c1_22 = arith.constant 1 : index
    %c1_23 = arith.constant 1 : index
    %c0_24 = arith.constant 0 : index
    %c0_25 = arith.constant 0 : index
    %16 = vector.load %arg0[%c1_22, %c1_23, %c0_24, %c0_25] : memref<2x4x16x16xf32, #tpu.memory_space<vmem>>, vector<1x1x16x16xf32>
    %17 = vector.shape_cast %16 : vector<1x1x16x16xf32> to vector<16x16xf32>
    %c1_26 = arith.constant 1 : index
    %c2_27 = arith.constant 2 : index
    %c0_28 = arith.constant 0 : index
    %c0_29 = arith.constant 0 : index
    %18 = vector.load %arg0[%c1_26, %c2_27, %c0_28, %c0_29] : memref<2x4x16x16xf32, #tpu.memory_space<vmem>>, vector<1x1x16x16xf32>
    %19 = vector.shape_cast %18 : vector<1x1x16x16xf32> to vector<16x16xf32>
    %c1_30 = arith.constant 1 : index
    %c3_31 = arith.constant 3 : index
    %c0_32 = arith.constant 0 : index
    %c0_33 = arith.constant 0 : index
    %20 = vector.load %arg0[%c1_30, %c3_31, %c0_32, %c0_33] : memref<2x4x16x16xf32, #tpu.memory_space<vmem>>, vector<1x1x16x16xf32>
    %21 = vector.shape_cast %20 : vector<1x1x16x16xf32> to vector<16x16xf32>
    %22 = tpu.concatenate %15, %17, %19, %21 in 1 : vector<16x16xf32>, vector<16x16xf32>, vector<16x16xf32>, vector<16x16xf32> -> vector<16x64xf32>
    %c1_34 = arith.constant 1 : index
    %c1_35 = arith.constant 1 : index
    %c0_36 = arith.constant 0 : index
    %23 = vector.load %arg5[%c1_34, %c1_35, %c0_36] : memref<2x18x128xf32, #tpu.memory_space<vmem>>, vector<1x16x64xf32>
    %24 = vector.shape_cast %23 : vector<1x16x64xf32> to vector<16x64xf32>
    %25 = vector.shape_cast %22 : vector<16x64xf32> to vector<1x16x64xf32>
    tpu.vector_store %arg5[%c1_34, %c1_35, %c0_36], %25 {strides = array<i32>} : memref<2x18x128xf32, #tpu.memory_space<vmem>>, vector<1x16x64xf32>,
    %c0_37 = arith.constant 0 : index
    %c0_38 = arith.constant 0 : index
    %c0_39 = arith.constant 0 : index
    %26 = tpu.strided_load %arg5[%c0_37, %c0_38, %c0_39] {strides = array<i32: 1, 2, 1>} : memref<2x18x128xf32, #tpu.memory_space<vmem>>, vector<1x8x128xf32>
    %27 = vector.shape_cast %26 : vector<1x8x128xf32> to vector<8x128xf32>
    %c0_40 = arith.constant 0 : index
    %c1_41 = arith.constant 1 : index
    %c0_42 = arith.constant 0 : index
    %28 = tpu.strided_load %arg5[%c0_40, %c1_41, %c0_42] {strides = array<i32: 1, 2, 1>} : memref<2x18x128xf32, #tpu.memory_space<vmem>>, vector<1x8x128xf32>
    %29 = vector.shape_cast %28 : vector<1x8x128xf32> to vector<8x128xf32>
    %c0_43 = arith.constant 0 : index
    %c2_44 = arith.constant 2 : index
    %c0_45 = arith.constant 0 : index
    %30 = tpu.strided_load %arg5[%c0_43, %c2_44, %c0_45] {strides = array<i32: 1, 2, 1>} : memref<2x18x128xf32, #tpu.memory_space<vmem>>, vector<1x8x128xf32>
    %31 = vector.shape_cast %30 : vector<1x8x128xf32> to vector<8x128xf32>
    %32 = tpu.concatenate %27, %29, %31 in 1 : vector<8x128xf32>, vector<8x128xf32>, vector<8x128xf32> -> vector<8x384xf32>
    %c1_46 = arith.constant 1 : index
    %c0_47 = arith.constant 0 : index
    %c0_48 = arith.constant 0 : index
    %33 = tpu.strided_load %arg5[%c1_46, %c0_47, %c0_48] {strides = array<i32: 1, 2, 1>} : memref<2x18x128xf32, #tpu.memory_space<vmem>>, vector<1x8x128xf32>
    %34 = vector.shape_cast %33 : vector<1x8x128xf32> to vector<8x128xf32>
    %c1_49 = arith.constant 1 : index
    %c1_50 = arith.constant 1 : index
    %c0_51 = arith.constant 0 : index
    %35 = tpu.strided_load %arg5[%c1_49, %c1_50, %c0_51] {strides = array<i32: 1, 2, 1>} : memref<2x18x128xf32, #tpu.memory_space<vmem>>, vector<1x8x128xf32>
    %36 = vector.shape_cast %35 : vector<1x8x128xf32> to vector<8x128xf32>
    %c1_52 = arith.constant 1 : index
    %c2_53 = arith.constant 2 : index
    %c0_54 = arith.constant 0 : index
    %37 = tpu.strided_load %arg5[%c1_52, %c2_53, %c0_54] {strides = array<i32: 1, 2, 1>} : memref<2x18x128xf32, #tpu.memory_space<vmem>>, vector<1x8x128xf32>
    %38 = vector.shape_cast %37 : vector<1x8x128xf32> to vector<8x128xf32>
    %39 = tpu.concatenate %34, %36, %38 in 1 : vector<8x128xf32>, vector<8x128xf32>, vector<8x128xf32> -> vector<8x384xf32>
    %40 = tpu.concatenate %32, %39 in 0 : vector<8x384xf32>, vector<8x384xf32> -> vector<16x384xf32>
    %c0_55 = arith.constant 0 : index
    %c0_56 = arith.constant 0 : index
    %41 = vector.load %arg1[%c0_55, %c0_56] : memref<1536x128xbf16, #tpu.memory_space<vmem>>, vector<384x128xbf16>
    %42 = arith.truncf %40 : vector<16x384xf32> to vector<16x384xbf16>
    %cst_57 = arith.constant dense<0.000000e+00> : vector<16x128xf32>
    %43 = tpu.matmul %42, %41, %cst_57 {dimension_numbers = #tpu.dot_dimension_numbers<[1], [0], [0], [1], [0, 0, 1, 1], [], []>} : vector<16x384xbf16>, vector<384x128xbf16>, vector<16x128xf32> -> vector<16x128xf32>
    %c0_58 = arith.constant 0 : index
    %c0_59 = arith.constant 0 : index
    %44 = vector.load %arg2[%c0_58, %c0_59] : memref<8x128xf32, #tpu.memory_space<vmem>>, vector<1x128xf32>
    %45 = vector.broadcast %44 : vector<1x128xf32> to vector<16x128xf32>
    %46 = arith.addf %43, %45 : vector<16x128xf32>
    %cst_60 = arith.constant 2.000000e-01 : f32
    %47 = vector.broadcast %cst_60 : f32 to vector<16x128xf32>
    %48 = arith.mulf %47, %46 : vector<16x128xf32>
    %49 = arith.maximumf %46, %48 : vector<16x128xf32>
    %cst_61 = arith.constant 0.000000e+00 : f32
    %50 = vector.broadcast %cst_61 : f32 to vector<2x10x128xf32>
    %c0_62 = arith.constant 0 : index
    %c0_63 = arith.constant 0 : index
    %c0_64 = arith.constant 0 : index
    %51 = vector.load %arg6[%c0_62, %c0_63, %c0_64] : memref<2x10x128xf32, #tpu.memory_space<vmem>>, vector<2x10x128xf32>
    tpu.vector_store %arg6[%c0_62, %c0_63, %c0_64], %50 {strides = array<i32>} : memref<2x10x128xf32, #tpu.memory_space<vmem>>, vector<2x10x128xf32>,
    %52 = vector.extract_strided_slice %49 {offsets = [0, 0], sizes = [8, 128], strides = [1, 1]} : vector<16x128xf32> to vector<8x128xf32>
    %c0_65 = arith.constant 0 : index
    %c1_66 = arith.constant 1 : index
    %c0_67 = arith.constant 0 : index
    %53 = vector.load %arg6[%c0_65, %c1_66, %c0_67] : memref<2x10x128xf32, #tpu.memory_space<vmem>>, vector<1x8x128xf32>
    %54 = vector.shape_cast %53 : vector<1x8x128xf32> to vector<8x128xf32>
    %55 = vector.shape_cast %52 : vector<8x128xf32> to vector<1x8x128xf32>
    tpu.vector_store %arg6[%c0_65, %c1_66, %c0_67], %55 {strides = array<i32>} : memref<2x10x128xf32, #tpu.memory_space<vmem>>, vector<1x8x128xf32>,
    %56 = vector.extract_strided_slice %49 {offsets = [8, 0], sizes = [8, 128], strides = [1, 1]} : vector<16x128xf32> to vector<8x128xf32>
    %c1_68 = arith.constant 1 : index
    %c1_69 = arith.constant 1 : index
    %c0_70 = arith.constant 0 : index
    %57 = vector.load %arg6[%c1_68, %c1_69, %c0_70] : memref<2x10x128xf32, #tpu.memory_space<vmem>>, vector<1x8x128xf32>
    %58 = vector.shape_cast %57 : vector<1x8x128xf32> to vector<8x128xf32>
    %59 = vector.shape_cast %56 : vector<8x128xf32> to vector<1x8x128xf32>
    tpu.vector_store %arg6[%c1_68, %c1_69, %c0_70], %59 {strides = array<i32>} : memref<2x10x128xf32, #tpu.memory_space<vmem>>, vector<1x8x128xf32>,
    %c0_71 = arith.constant 0 : index
    %c0_72 = arith.constant 0 : index
    %c0_73 = arith.constant 0 : index
    %60 = tpu.strided_load %arg6[%c0_71, %c0_72, %c0_73] {strides = array<i32: 1, 2, 1>} : memref<2x10x128xf32, #tpu.memory_space<vmem>>, vector<1x4x128xf32>
    %61 = vector.shape_cast %60 : vector<1x4x128xf32> to vector<4x128xf32>
    %c0_74 = arith.constant 0 : index
    %c1_75 = arith.constant 1 : index
    %c0_76 = arith.constant 0 : index
    %62 = tpu.strided_load %arg6[%c0_74, %c1_75, %c0_76] {strides = array<i32: 1, 2, 1>} : memref<2x10x128xf32, #tpu.memory_space<vmem>>, vector<1x4x128xf32>
    %63 = vector.shape_cast %62 : vector<1x4x128xf32> to vector<4x128xf32>
    %c0_77 = arith.constant 0 : index
    %c2_78 = arith.constant 2 : index
    %c0_79 = arith.constant 0 : index
    %64 = tpu.strided_load %arg6[%c0_77, %c2_78, %c0_79] {strides = array<i32: 1, 2, 1>} : memref<2x10x128xf32, #tpu.memory_space<vmem>>, vector<1x4x128xf32>
    %65 = vector.shape_cast %64 : vector<1x4x128xf32> to vector<4x128xf32>
    %66 = tpu.concatenate %61, %63, %65 in 1 : vector<4x128xf32>, vector<4x128xf32>, vector<4x128xf32> -> vector<4x384xf32>
    %c1_80 = arith.constant 1 : index
    %c0_81 = arith.constant 0 : index
    %c0_82 = arith.constant 0 : index
    %67 = tpu.strided_load %arg6[%c1_80, %c0_81, %c0_82] {strides = array<i32: 1, 2, 1>} : memref<2x10x128xf32, #tpu.memory_space<vmem>>, vector<1x4x128xf32>
    %68 = vector.shape_cast %67 : vector<1x4x128xf32> to vector<4x128xf32>
    %c1_83 = arith.constant 1 : index
    %c1_84 = arith.constant 1 : index
    %c0_85 = arith.constant 0 : index
    %69 = tpu.strided_load %arg6[%c1_83, %c1_84, %c0_85] {strides = array<i32: 1, 2, 1>} : memref<2x10x128xf32, #tpu.memory_space<vmem>>, vector<1x4x128xf32>
    %70 = vector.shape_cast %69 : vector<1x4x128xf32> to vector<4x128xf32>
    %c1_86 = arith.constant 1 : index
    %c2_87 = arith.constant 2 : index
    %c0_88 = arith.constant 0 : index
    %71 = tpu.strided_load %arg6[%c1_86, %c2_87, %c0_88] {strides = array<i32: 1, 2, 1>} : memref<2x10x128xf32, #tpu.memory_space<vmem>>, vector<1x4x128xf32>
    %72 = vector.shape_cast %71 : vector<1x4x128xf32> to vector<4x128xf32>
    %73 = tpu.concatenate %68, %70, %72 in 1 : vector<4x128xf32>, vector<4x128xf32>, vector<4x128xf32> -> vector<4x384xf32>
    %74 = tpu.concatenate %66, %73 in 0 : vector<4x384xf32>, vector<4x384xf32> -> vector<8x384xf32>
    %c384 = arith.constant 384 : index
    %c0_89 = arith.constant 0 : index
    %75 = vector.load %arg1[%c384, %c0_89] : memref<1536x128xbf16, #tpu.memory_space<vmem>>, vector<384x128xbf16>
    %76 = arith.truncf %74 : vector<8x384xf32> to vector<8x384xbf16>
    %cst_90 = arith.constant dense<0.000000e+00> : vector<8x128xf32>
    %77 = tpu.matmul %76, %75, %cst_90 {dimension_numbers = #tpu.dot_dimension_numbers<[1], [0], [0], [1], [0, 0, 1, 1], [], []>} : vector<8x384xbf16>, vector<384x128xbf16>, vector<8x128xf32> -> vector<8x128xf32>
    %c1_91 = arith.constant 1 : index
    %c0_92 = arith.constant 0 : index
    %78 = vector.load %arg2[%c1_91, %c0_92] : memref<8x128xf32, #tpu.memory_space<vmem>>, vector<1x128xf32>
    %79 = vector.broadcast %78 : vector<1x128xf32> to vector<8x128xf32>
    %80 = arith.addf %77, %79 : vector<8x128xf32>
    %cst_93 = arith.constant 2.000000e-01 : f32
    %81 = vector.broadcast %cst_93 : f32 to vector<8x128xf32>
    %82 = arith.mulf %81, %80 : vector<8x128xf32>
    %83 = arith.maximumf %80, %82 : vector<8x128xf32>
    %c4 = arith.constant 4 : index
    %c0_94 = arith.constant 0 : index
    %84 = vector.load %arg2[%c4, %c0_94] : memref<8x128xf32, #tpu.memory_space<vmem>>, vector<1x128xf32>
    %85 = vector.broadcast %84 : vector<1x128xf32> to vector<8x128xf32>
    %86 = arith.addf %83, %85 : vector<8x128xf32>
    %cst_95 = arith.constant 0.000000e+00 : f32
    %87 = vector.broadcast %cst_95 : f32 to vector<2x6x128xf32>
    %c0_96 = arith.constant 0 : index
    %c0_97 = arith.constant 0 : index
    %c0_98 = arith.constant 0 : index
    %88 = vector.load %arg7[%c0_96, %c0_97, %c0_98] : memref<2x6x128xf32, #tpu.memory_space<vmem>>, vector<2x6x128xf32>
    tpu.vector_store %arg7[%c0_96, %c0_97, %c0_98], %87 {strides = array<i32>} : memref<2x6x128xf32, #tpu.memory_space<vmem>>, vector<2x6x128xf32>,
    %89 = vector.extract_strided_slice %86 {offsets = [0, 0], sizes = [4, 128], strides = [1, 1]} : vector<8x128xf32> to vector<4x128xf32>
    %c0_99 = arith.constant 0 : index
    %c1_100 = arith.constant 1 : index
    %c0_101 = arith.constant 0 : index
    %90 = vector.load %arg7[%c0_99, %c1_100, %c0_101] : memref<2x6x128xf32, #tpu.memory_space<vmem>>, vector<1x4x128xf32>
    %91 = vector.shape_cast %90 : vector<1x4x128xf32> to vector<4x128xf32>
    %92 = vector.shape_cast %89 : vector<4x128xf32> to vector<1x4x128xf32>
    tpu.vector_store %arg7[%c0_99, %c1_100, %c0_101], %92 {strides = array<i32>} : memref<2x6x128xf32, #tpu.memory_space<vmem>>, vector<1x4x128xf32>,
    %93 = vector.extract_strided_slice %86 {offsets = [4, 0], sizes = [4, 128], strides = [1, 1]} : vector<8x128xf32> to vector<4x128xf32>
    %c1_102 = arith.constant 1 : index
    %c1_103 = arith.constant 1 : index
    %c0_104 = arith.constant 0 : index
    %94 = vector.load %arg7[%c1_102, %c1_103, %c0_104] : memref<2x6x128xf32, #tpu.memory_space<vmem>>, vector<1x4x128xf32>
    %95 = vector.shape_cast %94 : vector<1x4x128xf32> to vector<4x128xf32>
    %96 = vector.shape_cast %93 : vector<4x128xf32> to vector<1x4x128xf32>
    tpu.vector_store %arg7[%c1_102, %c1_103, %c0_104], %96 {strides = array<i32>} : memref<2x6x128xf32, #tpu.memory_space<vmem>>, vector<1x4x128xf32>,
    %c0_105 = arith.constant 0 : index
    %c0_106 = arith.constant 0 : index
    %c0_107 = arith.constant 0 : index
    %97 = tpu.strided_load %arg7[%c0_105, %c0_106, %c0_107] {strides = array<i32: 1, 2, 1>} : memref<2x6x128xf32, #tpu.memory_space<vmem>>, vector<1x2x128xf32>
    %98 = vector.shape_cast %97 : vector<1x2x128xf32> to vector<2x128xf32>
    %c0_108 = arith.constant 0 : index
    %c1_109 = arith.constant 1 : index
    %c0_110 = arith.constant 0 : index
    %99 = tpu.strided_load %arg7[%c0_108, %c1_109, %c0_110] {strides = array<i32: 1, 2, 1>} : memref<2x6x128xf32, #tpu.memory_space<vmem>>, vector<1x2x128xf32>
    %100 = vector.shape_cast %99 : vector<1x2x128xf32> to vector<2x128xf32>
    %c0_111 = arith.constant 0 : index
    %c2_112 = arith.constant 2 : index
    %c0_113 = arith.constant 0 : index
    %101 = tpu.strided_load %arg7[%c0_111, %c2_112, %c0_113] {strides = array<i32: 1, 2, 1>} : memref<2x6x128xf32, #tpu.memory_space<vmem>>, vector<1x2x128xf32>
    %102 = vector.shape_cast %101 : vector<1x2x128xf32> to vector<2x128xf32>
    %103 = tpu.concatenate %98, %100, %102 in 1 : vector<2x128xf32>, vector<2x128xf32>, vector<2x128xf32> -> vector<2x384xf32>
    %c1_114 = arith.constant 1 : index
    %c0_115 = arith.constant 0 : index
    %c0_116 = arith.constant 0 : index
    %104 = tpu.strided_load %arg7[%c1_114, %c0_115, %c0_116] {strides = array<i32: 1, 2, 1>} : memref<2x6x128xf32, #tpu.memory_space<vmem>>, vector<1x2x128xf32>
    %105 = vector.shape_cast %104 : vector<1x2x128xf32> to vector<2x128xf32>
    %c1_117 = arith.constant 1 : index
    %c1_118 = arith.constant 1 : index
    %c0_119 = arith.constant 0 : index
    %106 = tpu.strided_load %arg7[%c1_117, %c1_118, %c0_119] {strides = array<i32: 1, 2, 1>} : memref<2x6x128xf32, #tpu.memory_space<vmem>>, vector<1x2x128xf32>
    %107 = vector.shape_cast %106 : vector<1x2x128xf32> to vector<2x128xf32>
    %c1_120 = arith.constant 1 : index
    %c2_121 = arith.constant 2 : index
    %c0_122 = arith.constant 0 : index
    %108 = tpu.strided_load %arg7[%c1_120, %c2_121, %c0_122] {strides = array<i32: 1, 2, 1>} : memref<2x6x128xf32, #tpu.memory_space<vmem>>, vector<1x2x128xf32>
    %109 = vector.shape_cast %108 : vector<1x2x128xf32> to vector<2x128xf32>
    %110 = tpu.concatenate %105, %107, %109 in 1 : vector<2x128xf32>, vector<2x128xf32>, vector<2x128xf32> -> vector<2x384xf32>
    %111 = tpu.concatenate %103, %110 in 0 : vector<2x384xf32>, vector<2x384xf32> -> vector<4x384xf32>
    %c768 = arith.constant 768 : index
    %c0_123 = arith.constant 0 : index
    %112 = vector.load %arg1[%c768, %c0_123] : memref<1536x128xbf16, #tpu.memory_space<vmem>>, vector<384x128xbf16>
    %113 = arith.truncf %111 : vector<4x384xf32> to vector<4x384xbf16>
    %cst_124 = arith.constant dense<0.000000e+00> : vector<4x128xf32>
    %114 = tpu.matmul %113, %112, %cst_124 {dimension_numbers = #tpu.dot_dimension_numbers<[1], [0], [0], [1], [0, 0, 1, 1], [], []>} : vector<4x384xbf16>, vector<384x128xbf16>, vector<4x128xf32> -> vector<4x128xf32>
    %c2_125 = arith.constant 2 : index
    %c0_126 = arith.constant 0 : index
    %115 = vector.load %arg2[%c2_125, %c0_126] : memref<8x128xf32, #tpu.memory_space<vmem>>, vector<1x128xf32>
    %116 = vector.broadcast %115 : vector<1x128xf32> to vector<4x128xf32>
    %117 = arith.addf %114, %116 : vector<4x128xf32>
    %cst_127 = arith.constant 2.000000e-01 : f32
    %118 = vector.broadcast %cst_127 : f32 to vector<4x128xf32>
    %119 = arith.mulf %118, %117 : vector<4x128xf32>
    %120 = arith.maximumf %117, %119 : vector<4x128xf32>
    %c5 = arith.constant 5 : index
    %c0_128 = arith.constant 0 : index
    %121 = vector.load %arg2[%c5, %c0_128] : memref<8x128xf32, #tpu.memory_space<vmem>>, vector<1x128xf32>
    %122 = vector.broadcast %121 : vector<1x128xf32> to vector<4x128xf32>
    %123 = arith.addf %120, %122 : vector<4x128xf32>
    %cst_129 = arith.constant 0.000000e+00 : f32
    %124 = vector.broadcast %cst_129 : f32 to vector<2x4x128xf32>
    %c0_130 = arith.constant 0 : index
    %c0_131 = arith.constant 0 : index
    %c0_132 = arith.constant 0 : index
    %125 = vector.load %arg8[%c0_130, %c0_131, %c0_132] : memref<2x4x128xf32, #tpu.memory_space<vmem>>, vector<2x4x128xf32>
    tpu.vector_store %arg8[%c0_130, %c0_131, %c0_132], %124 {strides = array<i32>} : memref<2x4x128xf32, #tpu.memory_space<vmem>>, vector<2x4x128xf32>,
    %126 = vector.extract_strided_slice %123 {offsets = [0, 0], sizes = [2, 128], strides = [1, 1]} : vector<4x128xf32> to vector<2x128xf32>
    %c0_133 = arith.constant 0 : index
    %c1_134 = arith.constant 1 : index
    %c0_135 = arith.constant 0 : index
    %127 = vector.load %arg8[%c0_133, %c1_134, %c0_135] : memref<2x4x128xf32, #tpu.memory_space<vmem>>, vector<1x2x128xf32>
    %128 = vector.shape_cast %127 : vector<1x2x128xf32> to vector<2x128xf32>
    %129 = vector.shape_cast %126 : vector<2x128xf32> to vector<1x2x128xf32>
    tpu.vector_store %arg8[%c0_133, %c1_134, %c0_135], %129 {strides = array<i32>} : memref<2x4x128xf32, #tpu.memory_space<vmem>>, vector<1x2x128xf32>,
    %130 = vector.extract_strided_slice %123 {offsets = [2, 0], sizes = [2, 128], strides = [1, 1]} : vector<4x128xf32> to vector<2x128xf32>
    %c1_136 = arith.constant 1 : index
    %c1_137 = arith.constant 1 : index
    %c0_138 = arith.constant 0 : index
    %131 = vector.load %arg8[%c1_136, %c1_137, %c0_138] : memref<2x4x128xf32, #tpu.memory_space<vmem>>, vector<1x2x128xf32>
    %132 = vector.shape_cast %131 : vector<1x2x128xf32> to vector<2x128xf32>
    %133 = vector.shape_cast %130 : vector<2x128xf32> to vector<1x2x128xf32>
    tpu.vector_store %arg8[%c1_136, %c1_137, %c0_138], %133 {strides = array<i32>} : memref<2x4x128xf32, #tpu.memory_space<vmem>>, vector<1x2x128xf32>,
    %c0_139 = arith.constant 0 : index
    %c0_140 = arith.constant 0 : index
    %c0_141 = arith.constant 0 : index
    %134 = vector.load %arg8[%c0_139, %c0_140, %c0_141] : memref<2x4x128xf32, #tpu.memory_space<vmem>>, vector<1x1x128xf32>
    %135 = vector.shape_cast %134 : vector<1x1x128xf32> to vector<1x128xf32>
    %c0_142 = arith.constant 0 : index
    %c1_143 = arith.constant 1 : index
    %c0_144 = arith.constant 0 : index
    %136 = vector.load %arg8[%c0_142, %c1_143, %c0_144] : memref<2x4x128xf32, #tpu.memory_space<vmem>>, vector<1x1x128xf32>
    %137 = vector.shape_cast %136 : vector<1x1x128xf32> to vector<1x128xf32>
    %c0_145 = arith.constant 0 : index
    %c2_146 = arith.constant 2 : index
    %c0_147 = arith.constant 0 : index
    %138 = vector.load %arg8[%c0_145, %c2_146, %c0_147] : memref<2x4x128xf32, #tpu.memory_space<vmem>>, vector<1x1x128xf32>
    %139 = vector.shape_cast %138 : vector<1x1x128xf32> to vector<1x128xf32>
    %140 = tpu.concatenate %135, %137, %139 in 1 : vector<1x128xf32>, vector<1x128xf32>, vector<1x128xf32> -> vector<1x384xf32>
    %c1_148 = arith.constant 1 : index
    %c0_149 = arith.constant 0 : index
    %c0_150 = arith.constant 0 : index
    %141 = vector.load %arg8[%c1_148, %c0_149, %c0_150] : memref<2x4x128xf32, #tpu.memory_space<vmem>>, vector<1x1x128xf32>
    %142 = vector.shape_cast %141 : vector<1x1x128xf32> to vector<1x128xf32>
    %c1_151 = arith.constant 1 : index
    %c1_152 = arith.constant 1 : index
    %c0_153 = arith.constant 0 : index
    %143 = vector.load %arg8[%c1_151, %c1_152, %c0_153] : memref<2x4x128xf32, #tpu.memory_space<vmem>>, vector<1x1x128xf32>
    %144 = vector.shape_cast %143 : vector<1x1x128xf32> to vector<1x128xf32>
    %c1_154 = arith.constant 1 : index
    %c2_155 = arith.constant 2 : index
    %c0_156 = arith.constant 0 : index
    %145 = vector.load %arg8[%c1_154, %c2_155, %c0_156] : memref<2x4x128xf32, #tpu.memory_space<vmem>>, vector<1x1x128xf32>
    %146 = vector.shape_cast %145 : vector<1x1x128xf32> to vector<1x128xf32>
    %147 = tpu.concatenate %142, %144, %146 in 1 : vector<1x128xf32>, vector<1x128xf32>, vector<1x128xf32> -> vector<1x384xf32>
    %148 = tpu.concatenate %140, %147 in 0 : vector<1x384xf32>, vector<1x384xf32> -> vector<2x384xf32>
    %c1152 = arith.constant 1152 : index
    %c0_157 = arith.constant 0 : index
    %149 = vector.load %arg1[%c1152, %c0_157] : memref<1536x128xbf16, #tpu.memory_space<vmem>>, vector<384x128xbf16>
    %150 = arith.truncf %148 : vector<2x384xf32> to vector<2x384xbf16>
    %cst_158 = arith.constant dense<0.000000e+00> : vector<2x128xf32>
    %151 = tpu.matmul %150, %149, %cst_158 {dimension_numbers = #tpu.dot_dimension_numbers<[1], [0], [0], [1], [0, 0, 1, 1], [], []>} : vector<2x384xbf16>, vector<384x128xbf16>, vector<2x128xf32> -> vector<2x128xf32>
    %c3_159 = arith.constant 3 : index
    %c0_160 = arith.constant 0 : index
    %152 = vector.load %arg2[%c3_159, %c0_160] : memref<8x128xf32, #tpu.memory_space<vmem>>, vector<1x128xf32>
    %153 = vector.broadcast %152 : vector<1x128xf32> to vector<2x128xf32>
    %154 = arith.addf %151, %153 : vector<2x128xf32>
    %cst_161 = arith.constant 2.000000e-01 : f32
    %155 = vector.broadcast %cst_161 : f32 to vector<2x128xf32>
    %156 = arith.mulf %155, %154 : vector<2x128xf32>
    %157 = arith.maximumf %154, %156 : vector<2x128xf32>
    %c6 = arith.constant 6 : index
    %c0_162 = arith.constant 0 : index
    %158 = vector.load %arg2[%c6, %c0_162] : memref<8x128xf32, #tpu.memory_space<vmem>>, vector<1x128xf32>
    %159 = vector.broadcast %158 : vector<1x128xf32> to vector<2x128xf32>
    %160 = arith.addf %157, %159 : vector<2x128xf32>
    %161 = arith.truncf %160 : vector<2x128xf32> to vector<2x128xbf16>
    %c0_163 = arith.constant 0 : index
    %c0_164 = arith.constant 0 : index
    %162 = vector.load %arg3[%c0_163, %c0_164] : memref<128x11xbf16, #tpu.memory_space<vmem>>, vector<128x11xbf16>
    %cst_165 = arith.constant dense<0.000000e+00> : vector<2x11xf32>
    %163 = tpu.matmul %161, %162, %cst_165 {dimension_numbers = #tpu.dot_dimension_numbers<[1], [0], [0], [1], [0, 0, 1, 1], [], []>} : vector<2x128xbf16>, vector<128x11xbf16>, vector<2x11xf32> -> vector<2x11xf32>
    %c7 = arith.constant 7 : index
    %c0_166 = arith.constant 0 : index
    %164 = vector.load %arg2[%c7, %c0_166] : memref<8x128xf32, #tpu.memory_space<vmem>>, vector<1x11xf32>
    %165 = vector.broadcast %164 : vector<1x11xf32> to vector<2x11xf32>
    %166 = arith.addf %163, %165 : vector<2x11xf32>
    %167 = vector.extract_strided_slice %166 {offsets = [0, 0], sizes = [2, 1], strides = [1, 1]} : vector<2x11xf32> to vector<2x1xf32>
    %cst_167 = arith.constant 0.000000e+00 : f32
    %168 = vector.broadcast %cst_167 : f32 to vector<2x1xf32>
    %169 = arith.cmpf oge, %167, %168 : vector<2x1xf32>
    %cst_168 = arith.constant 0.000000e+00 : f32
    %170 = vector.broadcast %cst_168 : f32 to vector<2x1xf32>
    %171 = arith.subf %170, %167 : vector<2x1xf32>
    %172 = arith.select %169, %171, %167 : vector<2x1xi1>, vector<2x1xf32>
    %173 = math.exp %172 : vector<2x1xf32>
    %cst_169 = arith.constant 1.000000e+00 : f32
    %174 = vector.broadcast %cst_169 : f32 to vector<2x1xf32>
    %175 = arith.addf %174, %173 : vector<2x1xf32>
    %cst_170 = arith.constant 1.000000e+00 : f32
    %176 = vector.broadcast %cst_170 : f32 to vector<2x1xf32>
    %177 = arith.divf %176, %175 : vector<2x1xf32>
    %cst_171 = arith.constant 1.000000e+00 : f32
    %178 = vector.broadcast %cst_171 : f32 to vector<2x1xf32>
    %179 = arith.addf %178, %173 : vector<2x1xf32>
    %180 = arith.divf %173, %179 : vector<2x1xf32>
    %181 = arith.select %169, %177, %180 : vector<2x1xi1>, vector<2x1xf32>
    %182 = vector.extract_strided_slice %166 {offsets = [0, 1], sizes = [2, 10], strides = [1, 1]} : vector<2x11xf32> to vector<2x10xf32>
    %cst_172 = arith.constant dense<0xFF800000> : vector<2xf32>
    %183 = vector.multi_reduction <maximumf>, %182, %cst_172 [1] : vector<2x10xf32> to vector<2xf32>
    %184 = vector.shape_cast %183 : vector<2xf32> to vector<2x1xf32>
    %185 = vector.broadcast %184 : vector<2x1xf32> to vector<2x10xf32>
    %186 = arith.subf %182, %185 : vector<2x10xf32>
    %187 = math.exp %186 : vector<2x10xf32>
    %cst_173 = arith.constant dense<0.000000e+00> : vector<2xf32>
    %188 = vector.multi_reduction <add>, %187, %cst_173 [1] : vector<2x10xf32> to vector<2xf32>
    %189 = vector.shape_cast %188 : vector<2xf32> to vector<2x1xf32>
    %190 = vector.broadcast %189 : vector<2x1xf32> to vector<2x10xf32>
    %191 = arith.divf %187, %190 : vector<2x10xf32>
    %192 = tpu.concatenate %181, %191 in 1 : vector<2x1xf32>, vector<2x10xf32> -> vector<2x11xf32>
    %c0_174 = arith.constant 0 : index
    %c0_175 = arith.constant 0 : index
    %193 = vector.load %arg4[%c0_174, %c0_175] : memref<2x11xf32, #tpu.memory_space<vmem>>, vector<2x11xf32>
    tpu.vector_store %arg4[%c0_174, %c0_175], %192 {strides = array<i32>} : memref<2x11xf32, #tpu.memory_space<vmem>>, vector<2x11xf32>,
    return
  }
}

module attributes {stable_mosaic.version = 11 : i64} {
  func.func @kernel(%arg0: memref<2x4x16x16xf32, #tpu.memory_space<vmem>>, %arg1: memref<1536x128xbf16, #tpu.memory_space<vmem>>, %arg2: memref<8x128xf32, #tpu.memory_space<vmem>>, %arg3: memref<128x11xbf16, #tpu.memory_space<vmem>>, %arg4: memref<2x11xf32, #tpu.memory_space<vmem>>, %arg5: memref<2x18x128xf32, #tpu.memory_space<vmem>>, %arg6: memref<2x10x128xf32, #tpu.memory_space<vmem>>, %arg7: memref<2x6x128xf32, #tpu.memory_space<vmem>>, %arg8: memref<2x4x128xf32, #tpu.memory_space<vmem>>) attributes {dimension_semantics = [], scalar_prefetch = 0 : i64, scratch_operands = 4 : i64, tpu.core_type = #tpu.core_type<tc>} {
    %cst = arith.constant 0.000000e+00 : f32
    %0 = vector.broadcast %cst : f32 to vector<2x18x128xf32>
    %c0 = arith.constant 0 : index
    %c0_0 = arith.constant 0 : index
    %c0_1 = arith.constant 0 : index
    %1 = vector.load %arg5[%c0, %c0_0, %c0_1] : memref<2x18x128xf32, #tpu.memory_space<vmem>>, vector<2x18x128xf32>
    tpu.vector_store %arg5[%c0, %c0_0, %c0_1], %0 {strides = array<i32>} : memref<2x18x128xf32, #tpu.memory_space<vmem>>, vector<2x18x128xf32>,
    %c0_2 = arith.constant 0 : index
    %c0_3 = arith.constant 0 : index
    %c0_4 = arith.constant 0 : index
    %c0_5 = arith.constant 0 : index
    %2 = vector.load %arg0[%c0_2, %c0_3, %c0_4, %c0_5] : memref<2x4x16x16xf32, #tpu.memory_space<vmem>>, vector<1x1x16x16xf32>
    %3 = vector.shape_cast %2 : vector<1x1x16x16xf32> to vector<16x16xf32>
    %c0_6 = arith.constant 0 : index
    %c1 = arith.constant 1 : index
    %c0_7 = arith.constant 0 : index
    %c0_8 = arith.constant 0 : index
    %4 = vector.load %arg0[%c0_6, %c1, %c0_7, %c0_8] : memref<2x4x16x16xf32, #tpu.memory_space<vmem>>, vector<1x1x16x16xf32>
    %5 = vector.shape_cast %4 : vector<1x1x16x16xf32> to vector<16x16xf32>
    %c0_9 = arith.constant 0 : index
    %c2 = arith.constant 2 : index
    %c0_10 = arith.constant 0 : index
    %c0_11 = arith.constant 0 : index
    %6 = vector.load %arg0[%c0_9, %c2, %c0_10, %c0_11] : memref<2x4x16x16xf32, #tpu.memory_space<vmem>>, vector<1x1x16x16xf32>
    %7 = vector.shape_cast %6 : vector<1x1x16x16xf32> to vector<16x16xf32>
    %c0_12 = arith.constant 0 : index
    %c3 = arith.constant 3 : index
    %c0_13 = arith.constant 0 : index
    %c0_14 = arith.constant 0 : index
    %8 = vector.load %arg0[%c0_12, %c3, %c0_13, %c0_14] : memref<2x4x16x16xf32, #tpu.memory_space<vmem>>, vector<1x1x16x16xf32>
    %9 = vector.shape_cast %8 : vector<1x1x16x16xf32> to vector<16x16xf32>
    %10 = tpu.concatenate %3, %5, %7, %9 in 1 : vector<16x16xf32>, vector<16x16xf32>, vector<16x16xf32>, vector<16x16xf32> -> vector<16x64xf32>
    %c0_15 = arith.constant 0 : index
    %c1_16 = arith.constant 1 : index
    %c0_17 = arith.constant 0 : index
    %11 = vector.load %arg5[%c0_15, %c1_16, %c0_17] : memref<2x18x128xf32, #tpu.memory_space<vmem>>, vector<1x16x64xf32>
    %12 = vector.shape_cast %11 : vector<1x16x64xf32> to vector<16x64xf32>
    %13 = vector.shape_cast %10 : vector<16x64xf32> to vector<1x16x64xf32>
    tpu.vector_store %arg5[%c0_15, %c1_16, %c0_17], %13 {strides = array<i32>} : memref<2x18x128xf32, #tpu.memory_space<vmem>>, vector<1x16x64xf32>,
    %c1_18 = arith.constant 1 : index
    %c0_19 = arith.constant 0 : index
    %c0_20 = arith.constant 0 : index
    %c0_21 = arith.constant 0 : index
    %14 = vector.load %arg0[%c1_18, %c0_19, %c0_20, %c0_21] : memref<2x4x16x16xf32, #tpu.memory_space<vmem>>, vector<1x1x16x16xf32>
    %15 = vector.shape_cast %14 : vector<1x1x16x16xf32> to vector<16x16xf32>
    %c1_22 = arith.constant 1 : index
    %c1_23 = arith.constant 1 : index
    %c0_24 = arith.constant 0 : index
    %c0_25 = arith.constant 0 : index
    %16 = vector.load %arg0[%c1_22, %c1_23, %c0_24, %c0_25] : memref<2x4x16x16xf32, #tpu.memory_space<vmem>>, vector<1x1x16x16xf32>
    %17 = vector.shape_cast %16 : vector<1x1x16x16xf32> to vector<16x16xf32>
    %c1_26 = arith.constant 1 : index
    %c2_27 = arith.constant 2 : index
    %c0_28 = arith.constant 0 : index
    %c0_29 = arith.constant 0 : index
    %18 = vector.load %arg0[%c1_26, %c2_27, %c0_28, %c0_29] : memref<2x4x16x16xf32, #tpu.memory_space<vmem>>, vector<1x1x16x16xf32>
    %19 = vector.shape_cast %18 : vector<1x1x16x16xf32> to vector<16x16xf32>
    %c1_30 = arith.constant 1 : index
    %c3_31 = arith.constant 3 : index
    %c0_32 = arith.constant 0 : index
    %c0_33 = arith.constant 0 : index
    %20 = vector.load %arg0[%c1_30, %c3_31, %c0_32, %c0_33] : memref<2x4x16x16xf32, #tpu.memory_space<vmem>>, vector<1x1x16x16xf32>
    %21 = vector.shape_cast %20 : vector<1x1x16x16xf32> to vector<16x16xf32>
    %22 = tpu.concatenate %15, %17, %19, %21 in 1 : vector<16x16xf32>, vector<16x16xf32>, vector<16x16xf32>, vector<16x16xf32> -> vector<16x64xf32>
    %c1_34 = arith.constant 1 : index
    %c1_35 = arith.constant 1 : index
    %c0_36 = arith.constant 0 : index
    %23 = vector.load %arg5[%c1_34, %c1_35, %c0_36] : memref<2x18x128xf32, #tpu.memory_space<vmem>>, vector<1x16x64xf32>
    %24 = vector.shape_cast %23 : vector<1x16x64xf32> to vector<16x64xf32>
    %25 = vector.shape_cast %22 : vector<16x64xf32> to vector<1x16x64xf32>
    tpu.vector_store %arg5[%c1_34, %c1_35, %c0_36], %25 {strides = array<i32>} : memref<2x18x128xf32, #tpu.memory_space<vmem>>, vector<1x16x64xf32>,
    %c0_37 = arith.constant 0 : index
    %c0_38 = arith.constant 0 : index
    %c0_39 = arith.constant 0 : index
    %26 = vector.load %arg5[%c0_37, %c0_38, %c0_39] : memref<2x18x128xf32, #tpu.memory_space<vmem>>, vector<1x1x128xf32>
    %27 = vector.shape_cast %26 : vector<1x1x128xf32> to vector<1x128xf32>
    %c0_40 = arith.constant 0 : index
    %c2_41 = arith.constant 2 : index
    %c0_42 = arith.constant 0 : index
    %28 = vector.load %arg5[%c0_40, %c2_41, %c0_42] : memref<2x18x128xf32, #tpu.memory_space<vmem>>, vector<1x1x128xf32>
    %29 = vector.shape_cast %28 : vector<1x1x128xf32> to vector<1x128xf32>
    %c0_43 = arith.constant 0 : index
    %c4 = arith.constant 4 : index
    %c0_44 = arith.constant 0 : index
    %30 = vector.load %arg5[%c0_43, %c4, %c0_44] : memref<2x18x128xf32, #tpu.memory_space<vmem>>, vector<1x1x128xf32>
    %31 = vector.shape_cast %30 : vector<1x1x128xf32> to vector<1x128xf32>
    %c0_45 = arith.constant 0 : index
    %c6 = arith.constant 6 : index
    %c0_46 = arith.constant 0 : index
    %32 = vector.load %arg5[%c0_45, %c6, %c0_46] : memref<2x18x128xf32, #tpu.memory_space<vmem>>, vector<1x1x128xf32>
    %33 = vector.shape_cast %32 : vector<1x1x128xf32> to vector<1x128xf32>
    %c0_47 = arith.constant 0 : index
    %c8 = arith.constant 8 : index
    %c0_48 = arith.constant 0 : index
    %34 = vector.load %arg5[%c0_47, %c8, %c0_48] : memref<2x18x128xf32, #tpu.memory_space<vmem>>, vector<1x1x128xf32>
    %35 = vector.shape_cast %34 : vector<1x1x128xf32> to vector<1x128xf32>
    %c0_49 = arith.constant 0 : index
    %c10 = arith.constant 10 : index
    %c0_50 = arith.constant 0 : index
    %36 = vector.load %arg5[%c0_49, %c10, %c0_50] : memref<2x18x128xf32, #tpu.memory_space<vmem>>, vector<1x1x128xf32>
    %37 = vector.shape_cast %36 : vector<1x1x128xf32> to vector<1x128xf32>
    %c0_51 = arith.constant 0 : index
    %c12 = arith.constant 12 : index
    %c0_52 = arith.constant 0 : index
    %38 = vector.load %arg5[%c0_51, %c12, %c0_52] : memref<2x18x128xf32, #tpu.memory_space<vmem>>, vector<1x1x128xf32>
    %39 = vector.shape_cast %38 : vector<1x1x128xf32> to vector<1x128xf32>
    %c0_53 = arith.constant 0 : index
    %c14 = arith.constant 14 : index
    %c0_54 = arith.constant 0 : index
    %40 = vector.load %arg5[%c0_53, %c14, %c0_54] : memref<2x18x128xf32, #tpu.memory_space<vmem>>, vector<1x1x128xf32>
    %41 = vector.shape_cast %40 : vector<1x1x128xf32> to vector<1x128xf32>
    %42 = tpu.concatenate %27, %29, %31, %33, %35, %37, %39, %41 in 0 : vector<1x128xf32>, vector<1x128xf32>, vector<1x128xf32>, vector<1x128xf32>, vector<1x128xf32>, vector<1x128xf32>, vector<1x128xf32>, vector<1x128xf32> -> vector<8x128xf32>
    %c0_55 = arith.constant 0 : index
    %c1_56 = arith.constant 1 : index
    %c0_57 = arith.constant 0 : index
    %43 = vector.load %arg5[%c0_55, %c1_56, %c0_57] : memref<2x18x128xf32, #tpu.memory_space<vmem>>, vector<1x1x128xf32>
    %44 = vector.shape_cast %43 : vector<1x1x128xf32> to vector<1x128xf32>
    %c0_58 = arith.constant 0 : index
    %c3_59 = arith.constant 3 : index
    %c0_60 = arith.constant 0 : index
    %45 = vector.load %arg5[%c0_58, %c3_59, %c0_60] : memref<2x18x128xf32, #tpu.memory_space<vmem>>, vector<1x1x128xf32>
    %46 = vector.shape_cast %45 : vector<1x1x128xf32> to vector<1x128xf32>
    %c0_61 = arith.constant 0 : index
    %c5 = arith.constant 5 : index
    %c0_62 = arith.constant 0 : index
    %47 = vector.load %arg5[%c0_61, %c5, %c0_62] : memref<2x18x128xf32, #tpu.memory_space<vmem>>, vector<1x1x128xf32>
    %48 = vector.shape_cast %47 : vector<1x1x128xf32> to vector<1x128xf32>
    %c0_63 = arith.constant 0 : index
    %c7 = arith.constant 7 : index
    %c0_64 = arith.constant 0 : index
    %49 = vector.load %arg5[%c0_63, %c7, %c0_64] : memref<2x18x128xf32, #tpu.memory_space<vmem>>, vector<1x1x128xf32>
    %50 = vector.shape_cast %49 : vector<1x1x128xf32> to vector<1x128xf32>
    %c0_65 = arith.constant 0 : index
    %c9 = arith.constant 9 : index
    %c0_66 = arith.constant 0 : index
    %51 = vector.load %arg5[%c0_65, %c9, %c0_66] : memref<2x18x128xf32, #tpu.memory_space<vmem>>, vector<1x1x128xf32>
    %52 = vector.shape_cast %51 : vector<1x1x128xf32> to vector<1x128xf32>
    %c0_67 = arith.constant 0 : index
    %c11 = arith.constant 11 : index
    %c0_68 = arith.constant 0 : index
    %53 = vector.load %arg5[%c0_67, %c11, %c0_68] : memref<2x18x128xf32, #tpu.memory_space<vmem>>, vector<1x1x128xf32>
    %54 = vector.shape_cast %53 : vector<1x1x128xf32> to vector<1x128xf32>
    %c0_69 = arith.constant 0 : index
    %c13 = arith.constant 13 : index
    %c0_70 = arith.constant 0 : index
    %55 = vector.load %arg5[%c0_69, %c13, %c0_70] : memref<2x18x128xf32, #tpu.memory_space<vmem>>, vector<1x1x128xf32>
    %56 = vector.shape_cast %55 : vector<1x1x128xf32> to vector<1x128xf32>
    %c0_71 = arith.constant 0 : index
    %c15 = arith.constant 15 : index
    %c0_72 = arith.constant 0 : index
    %57 = vector.load %arg5[%c0_71, %c15, %c0_72] : memref<2x18x128xf32, #tpu.memory_space<vmem>>, vector<1x1x128xf32>
    %58 = vector.shape_cast %57 : vector<1x1x128xf32> to vector<1x128xf32>
    %59 = tpu.concatenate %44, %46, %48, %50, %52, %54, %56, %58 in 0 : vector<1x128xf32>, vector<1x128xf32>, vector<1x128xf32>, vector<1x128xf32>, vector<1x128xf32>, vector<1x128xf32>, vector<1x128xf32>, vector<1x128xf32> -> vector<8x128xf32>
    %c0_73 = arith.constant 0 : index
    %c2_74 = arith.constant 2 : index
    %c0_75 = arith.constant 0 : index
    %60 = vector.load %arg5[%c0_73, %c2_74, %c0_75] : memref<2x18x128xf32, #tpu.memory_space<vmem>>, vector<1x1x128xf32>
    %61 = vector.shape_cast %60 : vector<1x1x128xf32> to vector<1x128xf32>
    %c0_76 = arith.constant 0 : index
    %c4_77 = arith.constant 4 : index
    %c0_78 = arith.constant 0 : index
    %62 = vector.load %arg5[%c0_76, %c4_77, %c0_78] : memref<2x18x128xf32, #tpu.memory_space<vmem>>, vector<1x1x128xf32>
    %63 = vector.shape_cast %62 : vector<1x1x128xf32> to vector<1x128xf32>
    %c0_79 = arith.constant 0 : index
    %c6_80 = arith.constant 6 : index
    %c0_81 = arith.constant 0 : index
    %64 = vector.load %arg5[%c0_79, %c6_80, %c0_81] : memref<2x18x128xf32, #tpu.memory_space<vmem>>, vector<1x1x128xf32>
    %65 = vector.shape_cast %64 : vector<1x1x128xf32> to vector<1x128xf32>
    %c0_82 = arith.constant 0 : index
    %c8_83 = arith.constant 8 : index
    %c0_84 = arith.constant 0 : index
    %66 = vector.load %arg5[%c0_82, %c8_83, %c0_84] : memref<2x18x128xf32, #tpu.memory_space<vmem>>, vector<1x1x128xf32>
    %67 = vector.shape_cast %66 : vector<1x1x128xf32> to vector<1x128xf32>
    %c0_85 = arith.constant 0 : index
    %c10_86 = arith.constant 10 : index
    %c0_87 = arith.constant 0 : index
    %68 = vector.load %arg5[%c0_85, %c10_86, %c0_87] : memref<2x18x128xf32, #tpu.memory_space<vmem>>, vector<1x1x128xf32>
    %69 = vector.shape_cast %68 : vector<1x1x128xf32> to vector<1x128xf32>
    %c0_88 = arith.constant 0 : index
    %c12_89 = arith.constant 12 : index
    %c0_90 = arith.constant 0 : index
    %70 = vector.load %arg5[%c0_88, %c12_89, %c0_90] : memref<2x18x128xf32, #tpu.memory_space<vmem>>, vector<1x1x128xf32>
    %71 = vector.shape_cast %70 : vector<1x1x128xf32> to vector<1x128xf32>
    %c0_91 = arith.constant 0 : index
    %c14_92 = arith.constant 14 : index
    %c0_93 = arith.constant 0 : index
    %72 = vector.load %arg5[%c0_91, %c14_92, %c0_93] : memref<2x18x128xf32, #tpu.memory_space<vmem>>, vector<1x1x128xf32>
    %73 = vector.shape_cast %72 : vector<1x1x128xf32> to vector<1x128xf32>
    %c0_94 = arith.constant 0 : index
    %c16 = arith.constant 16 : index
    %c0_95 = arith.constant 0 : index
    %74 = vector.load %arg5[%c0_94, %c16, %c0_95] : memref<2x18x128xf32, #tpu.memory_space<vmem>>, vector<1x1x128xf32>
    %75 = vector.shape_cast %74 : vector<1x1x128xf32> to vector<1x128xf32>
    %76 = tpu.concatenate %61, %63, %65, %67, %69, %71, %73, %75 in 0 : vector<1x128xf32>, vector<1x128xf32>, vector<1x128xf32>, vector<1x128xf32>, vector<1x128xf32>, vector<1x128xf32>, vector<1x128xf32>, vector<1x128xf32> -> vector<8x128xf32>
    %77 = tpu.concatenate %42, %59, %76 in 1 : vector<8x128xf32>, vector<8x128xf32>, vector<8x128xf32> -> vector<8x384xf32>
    %c1_96 = arith.constant 1 : index
    %c0_97 = arith.constant 0 : index
    %c0_98 = arith.constant 0 : index
    %78 = vector.load %arg5[%c1_96, %c0_97, %c0_98] : memref<2x18x128xf32, #tpu.memory_space<vmem>>, vector<1x1x128xf32>
    %79 = vector.shape_cast %78 : vector<1x1x128xf32> to vector<1x128xf32>
    %c1_99 = arith.constant 1 : index
    %c2_100 = arith.constant 2 : index
    %c0_101 = arith.constant 0 : index
    %80 = vector.load %arg5[%c1_99, %c2_100, %c0_101] : memref<2x18x128xf32, #tpu.memory_space<vmem>>, vector<1x1x128xf32>
    %81 = vector.shape_cast %80 : vector<1x1x128xf32> to vector<1x128xf32>
    %c1_102 = arith.constant 1 : index
    %c4_103 = arith.constant 4 : index
    %c0_104 = arith.constant 0 : index
    %82 = vector.load %arg5[%c1_102, %c4_103, %c0_104] : memref<2x18x128xf32, #tpu.memory_space<vmem>>, vector<1x1x128xf32>
    %83 = vector.shape_cast %82 : vector<1x1x128xf32> to vector<1x128xf32>
    %c1_105 = arith.constant 1 : index
    %c6_106 = arith.constant 6 : index
    %c0_107 = arith.constant 0 : index
    %84 = vector.load %arg5[%c1_105, %c6_106, %c0_107] : memref<2x18x128xf32, #tpu.memory_space<vmem>>, vector<1x1x128xf32>
    %85 = vector.shape_cast %84 : vector<1x1x128xf32> to vector<1x128xf32>
    %c1_108 = arith.constant 1 : index
    %c8_109 = arith.constant 8 : index
    %c0_110 = arith.constant 0 : index
    %86 = vector.load %arg5[%c1_108, %c8_109, %c0_110] : memref<2x18x128xf32, #tpu.memory_space<vmem>>, vector<1x1x128xf32>
    %87 = vector.shape_cast %86 : vector<1x1x128xf32> to vector<1x128xf32>
    %c1_111 = arith.constant 1 : index
    %c10_112 = arith.constant 10 : index
    %c0_113 = arith.constant 0 : index
    %88 = vector.load %arg5[%c1_111, %c10_112, %c0_113] : memref<2x18x128xf32, #tpu.memory_space<vmem>>, vector<1x1x128xf32>
    %89 = vector.shape_cast %88 : vector<1x1x128xf32> to vector<1x128xf32>
    %c1_114 = arith.constant 1 : index
    %c12_115 = arith.constant 12 : index
    %c0_116 = arith.constant 0 : index
    %90 = vector.load %arg5[%c1_114, %c12_115, %c0_116] : memref<2x18x128xf32, #tpu.memory_space<vmem>>, vector<1x1x128xf32>
    %91 = vector.shape_cast %90 : vector<1x1x128xf32> to vector<1x128xf32>
    %c1_117 = arith.constant 1 : index
    %c14_118 = arith.constant 14 : index
    %c0_119 = arith.constant 0 : index
    %92 = vector.load %arg5[%c1_117, %c14_118, %c0_119] : memref<2x18x128xf32, #tpu.memory_space<vmem>>, vector<1x1x128xf32>
    %93 = vector.shape_cast %92 : vector<1x1x128xf32> to vector<1x128xf32>
    %94 = tpu.concatenate %79, %81, %83, %85, %87, %89, %91, %93 in 0 : vector<1x128xf32>, vector<1x128xf32>, vector<1x128xf32>, vector<1x128xf32>, vector<1x128xf32>, vector<1x128xf32>, vector<1x128xf32>, vector<1x128xf32> -> vector<8x128xf32>
    %c1_120 = arith.constant 1 : index
    %c1_121 = arith.constant 1 : index
    %c0_122 = arith.constant 0 : index
    %95 = vector.load %arg5[%c1_120, %c1_121, %c0_122] : memref<2x18x128xf32, #tpu.memory_space<vmem>>, vector<1x1x128xf32>
    %96 = vector.shape_cast %95 : vector<1x1x128xf32> to vector<1x128xf32>
    %c1_123 = arith.constant 1 : index
    %c3_124 = arith.constant 3 : index
    %c0_125 = arith.constant 0 : index
    %97 = vector.load %arg5[%c1_123, %c3_124, %c0_125] : memref<2x18x128xf32, #tpu.memory_space<vmem>>, vector<1x1x128xf32>
    %98 = vector.shape_cast %97 : vector<1x1x128xf32> to vector<1x128xf32>
    %c1_126 = arith.constant 1 : index
    %c5_127 = arith.constant 5 : index
    %c0_128 = arith.constant 0 : index
    %99 = vector.load %arg5[%c1_126, %c5_127, %c0_128] : memref<2x18x128xf32, #tpu.memory_space<vmem>>, vector<1x1x128xf32>
    %100 = vector.shape_cast %99 : vector<1x1x128xf32> to vector<1x128xf32>
    %c1_129 = arith.constant 1 : index
    %c7_130 = arith.constant 7 : index
    %c0_131 = arith.constant 0 : index
    %101 = vector.load %arg5[%c1_129, %c7_130, %c0_131] : memref<2x18x128xf32, #tpu.memory_space<vmem>>, vector<1x1x128xf32>
    %102 = vector.shape_cast %101 : vector<1x1x128xf32> to vector<1x128xf32>
    %c1_132 = arith.constant 1 : index
    %c9_133 = arith.constant 9 : index
    %c0_134 = arith.constant 0 : index
    %103 = vector.load %arg5[%c1_132, %c9_133, %c0_134] : memref<2x18x128xf32, #tpu.memory_space<vmem>>, vector<1x1x128xf32>
    %104 = vector.shape_cast %103 : vector<1x1x128xf32> to vector<1x128xf32>
    %c1_135 = arith.constant 1 : index
    %c11_136 = arith.constant 11 : index
    %c0_137 = arith.constant 0 : index
    %105 = vector.load %arg5[%c1_135, %c11_136, %c0_137] : memref<2x18x128xf32, #tpu.memory_space<vmem>>, vector<1x1x128xf32>
    %106 = vector.shape_cast %105 : vector<1x1x128xf32> to vector<1x128xf32>
    %c1_138 = arith.constant 1 : index
    %c13_139 = arith.constant 13 : index
    %c0_140 = arith.constant 0 : index
    %107 = vector.load %arg5[%c1_138, %c13_139, %c0_140] : memref<2x18x128xf32, #tpu.memory_space<vmem>>, vector<1x1x128xf32>
    %108 = vector.shape_cast %107 : vector<1x1x128xf32> to vector<1x128xf32>
    %c1_141 = arith.constant 1 : index
    %c15_142 = arith.constant 15 : index
    %c0_143 = arith.constant 0 : index
    %109 = vector.load %arg5[%c1_141, %c15_142, %c0_143] : memref<2x18x128xf32, #tpu.memory_space<vmem>>, vector<1x1x128xf32>
    %110 = vector.shape_cast %109 : vector<1x1x128xf32> to vector<1x128xf32>
    %111 = tpu.concatenate %96, %98, %100, %102, %104, %106, %108, %110 in 0 : vector<1x128xf32>, vector<1x128xf32>, vector<1x128xf32>, vector<1x128xf32>, vector<1x128xf32>, vector<1x128xf32>, vector<1x128xf32>, vector<1x128xf32> -> vector<8x128xf32>
    %c1_144 = arith.constant 1 : index
    %c2_145 = arith.constant 2 : index
    %c0_146 = arith.constant 0 : index
    %112 = vector.load %arg5[%c1_144, %c2_145, %c0_146] : memref<2x18x128xf32, #tpu.memory_space<vmem>>, vector<1x1x128xf32>
    %113 = vector.shape_cast %112 : vector<1x1x128xf32> to vector<1x128xf32>
    %c1_147 = arith.constant 1 : index
    %c4_148 = arith.constant 4 : index
    %c0_149 = arith.constant 0 : index
    %114 = vector.load %arg5[%c1_147, %c4_148, %c0_149] : memref<2x18x128xf32, #tpu.memory_space<vmem>>, vector<1x1x128xf32>
    %115 = vector.shape_cast %114 : vector<1x1x128xf32> to vector<1x128xf32>
    %c1_150 = arith.constant 1 : index
    %c6_151 = arith.constant 6 : index
    %c0_152 = arith.constant 0 : index
    %116 = vector.load %arg5[%c1_150, %c6_151, %c0_152] : memref<2x18x128xf32, #tpu.memory_space<vmem>>, vector<1x1x128xf32>
    %117 = vector.shape_cast %116 : vector<1x1x128xf32> to vector<1x128xf32>
    %c1_153 = arith.constant 1 : index
    %c8_154 = arith.constant 8 : index
    %c0_155 = arith.constant 0 : index
    %118 = vector.load %arg5[%c1_153, %c8_154, %c0_155] : memref<2x18x128xf32, #tpu.memory_space<vmem>>, vector<1x1x128xf32>
    %119 = vector.shape_cast %118 : vector<1x1x128xf32> to vector<1x128xf32>
    %c1_156 = arith.constant 1 : index
    %c10_157 = arith.constant 10 : index
    %c0_158 = arith.constant 0 : index
    %120 = vector.load %arg5[%c1_156, %c10_157, %c0_158] : memref<2x18x128xf32, #tpu.memory_space<vmem>>, vector<1x1x128xf32>
    %121 = vector.shape_cast %120 : vector<1x1x128xf32> to vector<1x128xf32>
    %c1_159 = arith.constant 1 : index
    %c12_160 = arith.constant 12 : index
    %c0_161 = arith.constant 0 : index
    %122 = vector.load %arg5[%c1_159, %c12_160, %c0_161] : memref<2x18x128xf32, #tpu.memory_space<vmem>>, vector<1x1x128xf32>
    %123 = vector.shape_cast %122 : vector<1x1x128xf32> to vector<1x128xf32>
    %c1_162 = arith.constant 1 : index
    %c14_163 = arith.constant 14 : index
    %c0_164 = arith.constant 0 : index
    %124 = vector.load %arg5[%c1_162, %c14_163, %c0_164] : memref<2x18x128xf32, #tpu.memory_space<vmem>>, vector<1x1x128xf32>
    %125 = vector.shape_cast %124 : vector<1x1x128xf32> to vector<1x128xf32>
    %c1_165 = arith.constant 1 : index
    %c16_166 = arith.constant 16 : index
    %c0_167 = arith.constant 0 : index
    %126 = vector.load %arg5[%c1_165, %c16_166, %c0_167] : memref<2x18x128xf32, #tpu.memory_space<vmem>>, vector<1x1x128xf32>
    %127 = vector.shape_cast %126 : vector<1x1x128xf32> to vector<1x128xf32>
    %128 = tpu.concatenate %113, %115, %117, %119, %121, %123, %125, %127 in 0 : vector<1x128xf32>, vector<1x128xf32>, vector<1x128xf32>, vector<1x128xf32>, vector<1x128xf32>, vector<1x128xf32>, vector<1x128xf32>, vector<1x128xf32> -> vector<8x128xf32>
    %129 = tpu.concatenate %94, %111, %128 in 1 : vector<8x128xf32>, vector<8x128xf32>, vector<8x128xf32> -> vector<8x384xf32>
    %130 = tpu.concatenate %77, %129 in 0 : vector<8x384xf32>, vector<8x384xf32> -> vector<16x384xf32>
    %c0_168 = arith.constant 0 : index
    %c0_169 = arith.constant 0 : index
    %131 = vector.load %arg1[%c0_168, %c0_169] : memref<1536x128xbf16, #tpu.memory_space<vmem>>, vector<384x128xbf16>
    %132 = arith.truncf %130 : vector<16x384xf32> to vector<16x384xbf16>
    %cst_170 = arith.constant dense<0.000000e+00> : vector<16x128xf32>
    %133 = tpu.matmul %132, %131, %cst_170 {dimension_numbers = #tpu.dot_dimension_numbers<[1], [0], [0], [1], [0, 0, 1, 1], [], []>} : vector<16x384xbf16>, vector<384x128xbf16>, vector<16x128xf32> -> vector<16x128xf32>
    %c0_171 = arith.constant 0 : index
    %c0_172 = arith.constant 0 : index
    %134 = vector.load %arg2[%c0_171, %c0_172] : memref<8x128xf32, #tpu.memory_space<vmem>>, vector<1x128xf32>
    %135 = vector.broadcast %134 : vector<1x128xf32> to vector<16x128xf32>
    %136 = arith.addf %133, %135 : vector<16x128xf32>
    %cst_173 = arith.constant 2.000000e-01 : f32
    %137 = vector.broadcast %cst_173 : f32 to vector<16x128xf32>
    %138 = arith.mulf %137, %136 : vector<16x128xf32>
    %139 = arith.maximumf %136, %138 : vector<16x128xf32>
    %cst_174 = arith.constant 0.000000e+00 : f32
    %140 = vector.broadcast %cst_174 : f32 to vector<2x10x128xf32>
    %c0_175 = arith.constant 0 : index
    %c0_176 = arith.constant 0 : index
    %c0_177 = arith.constant 0 : index
    %141 = vector.load %arg6[%c0_175, %c0_176, %c0_177] : memref<2x10x128xf32, #tpu.memory_space<vmem>>, vector<2x10x128xf32>
    tpu.vector_store %arg6[%c0_175, %c0_176, %c0_177], %140 {strides = array<i32>} : memref<2x10x128xf32, #tpu.memory_space<vmem>>, vector<2x10x128xf32>,
    %142 = vector.extract_strided_slice %139 {offsets = [0, 0], sizes = [8, 128], strides = [1, 1]} : vector<16x128xf32> to vector<8x128xf32>
    %c0_178 = arith.constant 0 : index
    %c1_179 = arith.constant 1 : index
    %c0_180 = arith.constant 0 : index
    %143 = vector.load %arg6[%c0_178, %c1_179, %c0_180] : memref<2x10x128xf32, #tpu.memory_space<vmem>>, vector<1x8x128xf32>
    %144 = vector.shape_cast %143 : vector<1x8x128xf32> to vector<8x128xf32>
    %145 = vector.shape_cast %142 : vector<8x128xf32> to vector<1x8x128xf32>
    tpu.vector_store %arg6[%c0_178, %c1_179, %c0_180], %145 {strides = array<i32>} : memref<2x10x128xf32, #tpu.memory_space<vmem>>, vector<1x8x128xf32>,
    %146 = vector.extract_strided_slice %139 {offsets = [8, 0], sizes = [8, 128], strides = [1, 1]} : vector<16x128xf32> to vector<8x128xf32>
    %c1_181 = arith.constant 1 : index
    %c1_182 = arith.constant 1 : index
    %c0_183 = arith.constant 0 : index
    %147 = vector.load %arg6[%c1_181, %c1_182, %c0_183] : memref<2x10x128xf32, #tpu.memory_space<vmem>>, vector<1x8x128xf32>
    %148 = vector.shape_cast %147 : vector<1x8x128xf32> to vector<8x128xf32>
    %149 = vector.shape_cast %146 : vector<8x128xf32> to vector<1x8x128xf32>
    tpu.vector_store %arg6[%c1_181, %c1_182, %c0_183], %149 {strides = array<i32>} : memref<2x10x128xf32, #tpu.memory_space<vmem>>, vector<1x8x128xf32>,
    %c0_184 = arith.constant 0 : index
    %c0_185 = arith.constant 0 : index
    %c0_186 = arith.constant 0 : index
    %150 = vector.load %arg6[%c0_184, %c0_185, %c0_186] : memref<2x10x128xf32, #tpu.memory_space<vmem>>, vector<1x1x128xf32>
    %151 = vector.shape_cast %150 : vector<1x1x128xf32> to vector<1x128xf32>
    %c0_187 = arith.constant 0 : index
    %c2_188 = arith.constant 2 : index
    %c0_189 = arith.constant 0 : index
    %152 = vector.load %arg6[%c0_187, %c2_188, %c0_189] : memref<2x10x128xf32, #tpu.memory_space<vmem>>, vector<1x1x128xf32>
    %153 = vector.shape_cast %152 : vector<1x1x128xf32> to vector<1x128xf32>
    %c0_190 = arith.constant 0 : index
    %c4_191 = arith.constant 4 : index
    %c0_192 = arith.constant 0 : index
    %154 = vector.load %arg6[%c0_190, %c4_191, %c0_192] : memref<2x10x128xf32, #tpu.memory_space<vmem>>, vector<1x1x128xf32>
    %155 = vector.shape_cast %154 : vector<1x1x128xf32> to vector<1x128xf32>
    %c0_193 = arith.constant 0 : index
    %c6_194 = arith.constant 6 : index
    %c0_195 = arith.constant 0 : index
    %156 = vector.load %arg6[%c0_193, %c6_194, %c0_195] : memref<2x10x128xf32, #tpu.memory_space<vmem>>, vector<1x1x128xf32>
    %157 = vector.shape_cast %156 : vector<1x1x128xf32> to vector<1x128xf32>
    %158 = tpu.concatenate %151, %153, %155, %157 in 0 : vector<1x128xf32>, vector<1x128xf32>, vector<1x128xf32>, vector<1x128xf32> -> vector<4x128xf32>
    %c0_196 = arith.constant 0 : index
    %c1_197 = arith.constant 1 : index
    %c0_198 = arith.constant 0 : index
    %159 = vector.load %arg6[%c0_196, %c1_197, %c0_198] : memref<2x10x128xf32, #tpu.memory_space<vmem>>, vector<1x1x128xf32>
    %160 = vector.shape_cast %159 : vector<1x1x128xf32> to vector<1x128xf32>
    %c0_199 = arith.constant 0 : index
    %c3_200 = arith.constant 3 : index
    %c0_201 = arith.constant 0 : index
    %161 = vector.load %arg6[%c0_199, %c3_200, %c0_201] : memref<2x10x128xf32, #tpu.memory_space<vmem>>, vector<1x1x128xf32>
    %162 = vector.shape_cast %161 : vector<1x1x128xf32> to vector<1x128xf32>
    %c0_202 = arith.constant 0 : index
    %c5_203 = arith.constant 5 : index
    %c0_204 = arith.constant 0 : index
    %163 = vector.load %arg6[%c0_202, %c5_203, %c0_204] : memref<2x10x128xf32, #tpu.memory_space<vmem>>, vector<1x1x128xf32>
    %164 = vector.shape_cast %163 : vector<1x1x128xf32> to vector<1x128xf32>
    %c0_205 = arith.constant 0 : index
    %c7_206 = arith.constant 7 : index
    %c0_207 = arith.constant 0 : index
    %165 = vector.load %arg6[%c0_205, %c7_206, %c0_207] : memref<2x10x128xf32, #tpu.memory_space<vmem>>, vector<1x1x128xf32>
    %166 = vector.shape_cast %165 : vector<1x1x128xf32> to vector<1x128xf32>
    %167 = tpu.concatenate %160, %162, %164, %166 in 0 : vector<1x128xf32>, vector<1x128xf32>, vector<1x128xf32>, vector<1x128xf32> -> vector<4x128xf32>
    %c0_208 = arith.constant 0 : index
    %c2_209 = arith.constant 2 : index
    %c0_210 = arith.constant 0 : index
    %168 = vector.load %arg6[%c0_208, %c2_209, %c0_210] : memref<2x10x128xf32, #tpu.memory_space<vmem>>, vector<1x1x128xf32>
    %169 = vector.shape_cast %168 : vector<1x1x128xf32> to vector<1x128xf32>
    %c0_211 = arith.constant 0 : index
    %c4_212 = arith.constant 4 : index
    %c0_213 = arith.constant 0 : index
    %170 = vector.load %arg6[%c0_211, %c4_212, %c0_213] : memref<2x10x128xf32, #tpu.memory_space<vmem>>, vector<1x1x128xf32>
    %171 = vector.shape_cast %170 : vector<1x1x128xf32> to vector<1x128xf32>
    %c0_214 = arith.constant 0 : index
    %c6_215 = arith.constant 6 : index
    %c0_216 = arith.constant 0 : index
    %172 = vector.load %arg6[%c0_214, %c6_215, %c0_216] : memref<2x10x128xf32, #tpu.memory_space<vmem>>, vector<1x1x128xf32>
    %173 = vector.shape_cast %172 : vector<1x1x128xf32> to vector<1x128xf32>
    %c0_217 = arith.constant 0 : index
    %c8_218 = arith.constant 8 : index
    %c0_219 = arith.constant 0 : index
    %174 = vector.load %arg6[%c0_217, %c8_218, %c0_219] : memref<2x10x128xf32, #tpu.memory_space<vmem>>, vector<1x1x128xf32>
    %175 = vector.shape_cast %174 : vector<1x1x128xf32> to vector<1x128xf32>
    %176 = tpu.concatenate %169, %171, %173, %175 in 0 : vector<1x128xf32>, vector<1x128xf32>, vector<1x128xf32>, vector<1x128xf32> -> vector<4x128xf32>
    %177 = tpu.concatenate %158, %167, %176 in 1 : vector<4x128xf32>, vector<4x128xf32>, vector<4x128xf32> -> vector<4x384xf32>
    %c1_220 = arith.constant 1 : index
    %c0_221 = arith.constant 0 : index
    %c0_222 = arith.constant 0 : index
    %178 = vector.load %arg6[%c1_220, %c0_221, %c0_222] : memref<2x10x128xf32, #tpu.memory_space<vmem>>, vector<1x1x128xf32>
    %179 = vector.shape_cast %178 : vector<1x1x128xf32> to vector<1x128xf32>
    %c1_223 = arith.constant 1 : index
    %c2_224 = arith.constant 2 : index
    %c0_225 = arith.constant 0 : index
    %180 = vector.load %arg6[%c1_223, %c2_224, %c0_225] : memref<2x10x128xf32, #tpu.memory_space<vmem>>, vector<1x1x128xf32>
    %181 = vector.shape_cast %180 : vector<1x1x128xf32> to vector<1x128xf32>
    %c1_226 = arith.constant 1 : index
    %c4_227 = arith.constant 4 : index
    %c0_228 = arith.constant 0 : index
    %182 = vector.load %arg6[%c1_226, %c4_227, %c0_228] : memref<2x10x128xf32, #tpu.memory_space<vmem>>, vector<1x1x128xf32>
    %183 = vector.shape_cast %182 : vector<1x1x128xf32> to vector<1x128xf32>
    %c1_229 = arith.constant 1 : index
    %c6_230 = arith.constant 6 : index
    %c0_231 = arith.constant 0 : index
    %184 = vector.load %arg6[%c1_229, %c6_230, %c0_231] : memref<2x10x128xf32, #tpu.memory_space<vmem>>, vector<1x1x128xf32>
    %185 = vector.shape_cast %184 : vector<1x1x128xf32> to vector<1x128xf32>
    %186 = tpu.concatenate %179, %181, %183, %185 in 0 : vector<1x128xf32>, vector<1x128xf32>, vector<1x128xf32>, vector<1x128xf32> -> vector<4x128xf32>
    %c1_232 = arith.constant 1 : index
    %c1_233 = arith.constant 1 : index
    %c0_234 = arith.constant 0 : index
    %187 = vector.load %arg6[%c1_232, %c1_233, %c0_234] : memref<2x10x128xf32, #tpu.memory_space<vmem>>, vector<1x1x128xf32>
    %188 = vector.shape_cast %187 : vector<1x1x128xf32> to vector<1x128xf32>
    %c1_235 = arith.constant 1 : index
    %c3_236 = arith.constant 3 : index
    %c0_237 = arith.constant 0 : index
    %189 = vector.load %arg6[%c1_235, %c3_236, %c0_237] : memref<2x10x128xf32, #tpu.memory_space<vmem>>, vector<1x1x128xf32>
    %190 = vector.shape_cast %189 : vector<1x1x128xf32> to vector<1x128xf32>
    %c1_238 = arith.constant 1 : index
    %c5_239 = arith.constant 5 : index
    %c0_240 = arith.constant 0 : index
    %191 = vector.load %arg6[%c1_238, %c5_239, %c0_240] : memref<2x10x128xf32, #tpu.memory_space<vmem>>, vector<1x1x128xf32>
    %192 = vector.shape_cast %191 : vector<1x1x128xf32> to vector<1x128xf32>
    %c1_241 = arith.constant 1 : index
    %c7_242 = arith.constant 7 : index
    %c0_243 = arith.constant 0 : index
    %193 = vector.load %arg6[%c1_241, %c7_242, %c0_243] : memref<2x10x128xf32, #tpu.memory_space<vmem>>, vector<1x1x128xf32>
    %194 = vector.shape_cast %193 : vector<1x1x128xf32> to vector<1x128xf32>
    %195 = tpu.concatenate %188, %190, %192, %194 in 0 : vector<1x128xf32>, vector<1x128xf32>, vector<1x128xf32>, vector<1x128xf32> -> vector<4x128xf32>
    %c1_244 = arith.constant 1 : index
    %c2_245 = arith.constant 2 : index
    %c0_246 = arith.constant 0 : index
    %196 = vector.load %arg6[%c1_244, %c2_245, %c0_246] : memref<2x10x128xf32, #tpu.memory_space<vmem>>, vector<1x1x128xf32>
    %197 = vector.shape_cast %196 : vector<1x1x128xf32> to vector<1x128xf32>
    %c1_247 = arith.constant 1 : index
    %c4_248 = arith.constant 4 : index
    %c0_249 = arith.constant 0 : index
    %198 = vector.load %arg6[%c1_247, %c4_248, %c0_249] : memref<2x10x128xf32, #tpu.memory_space<vmem>>, vector<1x1x128xf32>
    %199 = vector.shape_cast %198 : vector<1x1x128xf32> to vector<1x128xf32>
    %c1_250 = arith.constant 1 : index
    %c6_251 = arith.constant 6 : index
    %c0_252 = arith.constant 0 : index
    %200 = vector.load %arg6[%c1_250, %c6_251, %c0_252] : memref<2x10x128xf32, #tpu.memory_space<vmem>>, vector<1x1x128xf32>
    %201 = vector.shape_cast %200 : vector<1x1x128xf32> to vector<1x128xf32>
    %c1_253 = arith.constant 1 : index
    %c8_254 = arith.constant 8 : index
    %c0_255 = arith.constant 0 : index
    %202 = vector.load %arg6[%c1_253, %c8_254, %c0_255] : memref<2x10x128xf32, #tpu.memory_space<vmem>>, vector<1x1x128xf32>
    %203 = vector.shape_cast %202 : vector<1x1x128xf32> to vector<1x128xf32>
    %204 = tpu.concatenate %197, %199, %201, %203 in 0 : vector<1x128xf32>, vector<1x128xf32>, vector<1x128xf32>, vector<1x128xf32> -> vector<4x128xf32>
    %205 = tpu.concatenate %186, %195, %204 in 1 : vector<4x128xf32>, vector<4x128xf32>, vector<4x128xf32> -> vector<4x384xf32>
    %206 = tpu.concatenate %177, %205 in 0 : vector<4x384xf32>, vector<4x384xf32> -> vector<8x384xf32>
    %c384 = arith.constant 384 : index
    %c0_256 = arith.constant 0 : index
    %207 = vector.load %arg1[%c384, %c0_256] : memref<1536x128xbf16, #tpu.memory_space<vmem>>, vector<384x128xbf16>
    %208 = arith.truncf %206 : vector<8x384xf32> to vector<8x384xbf16>
    %cst_257 = arith.constant dense<0.000000e+00> : vector<8x128xf32>
    %209 = tpu.matmul %208, %207, %cst_257 {dimension_numbers = #tpu.dot_dimension_numbers<[1], [0], [0], [1], [0, 0, 1, 1], [], []>} : vector<8x384xbf16>, vector<384x128xbf16>, vector<8x128xf32> -> vector<8x128xf32>
    %c1_258 = arith.constant 1 : index
    %c0_259 = arith.constant 0 : index
    %210 = vector.load %arg2[%c1_258, %c0_259] : memref<8x128xf32, #tpu.memory_space<vmem>>, vector<1x128xf32>
    %211 = vector.broadcast %210 : vector<1x128xf32> to vector<8x128xf32>
    %212 = arith.addf %209, %211 : vector<8x128xf32>
    %cst_260 = arith.constant 2.000000e-01 : f32
    %213 = vector.broadcast %cst_260 : f32 to vector<8x128xf32>
    %214 = arith.mulf %213, %212 : vector<8x128xf32>
    %215 = arith.maximumf %212, %214 : vector<8x128xf32>
    %c4_261 = arith.constant 4 : index
    %c0_262 = arith.constant 0 : index
    %216 = vector.load %arg2[%c4_261, %c0_262] : memref<8x128xf32, #tpu.memory_space<vmem>>, vector<1x128xf32>
    %217 = vector.broadcast %216 : vector<1x128xf32> to vector<8x128xf32>
    %218 = arith.addf %215, %217 : vector<8x128xf32>
    %cst_263 = arith.constant 0.000000e+00 : f32
    %219 = vector.broadcast %cst_263 : f32 to vector<2x6x128xf32>
    %c0_264 = arith.constant 0 : index
    %c0_265 = arith.constant 0 : index
    %c0_266 = arith.constant 0 : index
    %220 = vector.load %arg7[%c0_264, %c0_265, %c0_266] : memref<2x6x128xf32, #tpu.memory_space<vmem>>, vector<2x6x128xf32>
    tpu.vector_store %arg7[%c0_264, %c0_265, %c0_266], %219 {strides = array<i32>} : memref<2x6x128xf32, #tpu.memory_space<vmem>>, vector<2x6x128xf32>,
    %221 = vector.extract_strided_slice %218 {offsets = [0, 0], sizes = [4, 128], strides = [1, 1]} : vector<8x128xf32> to vector<4x128xf32>
    %c0_267 = arith.constant 0 : index
    %c1_268 = arith.constant 1 : index
    %c0_269 = arith.constant 0 : index
    %222 = vector.load %arg7[%c0_267, %c1_268, %c0_269] : memref<2x6x128xf32, #tpu.memory_space<vmem>>, vector<1x4x128xf32>
    %223 = vector.shape_cast %222 : vector<1x4x128xf32> to vector<4x128xf32>
    %224 = vector.shape_cast %221 : vector<4x128xf32> to vector<1x4x128xf32>
    tpu.vector_store %arg7[%c0_267, %c1_268, %c0_269], %224 {strides = array<i32>} : memref<2x6x128xf32, #tpu.memory_space<vmem>>, vector<1x4x128xf32>,
    %225 = vector.extract_strided_slice %218 {offsets = [4, 0], sizes = [4, 128], strides = [1, 1]} : vector<8x128xf32> to vector<4x128xf32>
    %c1_270 = arith.constant 1 : index
    %c1_271 = arith.constant 1 : index
    %c0_272 = arith.constant 0 : index
    %226 = vector.load %arg7[%c1_270, %c1_271, %c0_272] : memref<2x6x128xf32, #tpu.memory_space<vmem>>, vector<1x4x128xf32>
    %227 = vector.shape_cast %226 : vector<1x4x128xf32> to vector<4x128xf32>
    %228 = vector.shape_cast %225 : vector<4x128xf32> to vector<1x4x128xf32>
    tpu.vector_store %arg7[%c1_270, %c1_271, %c0_272], %228 {strides = array<i32>} : memref<2x6x128xf32, #tpu.memory_space<vmem>>, vector<1x4x128xf32>,
    %c0_273 = arith.constant 0 : index
    %c0_274 = arith.constant 0 : index
    %c0_275 = arith.constant 0 : index
    %229 = vector.load %arg7[%c0_273, %c0_274, %c0_275] : memref<2x6x128xf32, #tpu.memory_space<vmem>>, vector<1x1x128xf32>
    %230 = vector.shape_cast %229 : vector<1x1x128xf32> to vector<1x128xf32>
    %c0_276 = arith.constant 0 : index
    %c2_277 = arith.constant 2 : index
    %c0_278 = arith.constant 0 : index
    %231 = vector.load %arg7[%c0_276, %c2_277, %c0_278] : memref<2x6x128xf32, #tpu.memory_space<vmem>>, vector<1x1x128xf32>
    %232 = vector.shape_cast %231 : vector<1x1x128xf32> to vector<1x128xf32>
    %233 = tpu.concatenate %230, %232 in 0 : vector<1x128xf32>, vector<1x128xf32> -> vector<2x128xf32>
    %c0_279 = arith.constant 0 : index
    %c1_280 = arith.constant 1 : index
    %c0_281 = arith.constant 0 : index
    %234 = vector.load %arg7[%c0_279, %c1_280, %c0_281] : memref<2x6x128xf32, #tpu.memory_space<vmem>>, vector<1x1x128xf32>
    %235 = vector.shape_cast %234 : vector<1x1x128xf32> to vector<1x128xf32>
    %c0_282 = arith.constant 0 : index
    %c3_283 = arith.constant 3 : index
    %c0_284 = arith.constant 0 : index
    %236 = vector.load %arg7[%c0_282, %c3_283, %c0_284] : memref<2x6x128xf32, #tpu.memory_space<vmem>>, vector<1x1x128xf32>
    %237 = vector.shape_cast %236 : vector<1x1x128xf32> to vector<1x128xf32>
    %238 = tpu.concatenate %235, %237 in 0 : vector<1x128xf32>, vector<1x128xf32> -> vector<2x128xf32>
    %c0_285 = arith.constant 0 : index
    %c2_286 = arith.constant 2 : index
    %c0_287 = arith.constant 0 : index
    %239 = vector.load %arg7[%c0_285, %c2_286, %c0_287] : memref<2x6x128xf32, #tpu.memory_space<vmem>>, vector<1x1x128xf32>
    %240 = vector.shape_cast %239 : vector<1x1x128xf32> to vector<1x128xf32>
    %c0_288 = arith.constant 0 : index
    %c4_289 = arith.constant 4 : index
    %c0_290 = arith.constant 0 : index
    %241 = vector.load %arg7[%c0_288, %c4_289, %c0_290] : memref<2x6x128xf32, #tpu.memory_space<vmem>>, vector<1x1x128xf32>
    %242 = vector.shape_cast %241 : vector<1x1x128xf32> to vector<1x128xf32>
    %243 = tpu.concatenate %240, %242 in 0 : vector<1x128xf32>, vector<1x128xf32> -> vector<2x128xf32>
    %244 = tpu.concatenate %233, %238, %243 in 1 : vector<2x128xf32>, vector<2x128xf32>, vector<2x128xf32> -> vector<2x384xf32>
    %c1_291 = arith.constant 1 : index
    %c0_292 = arith.constant 0 : index
    %c0_293 = arith.constant 0 : index
    %245 = vector.load %arg7[%c1_291, %c0_292, %c0_293] : memref<2x6x128xf32, #tpu.memory_space<vmem>>, vector<1x1x128xf32>
    %246 = vector.shape_cast %245 : vector<1x1x128xf32> to vector<1x128xf32>
    %c1_294 = arith.constant 1 : index
    %c2_295 = arith.constant 2 : index
    %c0_296 = arith.constant 0 : index
    %247 = vector.load %arg7[%c1_294, %c2_295, %c0_296] : memref<2x6x128xf32, #tpu.memory_space<vmem>>, vector<1x1x128xf32>
    %248 = vector.shape_cast %247 : vector<1x1x128xf32> to vector<1x128xf32>
    %249 = tpu.concatenate %246, %248 in 0 : vector<1x128xf32>, vector<1x128xf32> -> vector<2x128xf32>
    %c1_297 = arith.constant 1 : index
    %c1_298 = arith.constant 1 : index
    %c0_299 = arith.constant 0 : index
    %250 = vector.load %arg7[%c1_297, %c1_298, %c0_299] : memref<2x6x128xf32, #tpu.memory_space<vmem>>, vector<1x1x128xf32>
    %251 = vector.shape_cast %250 : vector<1x1x128xf32> to vector<1x128xf32>
    %c1_300 = arith.constant 1 : index
    %c3_301 = arith.constant 3 : index
    %c0_302 = arith.constant 0 : index
    %252 = vector.load %arg7[%c1_300, %c3_301, %c0_302] : memref<2x6x128xf32, #tpu.memory_space<vmem>>, vector<1x1x128xf32>
    %253 = vector.shape_cast %252 : vector<1x1x128xf32> to vector<1x128xf32>
    %254 = tpu.concatenate %251, %253 in 0 : vector<1x128xf32>, vector<1x128xf32> -> vector<2x128xf32>
    %c1_303 = arith.constant 1 : index
    %c2_304 = arith.constant 2 : index
    %c0_305 = arith.constant 0 : index
    %255 = vector.load %arg7[%c1_303, %c2_304, %c0_305] : memref<2x6x128xf32, #tpu.memory_space<vmem>>, vector<1x1x128xf32>
    %256 = vector.shape_cast %255 : vector<1x1x128xf32> to vector<1x128xf32>
    %c1_306 = arith.constant 1 : index
    %c4_307 = arith.constant 4 : index
    %c0_308 = arith.constant 0 : index
    %257 = vector.load %arg7[%c1_306, %c4_307, %c0_308] : memref<2x6x128xf32, #tpu.memory_space<vmem>>, vector<1x1x128xf32>
    %258 = vector.shape_cast %257 : vector<1x1x128xf32> to vector<1x128xf32>
    %259 = tpu.concatenate %256, %258 in 0 : vector<1x128xf32>, vector<1x128xf32> -> vector<2x128xf32>
    %260 = tpu.concatenate %249, %254, %259 in 1 : vector<2x128xf32>, vector<2x128xf32>, vector<2x128xf32> -> vector<2x384xf32>
    %261 = tpu.concatenate %244, %260 in 0 : vector<2x384xf32>, vector<2x384xf32> -> vector<4x384xf32>
    %c768 = arith.constant 768 : index
    %c0_309 = arith.constant 0 : index
    %262 = vector.load %arg1[%c768, %c0_309] : memref<1536x128xbf16, #tpu.memory_space<vmem>>, vector<384x128xbf16>
    %263 = arith.truncf %261 : vector<4x384xf32> to vector<4x384xbf16>
    %cst_310 = arith.constant dense<0.000000e+00> : vector<4x128xf32>
    %264 = tpu.matmul %263, %262, %cst_310 {dimension_numbers = #tpu.dot_dimension_numbers<[1], [0], [0], [1], [0, 0, 1, 1], [], []>} : vector<4x384xbf16>, vector<384x128xbf16>, vector<4x128xf32> -> vector<4x128xf32>
    %c2_311 = arith.constant 2 : index
    %c0_312 = arith.constant 0 : index
    %265 = vector.load %arg2[%c2_311, %c0_312] : memref<8x128xf32, #tpu.memory_space<vmem>>, vector<1x128xf32>
    %266 = vector.broadcast %265 : vector<1x128xf32> to vector<4x128xf32>
    %267 = arith.addf %264, %266 : vector<4x128xf32>
    %cst_313 = arith.constant 2.000000e-01 : f32
    %268 = vector.broadcast %cst_313 : f32 to vector<4x128xf32>
    %269 = arith.mulf %268, %267 : vector<4x128xf32>
    %270 = arith.maximumf %267, %269 : vector<4x128xf32>
    %c5_314 = arith.constant 5 : index
    %c0_315 = arith.constant 0 : index
    %271 = vector.load %arg2[%c5_314, %c0_315] : memref<8x128xf32, #tpu.memory_space<vmem>>, vector<1x128xf32>
    %272 = vector.broadcast %271 : vector<1x128xf32> to vector<4x128xf32>
    %273 = arith.addf %270, %272 : vector<4x128xf32>
    %cst_316 = arith.constant 0.000000e+00 : f32
    %274 = vector.broadcast %cst_316 : f32 to vector<2x4x128xf32>
    %c0_317 = arith.constant 0 : index
    %c0_318 = arith.constant 0 : index
    %c0_319 = arith.constant 0 : index
    %275 = vector.load %arg8[%c0_317, %c0_318, %c0_319] : memref<2x4x128xf32, #tpu.memory_space<vmem>>, vector<2x4x128xf32>
    tpu.vector_store %arg8[%c0_317, %c0_318, %c0_319], %274 {strides = array<i32>} : memref<2x4x128xf32, #tpu.memory_space<vmem>>, vector<2x4x128xf32>,
    %276 = vector.extract_strided_slice %273 {offsets = [0, 0], sizes = [2, 128], strides = [1, 1]} : vector<4x128xf32> to vector<2x128xf32>
    %c0_320 = arith.constant 0 : index
    %c1_321 = arith.constant 1 : index
    %c0_322 = arith.constant 0 : index
    %277 = vector.load %arg8[%c0_320, %c1_321, %c0_322] : memref<2x4x128xf32, #tpu.memory_space<vmem>>, vector<1x2x128xf32>
    %278 = vector.shape_cast %277 : vector<1x2x128xf32> to vector<2x128xf32>
    %279 = vector.shape_cast %276 : vector<2x128xf32> to vector<1x2x128xf32>
    tpu.vector_store %arg8[%c0_320, %c1_321, %c0_322], %279 {strides = array<i32>} : memref<2x4x128xf32, #tpu.memory_space<vmem>>, vector<1x2x128xf32>,
    %280 = vector.extract_strided_slice %273 {offsets = [2, 0], sizes = [2, 128], strides = [1, 1]} : vector<4x128xf32> to vector<2x128xf32>
    %c1_323 = arith.constant 1 : index
    %c1_324 = arith.constant 1 : index
    %c0_325 = arith.constant 0 : index
    %281 = vector.load %arg8[%c1_323, %c1_324, %c0_325] : memref<2x4x128xf32, #tpu.memory_space<vmem>>, vector<1x2x128xf32>
    %282 = vector.shape_cast %281 : vector<1x2x128xf32> to vector<2x128xf32>
    %283 = vector.shape_cast %280 : vector<2x128xf32> to vector<1x2x128xf32>
    tpu.vector_store %arg8[%c1_323, %c1_324, %c0_325], %283 {strides = array<i32>} : memref<2x4x128xf32, #tpu.memory_space<vmem>>, vector<1x2x128xf32>,
    %c0_326 = arith.constant 0 : index
    %c0_327 = arith.constant 0 : index
    %c0_328 = arith.constant 0 : index
    %284 = vector.load %arg8[%c0_326, %c0_327, %c0_328] : memref<2x4x128xf32, #tpu.memory_space<vmem>>, vector<1x1x128xf32>
    %285 = vector.shape_cast %284 : vector<1x1x128xf32> to vector<1x128xf32>
    %c0_329 = arith.constant 0 : index
    %c1_330 = arith.constant 1 : index
    %c0_331 = arith.constant 0 : index
    %286 = vector.load %arg8[%c0_329, %c1_330, %c0_331] : memref<2x4x128xf32, #tpu.memory_space<vmem>>, vector<1x1x128xf32>
    %287 = vector.shape_cast %286 : vector<1x1x128xf32> to vector<1x128xf32>
    %c0_332 = arith.constant 0 : index
    %c2_333 = arith.constant 2 : index
    %c0_334 = arith.constant 0 : index
    %288 = vector.load %arg8[%c0_332, %c2_333, %c0_334] : memref<2x4x128xf32, #tpu.memory_space<vmem>>, vector<1x1x128xf32>
    %289 = vector.shape_cast %288 : vector<1x1x128xf32> to vector<1x128xf32>
    %290 = tpu.concatenate %285, %287, %289 in 1 : vector<1x128xf32>, vector<1x128xf32>, vector<1x128xf32> -> vector<1x384xf32>
    %c1_335 = arith.constant 1 : index
    %c0_336 = arith.constant 0 : index
    %c0_337 = arith.constant 0 : index
    %291 = vector.load %arg8[%c1_335, %c0_336, %c0_337] : memref<2x4x128xf32, #tpu.memory_space<vmem>>, vector<1x1x128xf32>
    %292 = vector.shape_cast %291 : vector<1x1x128xf32> to vector<1x128xf32>
    %c1_338 = arith.constant 1 : index
    %c1_339 = arith.constant 1 : index
    %c0_340 = arith.constant 0 : index
    %293 = vector.load %arg8[%c1_338, %c1_339, %c0_340] : memref<2x4x128xf32, #tpu.memory_space<vmem>>, vector<1x1x128xf32>
    %294 = vector.shape_cast %293 : vector<1x1x128xf32> to vector<1x128xf32>
    %c1_341 = arith.constant 1 : index
    %c2_342 = arith.constant 2 : index
    %c0_343 = arith.constant 0 : index
    %295 = vector.load %arg8[%c1_341, %c2_342, %c0_343] : memref<2x4x128xf32, #tpu.memory_space<vmem>>, vector<1x1x128xf32>
    %296 = vector.shape_cast %295 : vector<1x1x128xf32> to vector<1x128xf32>
    %297 = tpu.concatenate %292, %294, %296 in 1 : vector<1x128xf32>, vector<1x128xf32>, vector<1x128xf32> -> vector<1x384xf32>
    %298 = tpu.concatenate %290, %297 in 0 : vector<1x384xf32>, vector<1x384xf32> -> vector<2x384xf32>
    %c1152 = arith.constant 1152 : index
    %c0_344 = arith.constant 0 : index
    %299 = vector.load %arg1[%c1152, %c0_344] : memref<1536x128xbf16, #tpu.memory_space<vmem>>, vector<384x128xbf16>
    %300 = arith.truncf %298 : vector<2x384xf32> to vector<2x384xbf16>
    %cst_345 = arith.constant dense<0.000000e+00> : vector<2x128xf32>
    %301 = tpu.matmul %300, %299, %cst_345 {dimension_numbers = #tpu.dot_dimension_numbers<[1], [0], [0], [1], [0, 0, 1, 1], [], []>} : vector<2x384xbf16>, vector<384x128xbf16>, vector<2x128xf32> -> vector<2x128xf32>
    %c3_346 = arith.constant 3 : index
    %c0_347 = arith.constant 0 : index
    %302 = vector.load %arg2[%c3_346, %c0_347] : memref<8x128xf32, #tpu.memory_space<vmem>>, vector<1x128xf32>
    %303 = vector.broadcast %302 : vector<1x128xf32> to vector<2x128xf32>
    %304 = arith.addf %301, %303 : vector<2x128xf32>
    %cst_348 = arith.constant 2.000000e-01 : f32
    %305 = vector.broadcast %cst_348 : f32 to vector<2x128xf32>
    %306 = arith.mulf %305, %304 : vector<2x128xf32>
    %307 = arith.maximumf %304, %306 : vector<2x128xf32>
    %c6_349 = arith.constant 6 : index
    %c0_350 = arith.constant 0 : index
    %308 = vector.load %arg2[%c6_349, %c0_350] : memref<8x128xf32, #tpu.memory_space<vmem>>, vector<1x128xf32>
    %309 = vector.broadcast %308 : vector<1x128xf32> to vector<2x128xf32>
    %310 = arith.addf %307, %309 : vector<2x128xf32>
    %311 = arith.truncf %310 : vector<2x128xf32> to vector<2x128xbf16>
    %c0_351 = arith.constant 0 : index
    %c0_352 = arith.constant 0 : index
    %312 = vector.load %arg3[%c0_351, %c0_352] : memref<128x11xbf16, #tpu.memory_space<vmem>>, vector<128x11xbf16>
    %cst_353 = arith.constant dense<0.000000e+00> : vector<2x11xf32>
    %313 = tpu.matmul %311, %312, %cst_353 {dimension_numbers = #tpu.dot_dimension_numbers<[1], [0], [0], [1], [0, 0, 1, 1], [], []>} : vector<2x128xbf16>, vector<128x11xbf16>, vector<2x11xf32> -> vector<2x11xf32>
    %c7_354 = arith.constant 7 : index
    %c0_355 = arith.constant 0 : index
    %314 = vector.load %arg2[%c7_354, %c0_355] : memref<8x128xf32, #tpu.memory_space<vmem>>, vector<1x11xf32>
    %315 = vector.broadcast %314 : vector<1x11xf32> to vector<2x11xf32>
    %316 = arith.addf %313, %315 : vector<2x11xf32>
    %317 = vector.extract_strided_slice %316 {offsets = [0, 0], sizes = [2, 1], strides = [1, 1]} : vector<2x11xf32> to vector<2x1xf32>
    %cst_356 = arith.constant 0.000000e+00 : f32
    %318 = vector.broadcast %cst_356 : f32 to vector<2x1xf32>
    %319 = arith.cmpf oge, %317, %318 : vector<2x1xf32>
    %cst_357 = arith.constant 0.000000e+00 : f32
    %320 = vector.broadcast %cst_357 : f32 to vector<2x1xf32>
    %321 = arith.subf %320, %317 : vector<2x1xf32>
    %322 = arith.select %319, %321, %317 : vector<2x1xi1>, vector<2x1xf32>
    %323 = math.exp %322 : vector<2x1xf32>
    %cst_358 = arith.constant 1.000000e+00 : f32
    %324 = vector.broadcast %cst_358 : f32 to vector<2x1xf32>
    %325 = arith.addf %324, %323 : vector<2x1xf32>
    %cst_359 = arith.constant 1.000000e+00 : f32
    %326 = vector.broadcast %cst_359 : f32 to vector<2x1xf32>
    %327 = arith.divf %326, %325 : vector<2x1xf32>
    %cst_360 = arith.constant 1.000000e+00 : f32
    %328 = vector.broadcast %cst_360 : f32 to vector<2x1xf32>
    %329 = arith.addf %328, %323 : vector<2x1xf32>
    %330 = arith.divf %323, %329 : vector<2x1xf32>
    %331 = arith.select %319, %327, %330 : vector<2x1xi1>, vector<2x1xf32>
    %332 = vector.extract_strided_slice %316 {offsets = [0, 1], sizes = [2, 10], strides = [1, 1]} : vector<2x11xf32> to vector<2x10xf32>
    %cst_361 = arith.constant dense<0xFF800000> : vector<2xf32>
    %333 = vector.multi_reduction <maximumf>, %332, %cst_361 [1] : vector<2x10xf32> to vector<2xf32>
    %334 = vector.shape_cast %333 : vector<2xf32> to vector<2x1xf32>
    %335 = vector.broadcast %334 : vector<2x1xf32> to vector<2x10xf32>
    %336 = arith.subf %332, %335 : vector<2x10xf32>
    %337 = math.exp %336 : vector<2x10xf32>
    %cst_362 = arith.constant dense<0.000000e+00> : vector<2xf32>
    %338 = vector.multi_reduction <add>, %337, %cst_362 [1] : vector<2x10xf32> to vector<2xf32>
    %339 = vector.shape_cast %338 : vector<2xf32> to vector<2x1xf32>
    %340 = vector.broadcast %339 : vector<2x1xf32> to vector<2x10xf32>
    %341 = arith.divf %337, %340 : vector<2x10xf32>
    %342 = tpu.concatenate %331, %341 in 1 : vector<2x1xf32>, vector<2x10xf32> -> vector<2x11xf32>
    %c0_363 = arith.constant 0 : index
    %c0_364 = arith.constant 0 : index
    %343 = vector.load %arg4[%c0_363, %c0_364] : memref<2x11xf32, #tpu.memory_space<vmem>>, vector<2x11xf32>
    tpu.vector_store %arg4[%c0_363, %c0_364], %342 {strides = array<i32>} : memref<2x11xf32, #tpu.memory_space<vmem>>, vector<2x11xf32>,
    return
  }
}

</mosaic_0001>

<llo_original>
// kernel: tpu_custom_call.1
$region0: #{tpu_custom_call.1}
  #allocation0 [shape = 'u32[]', space=smem, size = 0x4, offset = 0x4, fixed_abs, tag = 'smem constant byte address 0x4 - core index']
  #allocation1 [shape = 'u32[144,128]{1,0:T(1,128)}', space=vmem, size = 0x12000, scoped, tag = 'internal scratch']
  #allocation2 [shape = 'f32[2,18,128]{2,1,0:T(8,128)}', space=vmem, size = 0x6000, scoped, tag = 'scratch operand']
  #allocation3 [shape = 'f32[2,10,128]{2,1,0:T(8,128)}', space=vmem, size = 0x4000, scoped, tag = 'scratch operand']
  #allocation4 [shape = 'f32[2,6,128]{2,1,0:T(8,128)}', space=vmem, size = 0x2000, scoped, tag = 'scratch operand']
  #allocation5 [shape = 'f32[2,4,128]{2,1,0:T(4,128)}', space=vmem, size = 0x1000, scoped, tag = 'scratch operand']
  %s0 = inlined_call_operand.hbm [shape: f32[2,4,16,16], index: 0, kind: input, shape index: {}]
  %s1 = inlined_call_operand.hbm [shape: bf16[1536,128], index: 1, kind: input, shape index: {}]
  %s2 = inlined_call_operand.vmem [shape: f32[8,128], index: 2, kind: input, shape index: {}]
  %s3 = inlined_call_operand.vmem [shape: bf16[128,11], index: 3, kind: input, shape index: {}]
  %s4 = inlined_call_operand.hbm [shape: f32[2,11], index: 4, kind: output, shape index: {}]
  %s5 = sld [smem:[#allocation0]]
  $region34: #{tpu_custom_call.1} parent=0
    _
  %s7 = ssub.s32 1, %s5
  %s8 = scalar_select 0, %s7, %s5
  $region1: #{tpu_custom_call.1} parent=0
    #allocation6 [shape = 'u8[65536]{0}', space=vmem, size = 0x10000, scoped, tag = 'input window, operand 0, single buffered']
    #allocation7 [shape = 's32[1]{0}', space=sflag, size = 0x4, scoped, tag = 'scoped memory for tpu_custom_call.1']
    #allocation8 [shape = 's32[1]{0}', space=sflag, size = 0x4, scoped, tag = 'scoped memory for tpu_custom_call.1']
    #allocation9 [shape = 'u8[393216]{0}', space=vmem, size = 0x60000, scoped, tag = 'input window, operand 1, single buffered']
    #allocation10 [shape = 's32[1]{0}', space=sflag, size = 0x4, scoped, tag = 'scoped memory for tpu_custom_call.1']
    #allocation11 [shape = 'u8[1024]{0}', space=vmem, size = 0x400, scoped, tag = 'output window, operand 0, single buffered']
    %9 = vsyncpa [#allocation7], 0
    %10 = vsyncpa [#allocation10], 0
    %11 = vsyncpa [#allocation8], 0
    // Predicated region
    $region2: #{tpu_custom_call.1} parent=1 // pred_check
      _
    $region3: #{tpu_custom_call.1} parent=1 // pred_check_branch
      %13 = sbr.rel (0) target = $region5
    $region4: #{tpu_custom_call.1} parent=1 // pred_region
      %s15 = ssub.s32 2048, 2048
      %16 = vsyncadd [#allocation7], %s15
      %s17 = sshll.u32 [#allocation6], 4
      %s18 = int_to_ptr.vmem [resolvable:$true] %s17
      %23 = dma.hbm_to_vmem [thread:$0]  %s0, 2048, %s18, [#allocation7], 128, 128, 8
    $region5: #{tpu_custom_call.1} parent=1 // pred_fallthru
      _
    // Predicated region
    $region6: #{tpu_custom_call.1} parent=1 // pred_check
      _
    $region7: #{tpu_custom_call.1} parent=1 // pred_check_branch
      %25 = sbr.rel (0) target = $region9
    $region8: #{tpu_custom_call.1} parent=1 // pred_region
      %s27 = ssub.s32 12288, 12288
      %28 = vsyncadd [#allocation10], %s27
      %s29 = sshll.u32 [#allocation9], 4
      %s30 = int_to_ptr.vmem [resolvable:$true] %s29
      %35 = dma.hbm_to_vmem [thread:$0]  %s1, 12288, %s30, [#allocation10], 64, 64, 4
    $region9: #{tpu_custom_call.1} parent=1 // pred_fallthru
      _
    // Predicated region
    $region10: #{tpu_custom_call.1} parent=1 // pred_check
      _
    $region11: #{tpu_custom_call.1} parent=1 // pred_check_branch
      %37 = sbr.rel (0) target = $region13
    $region12: #{tpu_custom_call.1} parent=1 // pred_region
      _
    $region13: #{tpu_custom_call.1} parent=1 // pred_fallthru
      _
    // Predicated region
    $region14: #{tpu_custom_call.1} parent=1 // pred_check
      _
    $region15: #{tpu_custom_call.1} parent=1 // pred_check_branch
      %39 = sbr.rel (0) target = $region17
    $region16: #{tpu_custom_call.1} parent=1 // pred_region
      _
    $region17: #{tpu_custom_call.1} parent=1 // pred_fallthru
      _
    // Predicated region
    $region18: #{tpu_custom_call.1} parent=1 // pred_check
      _
    $region19: #{tpu_custom_call.1} parent=1 // pred_check_branch
      %41 = sbr.rel (0) target = $region21
    $region20: #{tpu_custom_call.1} parent=1 // pred_region
      %42 = dma.done [#allocation7], 2048
    $region21: #{tpu_custom_call.1} parent=1 // pred_fallthru
      _
    // Predicated region
    $region22: #{tpu_custom_call.1} parent=1 // pred_check
      _
    $region23: #{tpu_custom_call.1} parent=1 // pred_check_branch
      %44 = sbr.rel (0) target = $region25
    $region24: #{tpu_custom_call.1} parent=1 // pred_region
      %45 = dma.done [#allocation10], 12288
    $region25: #{tpu_custom_call.1} parent=1 // pred_fallthru
      _
    %47 = vst [vmem:[#allocation2] sm:$0xff] 0.0
    %48 = vst [vmem:[#allocation2 + $0x8] sm:$0xff] 0.0
    %49 = vst [vmem:[#allocation2 + $0x10] sm:$0x3] 0.0
    %50 = vst [vmem:[#allocation2 + $0x18] sm:$0xff] 0.0
    %51 = vst [vmem:[#allocation2 + $0x20] sm:$0xff] 0.0
    %52 = vst [vmem:[#allocation2 + $0x28] sm:$0x3] 0.0
    %v53 = vld [vmem:[#allocation6] sm:$0xff]
    %v54 = vld [vmem:[#allocation6 + $0x8] sm:$0xff]
    %s55 = scalar_lea.vmem [#allocation6], 16
    %v56 = vld [vmem:[%s55] sm:$0xff]
    %v57 = vld [vmem:[%s55 + $0x8] sm:$0xff]
    %s58 = scalar_lea.vmem [#allocation6], 32
    %v59 = vld [vmem:[%s58] sm:$0xff]
    %v60 = vld [vmem:[%s58 + $0x8] sm:$0xff]
    %s61 = scalar_lea.vmem [#allocation6], 48
    %v62 = vld [vmem:[%s61] sm:$0xff]
    %v63 = vld [vmem:[%s61 + $0x8] sm:$0xff]
    %66 = vrot.lane.b32.xlu0 %v56, 16
    %v67 = vpop.permute.xlu0 %66
    %68 = vrot.lane.b32.xlu0 %v57, 16
    %v69 = vpop.permute.xlu0 %68
    %74 = vrot.lane.b32.xlu0 %v59, 32
    %v75 = vpop.permute.xlu0 %74
    %76 = vrot.lane.b32.xlu0 %v60, 32
    %v77 = vpop.permute.xlu0 %76
    %82 = vrot.lane.b32.xlu0 %v62, 48
    %v83 = vpop.permute.xlu0 %82
    %84 = vrot.lane.b32.xlu0 %v63, 48
    %v85 = vpop.permute.xlu0 %84
    %vm88 = vcmask 130048
    %v89 = vsel %vm88, %v53, %v67
    %v90 = vsel %vm88, %v54, %v69
    %vm91 = vcmask 261120
    %v92 = vsel %vm91, %v89, %v75
    %v93 = vsel %vm91, %v90, %v77
    %vm94 = vcmask 392192
    %v95 = vsel %vm94, %v92, %v83
    %v96 = vsel %vm94, %v93, %v85
    %vm97 = vcmask 523264
    %98 = vst.msk [vmem:[#allocation2 + $0x1] sm:$0xff] %vm97, %v95
    %99 = vst.msk [vmem:[#allocation2 + $0x9] sm:$0xff] %vm97, %v96
    %s100 = scalar_lea.vmem [#allocation6], 64
    %v101 = vld [vmem:[%s100] sm:$0xff]
    %v102 = vld [vmem:[%s100 + $0x8] sm:$0xff]
    %s103 = scalar_lea.vmem [#allocation6], 80
    %v104 = vld [vmem:[%s103] sm:$0xff]
    %v105 = vld [vmem:[%s103 + $0x8] sm:$0xff]
    %s106 = scalar_lea.vmem [#allocation6], 96
    %v107 = vld [vmem:[%s106] sm:$0xff]
    %v108 = vld [vmem:[%s106 + $0x8] sm:$0xff]
    %s109 = scalar_lea.vmem [#allocation6], 112
    %v110 = vld [vmem:[%s109] sm:$0xff]
    %v111 = vld [vmem:[%s109 + $0x8] sm:$0xff]
    %114 = vrot.lane.b32.xlu0 %v104, 16
    %v115 = vpop.permute.xlu0 %114
    %116 = vrot.lane.b32.xlu0 %v105, 16
    %v117 = vpop.permute.xlu0 %116
    %122 = vrot.lane.b32.xlu0 %v107, 32
    %v123 = vpop.permute.xlu0 %122
    %124 = vrot.lane.b32.xlu0 %v108, 32
    %v125 = vpop.permute.xlu0 %124
    %130 = vrot.lane.b32.xlu0 %v110, 48
    %v131 = vpop.permute.xlu0 %130
    %132 = vrot.lane.b32.xlu0 %v111, 48
    %v133 = vpop.permute.xlu0 %132
    %v136 = vsel %vm88, %v101, %v115
    %v137 = vsel %vm88, %v102, %v117
    %v138 = vsel %vm91, %v136, %v123
    %v139 = vsel %vm91, %v137, %v125
    %v140 = vsel %vm94, %v138, %v131
    %v141 = vsel %vm94, %v139, %v133
    %s142 = scalar_lea.vmem [#allocation2], 24
    %143 = vst.msk [vmem:[%s142 + $0x1] sm:$0xff] %vm97, %v140
    %144 = vst.msk [vmem:[%s142 + $0x9] sm:$0xff] %vm97, %v141
    %v145 = vld [vmem:[#allocation2] ss:$2 sm:$0xff]
    %s146 = scalar_lea.vmem [#allocation2], 1
    %v147 = vld [vmem:[%s146] ss:$2 sm:$0xff]
    %s148 = scalar_lea.vmem [#allocation2], 2
    %v149 = vld [vmem:[%s148] ss:$2 sm:$0xff]
    %v150 = vld [vmem:[%s142] ss:$2 sm:$0xff]
    %s151 = scalar_lea.vmem %s142, 1 [#allocation2]
    %v152 = vld [vmem:[%s151] ss:$2 sm:$0xff]
    %s153 = scalar_lea.vmem %s142, 2 [#allocation2]
    %v154 = vld [vmem:[%s153] ss:$2 sm:$0xff]
    %v155 = vld [vmem:[#allocation9] sm:$0xf]
    %v156 = vld [vmem:[#allocation9 + $0x4] sm:$0xf]
    %v157 = vld [vmem:[#allocation9 + $0x8] sm:$0xf]
    %v158 = vld [vmem:[#allocation9 + $0xc] sm:$0xf]
    %v159 = vld [vmem:[#allocation9 + $0x10] sm:$0xf]
    %v160 = vld [vmem:[#allocation9 + $0x14] sm:$0xf]
    %v161 = vld [vmem:[#allocation9 + $0x18] sm:$0xf]
    %v162 = vld [vmem:[#allocation9 + $0x1c] sm:$0xf]
    %v163 = vld [vmem:[#allocation9 + $0x20] sm:$0xf]
    %v164 = vld [vmem:[#allocation9 + $0x24] sm:$0xf]
    %v165 = vld [vmem:[#allocation9 + $0x28] sm:$0xf]
    %v166 = vld [vmem:[#allocation9 + $0x2c] sm:$0xf]
    %v167 = vld [vmem:[#allocation9 + $0x30] sm:$0xf]
    %v168 = vld [vmem:[#allocation9 + $0x34] sm:$0xf]
    %v169 = vld [vmem:[#allocation9 + $0x38] sm:$0xf]
    %v170 = vld [vmem:[#allocation9 + $0x3c] sm:$0xf]
    %v171 = vld [vmem:[#allocation9 + $0x40] sm:$0xf]
    %v172 = vld [vmem:[#allocation9 + $0x44] sm:$0xf]
    %v173 = vld [vmem:[#allocation9 + $0x48] sm:$0xf]
    %v174 = vld [vmem:[#allocation9 + $0x4c] sm:$0xf]
    %v175 = vld [vmem:[#allocation9 + $0x50] sm:$0xf]
    %v176 = vld [vmem:[#allocation9 + $0x54] sm:$0xf]
    %v177 = vld [vmem:[#allocation9 + $0x58] sm:$0xf]
    %v178 = vld [vmem:[#allocation9 + $0x5c] sm:$0xf]
    %v179 = vld [vmem:[#allocation9 + $0x60] sm:$0xf]
    %v180 = vld [vmem:[#allocation9 + $0x64] sm:$0xf]
    %v181 = vld [vmem:[#allocation9 + $0x68] sm:$0xf]
    %v182 = vld [vmem:[#allocation9 + $0x6c] sm:$0xf]
    %v183 = vld [vmem:[#allocation9 + $0x70] sm:$0xf]
    %v184 = vld [vmem:[#allocation9 + $0x74] sm:$0xf]
    %v185 = vld [vmem:[#allocation9 + $0x78] sm:$0xf]
    %v186 = vld [vmem:[#allocation9 + $0x7c] sm:$0xf]
    %v187 = vld [vmem:[#allocation9 + $0x80] sm:$0xf]
    %v188 = vld [vmem:[#allocation9 + $0x84] sm:$0xf]
    %v189 = vld [vmem:[#allocation9 + $0x88] sm:$0xf]
    %v190 = vld [vmem:[#allocation9 + $0x8c] sm:$0xf]
    %v191 = vld [vmem:[#allocation9 + $0x90] sm:$0xf]
    %v192 = vld [vmem:[#allocation9 + $0x94] sm:$0xf]
    %v193 = vld [vmem:[#allocation9 + $0x98] sm:$0xf]
    %v194 = vld [vmem:[#allocation9 + $0x9c] sm:$0xf]
    %v195 = vld [vmem:[#allocation9 + $0xa0] sm:$0xf]
    %v196 = vld [vmem:[#allocation9 + $0xa4] sm:$0xf]
    %v197 = vld [vmem:[#allocation9 + $0xa8] sm:$0xf]
    %v198 = vld [vmem:[#allocation9 + $0xac] sm:$0xf]
    %v199 = vld [vmem:[#allocation9 + $0xb0] sm:$0xf]
    %v200 = vld [vmem:[#allocation9 + $0xb4] sm:$0xf]
    %v201 = vld [vmem:[#allocation9 + $0xb8] sm:$0xf]
    %v202 = vld [vmem:[#allocation9 + $0xbc] sm:$0xf]
    %v203 = vpack.c.bf16 %v150, %v145
    %v204 = vpack.c.bf16 %v152, %v147
    %v205 = vpack.c.bf16 %v154, %v149
    %v206 = vld [vmem:[%s2] sm:$0x1]
    %v207 = vlaneseq
    %v208 = vshrl.u32 %v207, 7
    %v209 = vsub.s32 0, %v208
    %v210 = vrot.slane %v206, %v209
    %v259 = vunpack.c.l.b16 %v155
    %v260 = vunpack.c.l.b16 %v156
    %v261 = vunpack.c.l.b16 %v157
    %v262 = vunpack.c.l.b16 %v158
    %v263 = vunpack.c.l.b16 %v159
    %v264 = vunpack.c.l.b16 %v160
    %v265 = vunpack.c.l.b16 %v161
    %v266 = vunpack.c.l.b16 %v162
    %v267 = vunpack.c.l.b16 %v163
    %v268 = vunpack.c.l.b16 %v164
    %v269 = vunpack.c.l.b16 %v165
    %v270 = vunpack.c.l.b16 %v166
    %v271 = vunpack.c.l.b16 %v167
    %v272 = vunpack.c.l.b16 %v168
    %v273 = vunpack.c.l.b16 %v169
    %v274 = vunpack.c.l.b16 %v170
    %v275 = vunpack.c.l.b16 %v171
    %v276 = vunpack.c.l.b16 %v172
    %v277 = vunpack.c.l.b16 %v173
    %v278 = vunpack.c.l.b16 %v174
    %v279 = vunpack.c.l.b16 %v175
    %v280 = vunpack.c.l.b16 %v176
    %v281 = vunpack.c.l.b16 %v177
    %v282 = vunpack.c.l.b16 %v178
    %v283 = vunpack.c.l.b16 %v179
    %v284 = vunpack.c.l.b16 %v180
    %v285 = vunpack.c.l.b16 %v181
    %v286 = vunpack.c.l.b16 %v182
    %v287 = vunpack.c.l.b16 %v183
    %v288 = vunpack.c.l.b16 %v184
    %v289 = vunpack.c.l.b16 %v185
    %v290 = vunpack.c.l.b16 %v186
    %v291 = vunpack.c.l.b16 %v187
    %v292 = vunpack.c.l.b16 %v188
    %v293 = vunpack.c.l.b16 %v189
    %v294 = vunpack.c.l.b16 %v190
    %v295 = vunpack.c.l.b16 %v191
    %v296 = vunpack.c.l.b16 %v192
    %v297 = vunpack.c.l.b16 %v193
    %v298 = vunpack.c.l.b16 %v194
    %v299 = vunpack.c.l.b16 %v195
    %v300 = vunpack.c.l.b16 %v196
    %v301 = vunpack.c.l.b16 %v197
    %v302 = vunpack.c.l.b16 %v198
    %v303 = vunpack.c.l.b16 %v199
    %v304 = vunpack.c.l.b16 %v200
    %v305 = vunpack.c.l.b16 %v201
    %v306 = vunpack.c.l.b16 %v202
    %v307 = vpack.c.b16 %v260, %v259
    %v308 = vpack.c.b16 %v262, %v261
    %v309 = vpack.c.b16 %v264, %v263
    %v310 = vpack.c.b16 %v266, %v265
    %v311 = vpack.c.b16 %v268, %v267
    %v312 = vpack.c.b16 %v270, %v269
    %v313 = vpack.c.b16 %v272, %v271
    %v314 = vpack.c.b16 %v274, %v273
    %v315 = vpack.c.b16 %v276, %v275
    %v316 = vpack.c.b16 %v278, %v277
    %v317 = vpack.c.b16 %v280, %v279
    %v318 = vpack.c.b16 %v282, %v281
    %v319 = vpack.c.b16 %v284, %v283
    %v320 = vpack.c.b16 %v286, %v285
    %v321 = vpack.c.b16 %v288, %v287
    %v322 = vpack.c.b16 %v290, %v289
    %v323 = vpack.c.b16 %v292, %v291
    %v324 = vpack.c.b16 %v294, %v293
    %v325 = vpack.c.b16 %v296, %v295
    %v326 = vpack.c.b16 %v298, %v297
    %v327 = vpack.c.b16 %v300, %v299
    %v328 = vpack.c.b16 %v302, %v301
    %v329 = vpack.c.b16 %v304, %v303
    %v330 = vpack.c.b16 %v306, %v305
    %355 = vmatprep.subr.bf16.mxu0 0
    %356 = vmatpush1.bf16.msra.mxu0 %v307
    %357 = vmatprep.subr.bf16.mxu0 0
    %358 = vmatpush1.bf16.msra.mxu0 %v308
    %359 = vmatprep.subr.bf16.mxu0 0
    %360 = vmatpush1.bf16.msra.mxu0 %v309
    %361 = vmatprep.subr.bf16.mxu0 0
    %362 = vmatpush1.bf16.msra.mxu0 %v310
    %363 = vmatprep.subr.bf16.mxu0 0
    %364 = vmatpush1.bf16.msra.mxu0 %v311
    %365 = vmatprep.subr.bf16.mxu0 0
    %366 = vmatpush1.bf16.msra.mxu0 %v312
    %367 = vmatprep.subr.bf16.mxu0 0
    %368 = vmatpush1.bf16.msra.mxu0 %v313
    %369 = vmatprep.subr.bf16.mxu0 0
    %370 = vmatpush1.bf16.msra.mxu0 %v314
    %371 = vmatprep.subr.bf16.mxu0 0
    %372 = vmatpush1.bf16.msra.mxu0 %v315
    %373 = vmatprep.subr.bf16.mxu0 0
    %374 = vmatpush1.bf16.msra.mxu0 %v316
    %375 = vmatprep.subr.bf16.mxu0 0
    %376 = vmatpush1.bf16.msra.mxu0 %v317
    %377 = vmatprep.subr.bf16.mxu0 0
    %378 = vmatpush1.bf16.msra.mxu0 %v318
    %379 = vmatprep.subr.bf16.mxu0 0
    %380 = vmatpush1.bf16.msra.mxu0 %v319
    %381 = vmatprep.subr.bf16.mxu0 0
    %382 = vmatpush1.bf16.msra.mxu0 %v320
    %383 = vmatprep.subr.bf16.mxu0 0
    %384 = vmatpush1.bf16.msra.mxu0 %v321
    %385 = vmatprep.subr.bf16.mxu0 0
    %386 = vmatpush1.bf16.msra.mxu0 %v322
    %387 = vmatprep.mubr.bf16.mxu0 %v204
    %388 = vmatmul.mubr.bf16.gmra.mrb[0].mxu0 %v203
    %v389 = vpop.f32.mrb[0].mxu0
    %v390 = vadd.f32 %v210, %v389
    %v391 = vpop.f32.mrb[0].mxu0
    %v392 = vpop.f32.mrb[0].mxu0
    %v393 = vadd.f32 %v210, %v392
    %v394 = vpop.f32.mrb[0].mxu0
    %395 = vdwg.mxu0
    %396 = vmatprep.subr.bf16.mxu0 0
    %397 = vmatpush1.bf16.msra.mxu0 %v323
    %398 = vmatprep.subr.bf16.mxu0 0
    %399 = vmatpush1.bf16.msra.mxu0 %v324
    %400 = vmatprep.subr.bf16.mxu0 0
    %401 = vmatpush1.bf16.msra.mxu0 %v325
    %402 = vmatprep.subr.bf16.mxu0 0
    %403 = vmatpush1.bf16.msra.mxu0 %v326
    %404 = vmatprep.subr.bf16.mxu0 0
    %405 = vmatpush1.bf16.msra.mxu0 %v327
    %406 = vmatprep.subr.bf16.mxu0 0
    %407 = vmatpush1.bf16.msra.mxu0 %v328
    %408 = vmatprep.subr.bf16.mxu0 0
    %409 = vmatpush1.bf16.msra.mxu0 %v329
    %410 = vmatprep.subr.bf16.mxu0 0
    %411 = vmatpush1.bf16.msra.mxu0 %v330
    %412 = vmatprep.subr.bf16.mxu0 0
    %413 = vmatpush1.bf16.msra.mxu0 0
    %414 = vmatprep.subr.bf16.mxu0 0
    %415 = vmatpush1.bf16.msra.mxu0 0
    %416 = vmatprep.subr.bf16.mxu0 0
    %417 = vmatpush1.bf16.msra.mxu0 0
    %418 = vmatprep.subr.bf16.mxu0 0
    %419 = vmatpush1.bf16.msra.mxu0 0
    %420 = vmatprep.subr.bf16.mxu0 0
    %421 = vmatpush1.bf16.msra.mxu0 0
    %422 = vmatprep.subr.bf16.mxu0 0
    %423 = vmatpush1.bf16.msra.mxu0 0
    %424 = vmatprep.subr.bf16.mxu0 0
    %425 = vmatpush1.bf16.msra.mxu0 0
    %426 = vmatprep.subr.bf16.mxu0 0
    %427 = vmatpush1.bf16.msra.mxu0 0
    %428 = vmatprep.mubr.bf16.mxu0 0
    %429 = vmatmul.mubr.bf16.gmra.mrb[0].mxu0 %v205
    %v430 = vpop.f32.mrb[0].mxu0
    %v431 = vadd.f32 %v390, %v430
    %v432 = vpop.f32.mrb[0].mxu0
    %v433 = vpop.f32.mrb[0].mxu0
    %v434 = vadd.f32 %v393, %v433
    %v435 = vpop.f32.mrb[0].mxu0
    %436 = vdwg.mxu0
    %v437 = vmul.f32 %v431, 0.2
    %v438 = vmul.f32 %v434, 0.2
    %v439 = vmax.f32 %v431, %v437
    %v440 = vmax.f32 %v434, %v438
    %441 = vst [vmem:[#allocation3] sm:$0xff] 0.0
    %442 = vst [vmem:[#allocation3 + $0x8] sm:$0x3] 0.0
    %443 = vst [vmem:[#allocation3 + $0x10] sm:$0xff] 0.0
    %444 = vst [vmem:[#allocation3 + $0x18] sm:$0x3] 0.0
    %445 = vst [vmem:[#allocation3 + $0x1] sm:$0xff] %v439
    %s446 = scalar_lea.vmem [#allocation3], 16
    %447 = vst [vmem:[%s446 + $0x1] sm:$0xff] %v440
    %v448 = vld [vmem:[#allocation3] ss:$2 sm:$0xf]
    %s449 = scalar_lea.vmem [#allocation3], 1
    %v450 = vld [vmem:[%s449] ss:$2 sm:$0xf]
    %s451 = scalar_lea.vmem [#allocation3], 2
    %v452 = vld [vmem:[%s451] ss:$2 sm:$0xf]
    %v453 = vld [vmem:[%s446] ss:$2 sm:$0xf]
    %s454 = scalar_lea.vmem %s446, 1 [#allocation3]
    %v455 = vld [vmem:[%s454] ss:$2 sm:$0xf]
    %s456 = scalar_lea.vmem %s446, 2 [#allocation3]
    %v457 = vld [vmem:[%s456] ss:$2 sm:$0xf]
    %v461 = vrot.slane %v453, 4
    %v462 = vrot.slane %v455, 4
    %v463 = vrot.slane %v457, 4
    %vm467 = vcmask 1043456
    %v468 = vsel %vm467, %v448, %v461
    %v469 = vsel %vm467, %v450, %v462
    %v470 = vsel %vm467, %v452, %v463
    %v471 = vld [vmem:[#allocation9 + $0xc0] sm:$0xf]
    %v472 = vld [vmem:[#allocation9 + $0xc4] sm:$0xf]
    %v473 = vld [vmem:[#allocation9 + $0xc8] sm:$0xf]
    %v474 = vld [vmem:[#allocation9 + $0xcc] sm:$0xf]
    %v475 = vld [vmem:[#allocation9 + $0xd0] sm:$0xf]
    %v476 = vld [vmem:[#allocation9 + $0xd4] sm:$0xf]
    %v477 = vld [vmem:[#allocation9 + $0xd8] sm:$0xf]
    %v478 = vld [vmem:[#allocation9 + $0xdc] sm:$0xf]
    %v479 = vld [vmem:[#allocation9 + $0xe0] sm:$0xf]
    %v480 = vld [vmem:[#allocation9 + $0xe4] sm:$0xf]
    %v481 = vld [vmem:[#allocation9 + $0xe8] sm:$0xf]
    %v482 = vld [vmem:[#allocation9 + $0xec] sm:$0xf]
    %v483 = vld [vmem:[#allocation9 + $0xf0] sm:$0xf]
    %v484 = vld [vmem:[#allocation9 + $0xf4] sm:$0xf]
    %v485 = vld [vmem:[#allocation9 + $0xf8] sm:$0xf]
    %v486 = vld [vmem:[#allocation9 + $0xfc] sm:$0xf]
    %v487 = vld [vmem:[#allocation9 + $0x100] sm:$0xf]
    %v488 = vld [vmem:[#allocation9 + $0x104] sm:$0xf]
    %v489 = vld [vmem:[#allocation9 + $0x108] sm:$0xf]
    %v490 = vld [vmem:[#allocation9 + $0x10c] sm:$0xf]
    %v491 = vld [vmem:[#allocation9 + $0x110] sm:$0xf]
    %v492 = vld [vmem:[#allocation9 + $0x114] sm:$0xf]
    %v493 = vld [vmem:[#allocation9 + $0x118] sm:$0xf]
    %v494 = vld [vmem:[#allocation9 + $0x11c] sm:$0xf]
    %v495 = vld [vmem:[#allocation9 + $0x120] sm:$0xf]
    %v496 = vld [vmem:[#allocation9 + $0x124] sm:$0xf]
    %v497 = vld [vmem:[#allocation9 + $0x128] sm:$0xf]
    %v498 = vld [vmem:[#allocation9 + $0x12c] sm:$0xf]
    %v499 = vld [vmem:[#allocation9 + $0x130] sm:$0xf]
    %v500 = vld [vmem:[#allocation9 + $0x134] sm:$0xf]
    %v501 = vld [vmem:[#allocation9 + $0x138] sm:$0xf]
    %v502 = vld [vmem:[#allocation9 + $0x13c] sm:$0xf]
    %v503 = vld [vmem:[#allocation9 + $0x140] sm:$0xf]
    %v504 = vld [vmem:[#allocation9 + $0x144] sm:$0xf]
    %v505 = vld [vmem:[#allocation9 + $0x148] sm:$0xf]
    %v506 = vld [vmem:[#allocation9 + $0x14c] sm:$0xf]
    %v507 = vld [vmem:[#allocation9 + $0x150] sm:$0xf]
    %v508 = vld [vmem:[#allocation9 + $0x154] sm:$0xf]
    %v509 = vld [vmem:[#allocation9 + $0x158] sm:$0xf]
    %v510 = vld [vmem:[#allocation9 + $0x15c] sm:$0xf]
    %v511 = vld [vmem:[#allocation9 + $0x160] sm:$0xf]
    %v512 = vld [vmem:[#allocation9 + $0x164] sm:$0xf]
    %v513 = vld [vmem:[#allocation9 + $0x168] sm:$0xf]
    %v514 = vld [vmem:[#allocation9 + $0x16c] sm:$0xf]
    %v515 = vld [vmem:[#allocation9 + $0x170] sm:$0xf]
    %v516 = vld [vmem:[#allocation9 + $0x174] sm:$0xf]
    %v517 = vld [vmem:[#allocation9 + $0x178] sm:$0xf]
    %v518 = vld [vmem:[#allocation9 + $0x17c] sm:$0xf]
    %v519 = vpack.c.bf16 %v468, %v468
    %v520 = vpack.c.bf16 %v469, %v469
    %v521 = vpack.c.bf16 %v470, %v470
    %v522 = vld [vmem:[%s2 + $0x1] sm:$0x1]
    %v523 = vlaneseq
    %v524 = vshrl.u32 %v523, 7
    %v525 = vsub.s32 0, %v524
    %v526 = vrot.slane %v522, %v525
    %v575 = vunpack.c.l.b16 %v471
    %v576 = vunpack.c.l.b16 %v472
    %v577 = vunpack.c.l.b16 %v473
    %v578 = vunpack.c.l.b16 %v474
    %v579 = vunpack.c.l.b16 %v475
    %v580 = vunpack.c.l.b16 %v476
    %v581 = vunpack.c.l.b16 %v477
    %v582 = vunpack.c.l.b16 %v478
    %v583 = vunpack.c.l.b16 %v479
    %v584 = vunpack.c.l.b16 %v480
    %v585 = vunpack.c.l.b16 %v481
    %v586 = vunpack.c.l.b16 %v482
    %v587 = vunpack.c.l.b16 %v483
    %v588 = vunpack.c.l.b16 %v484
    %v589 = vunpack.c.l.b16 %v485
    %v590 = vunpack.c.l.b16 %v486
    %v591 = vunpack.c.l.b16 %v487
    %v592 = vunpack.c.l.b16 %v488
    %v593 = vunpack.c.l.b16 %v489
    %v594 = vunpack.c.l.b16 %v490
    %v595 = vunpack.c.l.b16 %v491
    %v596 = vunpack.c.l.b16 %v492
    %v597 = vunpack.c.l.b16 %v493
    %v598 = vunpack.c.l.b16 %v494
    %v599 = vunpack.c.l.b16 %v495
    %v600 = vunpack.c.l.b16 %v496
    %v601 = vunpack.c.l.b16 %v497
    %v602 = vunpack.c.l.b16 %v498
    %v603 = vunpack.c.l.b16 %v499
    %v604 = vunpack.c.l.b16 %v500
    %v605 = vunpack.c.l.b16 %v501
    %v606 = vunpack.c.l.b16 %v502
    %v607 = vunpack.c.l.b16 %v503
    %v608 = vunpack.c.l.b16 %v504
    %v609 = vunpack.c.l.b16 %v505
    %v610 = vunpack.c.l.b16 %v506
    %v611 = vunpack.c.l.b16 %v507
    %v612 = vunpack.c.l.b16 %v508
    %v613 = vunpack.c.l.b16 %v509
    %v614 = vunpack.c.l.b16 %v510
    %v615 = vunpack.c.l.b16 %v511
    %v616 = vunpack.c.l.b16 %v512
    %v617 = vunpack.c.l.b16 %v513
    %v618 = vunpack.c.l.b16 %v514
    %v619 = vunpack.c.l.b16 %v515
    %v620 = vunpack.c.l.b16 %v516
    %v621 = vunpack.c.l.b16 %v517
    %v622 = vunpack.c.l.b16 %v518
    %v623 = vpack.c.b16 %v576, %v575
    %v624 = vpack.c.b16 %v578, %v577
    %v625 = vpack.c.b16 %v580, %v579
    %v626 = vpack.c.b16 %v582, %v581
    %v627 = vpack.c.b16 %v584, %v583
    %v628 = vpack.c.b16 %v586, %v585
    %v629 = vpack.c.b16 %v588, %v587
    %v630 = vpack.c.b16 %v590, %v589
    %v631 = vpack.c.b16 %v592, %v591
    %v632 = vpack.c.b16 %v594, %v593
    %v633 = vpack.c.b16 %v596, %v595
    %v634 = vpack.c.b16 %v598, %v597
    %v635 = vpack.c.b16 %v600, %v599
    %v636 = vpack.c.b16 %v602, %v601
    %v637 = vpack.c.b16 %v604, %v603
    %v638 = vpack.c.b16 %v606, %v605
    %v639 = vpack.c.b16 %v608, %v607
    %v640 = vpack.c.b16 %v610, %v609
    %v641 = vpack.c.b16 %v612, %v611
    %v642 = vpack.c.b16 %v614, %v613
    %v643 = vpack.c.b16 %v616, %v615
    %v644 = vpack.c.b16 %v618, %v617
    %v645 = vpack.c.b16 %v620, %v619
    %v646 = vpack.c.b16 %v622, %v621
    %671 = vmatprep.subr.bf16.mxu0 0
    %672 = vmatpush1.bf16.msra.mxu0 %v623
    %673 = vmatprep.subr.bf16.mxu0 0
    %674 = vmatpush1.bf16.msra.mxu0 %v624
    %675 = vmatprep.subr.bf16.mxu0 0
    %676 = vmatpush1.bf16.msra.mxu0 %v625
    %677 = vmatprep.subr.bf16.mxu0 0
    %678 = vmatpush1.bf16.msra.mxu0 %v626
    %679 = vmatprep.subr.bf16.mxu0 0
    %680 = vmatpush1.bf16.msra.mxu0 %v627
    %681 = vmatprep.subr.bf16.mxu0 0
    %682 = vmatpush1.bf16.msra.mxu0 %v628
    %683 = vmatprep.subr.bf16.mxu0 0
    %684 = vmatpush1.bf16.msra.mxu0 %v629
    %685 = vmatprep.subr.bf16.mxu0 0
    %686 = vmatpush1.bf16.msra.mxu0 %v630
    %687 = vmatprep.subr.bf16.mxu0 0
    %688 = vmatpush1.bf16.msra.mxu0 %v631
    %689 = vmatprep.subr.bf16.mxu0 0
    %690 = vmatpush1.bf16.msra.mxu0 %v632
    %691 = vmatprep.subr.bf16.mxu0 0
    %692 = vmatpush1.bf16.msra.mxu0 %v633
    %693 = vmatprep.subr.bf16.mxu0 0
    %694 = vmatpush1.bf16.msra.mxu0 %v634
    %695 = vmatprep.subr.bf16.mxu0 0
    %696 = vmatpush1.bf16.msra.mxu0 %v635
    %697 = vmatprep.subr.bf16.mxu0 0
    %698 = vmatpush1.bf16.msra.mxu0 %v636
    %699 = vmatprep.subr.bf16.mxu0 0
    %700 = vmatpush1.bf16.msra.mxu0 %v637
    %701 = vmatprep.subr.bf16.mxu0 0
    %702 = vmatpush1.bf16.msra.mxu0 %v638
    %703 = vmatprep.mubr.bf16.mxu0 %v520
    %704 = vmatmul.mubr.bf16.gmra.mrb[0].mxu0 %v519
    %v705 = vpop.f32.mrb[0].mxu0
    %v706 = vadd.f32 %v526, %v705
    %v707 = vpop.f32.mrb[0].mxu0
    %v708 = vpop.f32.mrb[0].mxu0
    %v709 = vpop.f32.mrb[0].mxu0
    %710 = vdwg.mxu0
    %711 = vmatprep.subr.bf16.mxu0 0
    %712 = vmatpush1.bf16.msra.mxu0 %v639
    %713 = vmatprep.subr.bf16.mxu0 0
    %714 = vmatpush1.bf16.msra.mxu0 %v640
    %715 = vmatprep.subr.bf16.mxu0 0
    %716 = vmatpush1.bf16.msra.mxu0 %v641
    %717 = vmatprep.subr.bf16.mxu0 0
    %718 = vmatpush1.bf16.msra.mxu0 %v642
    %719 = vmatprep.subr.bf16.mxu0 0
    %720 = vmatpush1.bf16.msra.mxu0 %v643
    %721 = vmatprep.subr.bf16.mxu0 0
    %722 = vmatpush1.bf16.msra.mxu0 %v644
    %723 = vmatprep.subr.bf16.mxu0 0
    %724 = vmatpush1.bf16.msra.mxu0 %v645
    %725 = vmatprep.subr.bf16.mxu0 0
    %726 = vmatpush1.bf16.msra.mxu0 %v646
    %727 = vmatprep.subr.bf16.mxu0 0
    %728 = vmatpush1.bf16.msra.mxu0 0
    %729 = vmatprep.subr.bf16.mxu0 0
    %730 = vmatpush1.bf16.msra.mxu0 0
    %731 = vmatprep.subr.bf16.mxu0 0
    %732 = vmatpush1.bf16.msra.mxu0 0
    %733 = vmatprep.subr.bf16.mxu0 0
    %734 = vmatpush1.bf16.msra.mxu0 0
    %735 = vmatprep.subr.bf16.mxu0 0
    %736 = vmatpush1.bf16.msra.mxu0 0
    %737 = vmatprep.subr.bf16.mxu0 0
    %738 = vmatpush1.bf16.msra.mxu0 0
    %739 = vmatprep.subr.bf16.mxu0 0
    %740 = vmatpush1.bf16.msra.mxu0 0
    %741 = vmatprep.subr.bf16.mxu0 0
    %742 = vmatpush1.bf16.msra.mxu0 0
    %743 = vmatprep.mubr.bf16.mxu0 0
    %744 = vmatmul.mubr.bf16.gmra.mrb[0].mxu0 %v521
    %v745 = vpop.f32.mrb[0].mxu0
    %v746 = vadd.f32 %v706, %v745
    %v747 = vpop.f32.mrb[0].mxu0
    %v748 = vpop.f32.mrb[0].mxu0
    %v749 = vpop.f32.mrb[0].mxu0
    %750 = vdwg.mxu0
    %v751 = vmul.f32 %v746, 0.2
    %v752 = vmax.f32 %v746, %v751
    %v753 = vld [vmem:[%s2 + $0x4] sm:$0x1]
    %v754 = vlaneseq
    %v755 = vshrl.u32 %v754, 7
    %v756 = vsub.s32 0, %v755
    %v757 = vrot.slane %v753, %v756
    %v758 = vadd.f32 %v752, %v757
    %759 = vst [vmem:[#allocation4] sm:$0x3f] 0.0
    %760 = vst [vmem:[#allocation4 + $0x8] sm:$0x3f] 0.0
    %761 = vst [vmem:[#allocation4 + $0x1] sm:$0xf] %v758
    %s762 = scalar_lea.vmem [#allocation4], 8
    %763 = vst [vmem:[%s762 - $0x3] sm:$0xf0] %v758
    %v764 = vld [vmem:[#allocation4] ss:$2 sm:$0x3]
    %s765 = scalar_lea.vmem [#allocation4], 1
    %v766 = vld [vmem:[%s765] ss:$2 sm:$0x3]
    %s767 = scalar_lea.vmem [#allocation4], 2
    %v768 = vld [vmem:[%s767] ss:$2 sm:$0x3]
    %v769 = vld [vmem:[%s762] ss:$2 sm:$0x3]
    %s770 = scalar_lea.vmem %s762, 1 [#allocation4]
    %v771 = vld [vmem:[%s770] ss:$2 sm:$0x3]
    %s772 = scalar_lea.vmem %s762, 2 [#allocation4]
    %v773 = vld [vmem:[%s772] ss:$2 sm:$0x3]
    %v777 = vrot.slane %v769, 6
    %v778 = vrot.slane %v771, 6
    %v779 = vrot.slane %v773, 6
    %vm783 = vcmask 1041408
    %v784 = vsel %vm783, %v764, %v777
    %v785 = vsel %vm783, %v766, %v778
    %v786 = vsel %vm783, %v768, %v779
    %v787 = vld [vmem:[#allocation9 + $0x180] sm:$0xf]
    %v788 = vld [vmem:[#allocation9 + $0x184] sm:$0xf]
    %v789 = vld [vmem:[#allocation9 + $0x188] sm:$0xf]
    %v790 = vld [vmem:[#allocation9 + $0x18c] sm:$0xf]
    %v791 = vld [vmem:[#allocation9 + $0x190] sm:$0xf]
    %v792 = vld [vmem:[#allocation9 + $0x194] sm:$0xf]
    %v793 = vld [vmem:[#allocation9 + $0x198] sm:$0xf]
    %v794 = vld [vmem:[#allocation9 + $0x19c] sm:$0xf]
    %v795 = vld [vmem:[#allocation9 + $0x1a0] sm:$0xf]
    %v796 = vld [vmem:[#allocation9 + $0x1a4] sm:$0xf]
    %v797 = vld [vmem:[#allocation9 + $0x1a8] sm:$0xf]
    %v798 = vld [vmem:[#allocation9 + $0x1ac] sm:$0xf]
    %v799 = vld [vmem:[#allocation9 + $0x1b0] sm:$0xf]
    %v800 = vld [vmem:[#allocation9 + $0x1b4] sm:$0xf]
    %v801 = vld [vmem:[#allocation9 + $0x1b8] sm:$0xf]
    %v802 = vld [vmem:[#allocation9 + $0x1bc] sm:$0xf]
    %v803 = vld [vmem:[#allocation9 + $0x1c0] sm:$0xf]
    %v804 = vld [vmem:[#allocation9 + $0x1c4] sm:$0xf]
    %v805 = vld [vmem:[#allocation9 + $0x1c8] sm:$0xf]
    %v806 = vld [vmem:[#allocation9 + $0x1cc] sm:$0xf]
    %v807 = vld [vmem:[#allocation9 + $0x1d0] sm:$0xf]
    %v808 = vld [vmem:[#allocation9 + $0x1d4] sm:$0xf]
    %v809 = vld [vmem:[#allocation9 + $0x1d8] sm:$0xf]
    %v810 = vld [vmem:[#allocation9 + $0x1dc] sm:$0xf]
    %v811 = vld [vmem:[#allocation9 + $0x1e0] sm:$0xf]
    %v812 = vld [vmem:[#allocation9 + $0x1e4] sm:$0xf]
    %v813 = vld [vmem:[#allocation9 + $0x1e8] sm:$0xf]
    %v814 = vld [vmem:[#allocation9 + $0x1ec] sm:$0xf]
    %v815 = vld [vmem:[#allocation9 + $0x1f0] sm:$0xf]
    %v816 = vld [vmem:[#allocation9 + $0x1f4] sm:$0xf]
    %v817 = vld [vmem:[#allocation9 + $0x1f8] sm:$0xf]
    %v818 = vld [vmem:[#allocation9 + $0x1fc] sm:$0xf]
    %v819 = vld [vmem:[#allocation9 + $0x200] sm:$0xf]
    %v820 = vld [vmem:[#allocation9 + $0x204] sm:$0xf]
    %v821 = vld [vmem:[#allocation9 + $0x208] sm:$0xf]
    %v822 = vld [vmem:[#allocation9 + $0x20c] sm:$0xf]
    %v823 = vld [vmem:[#allocation9 + $0x210] sm:$0xf]
    %v824 = vld [vmem:[#allocation9 + $0x214] sm:$0xf]
    %v825 = vld [vmem:[#allocation9 + $0x218] sm:$0xf]
    %v826 = vld [vmem:[#allocation9 + $0x21c] sm:$0xf]
    %v827 = vld [vmem:[#allocation9 + $0x220] sm:$0xf]
    %v828 = vld [vmem:[#allocation9 + $0x224] sm:$0xf]
    %v829 = vld [vmem:[#allocation9 + $0x228] sm:$0xf]
    %v830 = vld [vmem:[#allocation9 + $0x22c] sm:$0xf]
    %v831 = vld [vmem:[#allocation9 + $0x230] sm:$0xf]
    %v832 = vld [vmem:[#allocation9 + $0x234] sm:$0xf]
    %v833 = vld [vmem:[#allocation9 + $0x238] sm:$0xf]
    %v834 = vld [vmem:[#allocation9 + $0x23c] sm:$0xf]
    %v835 = vpack.c.bf16 %v784, %v784
    %v836 = vpack.c.bf16 %v785, %v785
    %v837 = vpack.c.bf16 %v786, %v786
    %v838 = vld [vmem:[%s2 + $0x2] sm:$0x1]
    %v839 = vlaneseq
    %v840 = vshrl.u32 %v839, 7
    %v841 = vsub.s32 0, %v840
    %v842 = vrot.slane %v838, %v841
    %v891 = vunpack.c.l.b16 %v787
    %v892 = vunpack.c.l.b16 %v788
    %v893 = vunpack.c.l.b16 %v789
    %v894 = vunpack.c.l.b16 %v790
    %v895 = vunpack.c.l.b16 %v791
    %v896 = vunpack.c.l.b16 %v792
    %v897 = vunpack.c.l.b16 %v793
    %v898 = vunpack.c.l.b16 %v794
    %v899 = vunpack.c.l.b16 %v795
    %v900 = vunpack.c.l.b16 %v796
    %v901 = vunpack.c.l.b16 %v797
    %v902 = vunpack.c.l.b16 %v798
    %v903 = vunpack.c.l.b16 %v799
    %v904 = vunpack.c.l.b16 %v800
    %v905 = vunpack.c.l.b16 %v801
    %v906 = vunpack.c.l.b16 %v802
    %v907 = vunpack.c.l.b16 %v803
    %v908 = vunpack.c.l.b16 %v804
    %v909 = vunpack.c.l.b16 %v805
    %v910 = vunpack.c.l.b16 %v806
    %v911 = vunpack.c.l.b16 %v807
    %v912 = vunpack.c.l.b16 %v808
    %v913 = vunpack.c.l.b16 %v809
    %v914 = vunpack.c.l.b16 %v810
    %v915 = vunpack.c.l.b16 %v811
    %v916 = vunpack.c.l.b16 %v812
    %v917 = vunpack.c.l.b16 %v813
    %v918 = vunpack.c.l.b16 %v814
    %v919 = vunpack.c.l.b16 %v815
    %v920 = vunpack.c.l.b16 %v816
    %v921 = vunpack.c.l.b16 %v817
    %v922 = vunpack.c.l.b16 %v818
    %v923 = vunpack.c.l.b16 %v819
    %v924 = vunpack.c.l.b16 %v820
    %v925 = vunpack.c.l.b16 %v821
    %v926 = vunpack.c.l.b16 %v822
    %v927 = vunpack.c.l.b16 %v823
    %v928 = vunpack.c.l.b16 %v824
    %v929 = vunpack.c.l.b16 %v825
    %v930 = vunpack.c.l.b16 %v826
    %v931 = vunpack.c.l.b16 %v827
    %v932 = vunpack.c.l.b16 %v828
    %v933 = vunpack.c.l.b16 %v829
    %v934 = vunpack.c.l.b16 %v830
    %v935 = vunpack.c.l.b16 %v831
    %v936 = vunpack.c.l.b16 %v832
    %v937 = vunpack.c.l.b16 %v833
    %v938 = vunpack.c.l.b16 %v834
    %v939 = vpack.c.b16 %v892, %v891
    %v940 = vpack.c.b16 %v894, %v893
    %v941 = vpack.c.b16 %v896, %v895
    %v942 = vpack.c.b16 %v898, %v897
    %v943 = vpack.c.b16 %v900, %v899
    %v944 = vpack.c.b16 %v902, %v901
    %v945 = vpack.c.b16 %v904, %v903
    %v946 = vpack.c.b16 %v906, %v905
    %v947 = vpack.c.b16 %v908, %v907
    %v948 = vpack.c.b16 %v910, %v909
    %v949 = vpack.c.b16 %v912, %v911
    %v950 = vpack.c.b16 %v914, %v913
    %v951 = vpack.c.b16 %v916, %v915
    %v952 = vpack.c.b16 %v918, %v917
    %v953 = vpack.c.b16 %v920, %v919
    %v954 = vpack.c.b16 %v922, %v921
    %v955 = vpack.c.b16 %v924, %v923
    %v956 = vpack.c.b16 %v926, %v925
    %v957 = vpack.c.b16 %v928, %v927
    %v958 = vpack.c.b16 %v930, %v929
    %v959 = vpack.c.b16 %v932, %v931
    %v960 = vpack.c.b16 %v934, %v933
    %v961 = vpack.c.b16 %v936, %v935
    %v962 = vpack.c.b16 %v938, %v937
    %987 = vmatprep.subr.bf16.mxu0 0
    %988 = vmatpush1.bf16.msra.mxu0 %v939
    %989 = vmatprep.subr.bf16.mxu0 0
    %990 = vmatpush1.bf16.msra.mxu0 %v940
    %991 = vmatprep.subr.bf16.mxu0 0
    %992 = vmatpush1.bf16.msra.mxu0 %v941
    %993 = vmatprep.subr.bf16.mxu0 0
    %994 = vmatpush1.bf16.msra.mxu0 %v942
    %995 = vmatprep.subr.bf16.mxu0 0
    %996 = vmatpush1.bf16.msra.mxu0 %v943
    %997 = vmatprep.subr.bf16.mxu0 0
    %998 = vmatpush1.bf16.msra.mxu0 %v944
    %999 = vmatprep.subr.bf16.mxu0 0
    %1000 = vmatpush1.bf16.msra.mxu0 %v945
    %1001 = vmatprep.subr.bf16.mxu0 0
    %1002 = vmatpush1.bf16.msra.mxu0 %v946
    %1003 = vmatprep.subr.bf16.mxu0 0
    %1004 = vmatpush1.bf16.msra.mxu0 %v947
    %1005 = vmatprep.subr.bf16.mxu0 0
    %1006 = vmatpush1.bf16.msra.mxu0 %v948
    %1007 = vmatprep.subr.bf16.mxu0 0
    %1008 = vmatpush1.bf16.msra.mxu0 %v949
    %1009 = vmatprep.subr.bf16.mxu0 0
    %1010 = vmatpush1.bf16.msra.mxu0 %v950
    %1011 = vmatprep.subr.bf16.mxu0 0
    %1012 = vmatpush1.bf16.msra.mxu0 %v951
    %1013 = vmatprep.subr.bf16.mxu0 0
    %1014 = vmatpush1.bf16.msra.mxu0 %v952
    %1015 = vmatprep.subr.bf16.mxu0 0
    %1016 = vmatpush1.bf16.msra.mxu0 %v953
    %1017 = vmatprep.subr.bf16.mxu0 0
    %1018 = vmatpush1.bf16.msra.mxu0 %v954
    %1019 = vmatprep.mubr.bf16.mxu0 %v836
    %1020 = vmatmul.mubr.bf16.gmra.mrb[0].mxu0 %v835
    %v1021 = vpop.f32.mrb[0].mxu0
    %v1022 = vadd.f32 %v842, %v1021
    %v1023 = vpop.f32.mrb[0].mxu0
    %v1024 = vpop.f32.mrb[0].mxu0
    %v1025 = vpop.f32.mrb[0].mxu0
    %1026 = vdwg.mxu0
    %1027 = vmatprep.subr.bf16.mxu0 0
    %1028 = vmatpush1.bf16.msra.mxu0 %v955
    %1029 = vmatprep.subr.bf16.mxu0 0
    %1030 = vmatpush1.bf16.msra.mxu0 %v956
    %1031 = vmatprep.subr.bf16.mxu0 0
    %1032 = vmatpush1.bf16.msra.mxu0 %v957
    %1033 = vmatprep.subr.bf16.mxu0 0
    %1034 = vmatpush1.bf16.msra.mxu0 %v958
    %1035 = vmatprep.subr.bf16.mxu0 0
    %1036 = vmatpush1.bf16.msra.mxu0 %v959
    %1037 = vmatprep.subr.bf16.mxu0 0
    %1038 = vmatpush1.bf16.msra.mxu0 %v960
    %1039 = vmatprep.subr.bf16.mxu0 0
    %1040 = vmatpush1.bf16.msra.mxu0 %v961
    %1041 = vmatprep.subr.bf16.mxu0 0
    %1042 = vmatpush1.bf16.msra.mxu0 %v962
    %1043 = vmatprep.subr.bf16.mxu0 0
    %1044 = vmatpush1.bf16.msra.mxu0 0
    %1045 = vmatprep.subr.bf16.mxu0 0
    %1046 = vmatpush1.bf16.msra.mxu0 0
    %1047 = vmatprep.subr.bf16.mxu0 0
    %1048 = vmatpush1.bf16.msra.mxu0 0
    %1049 = vmatprep.subr.bf16.mxu0 0
    %1050 = vmatpush1.bf16.msra.mxu0 0
    %1051 = vmatprep.subr.bf16.mxu0 0
    %1052 = vmatpush1.bf16.msra.mxu0 0
    %1053 = vmatprep.subr.bf16.mxu0 0
    %1054 = vmatpush1.bf16.msra.mxu0 0
    %1055 = vmatprep.subr.bf16.mxu0 0
    %1056 = vmatpush1.bf16.msra.mxu0 0
    %1057 = vmatprep.subr.bf16.mxu0 0
    %1058 = vmatpush1.bf16.msra.mxu0 0
    %1059 = vmatprep.mubr.bf16.mxu0 0
    %1060 = vmatmul.mubr.bf16.gmra.mrb[0].mxu0 %v837
    %v1061 = vpop.f32.mrb[0].mxu0
    %v1062 = vadd.f32 %v1022, %v1061
    %v1063 = vpop.f32.mrb[0].mxu0
    %v1064 = vpop.f32.mrb[0].mxu0
    %v1065 = vpop.f32.mrb[0].mxu0
    %1066 = vdwg.mxu0
    %v1067 = vmul.f32 %v1062, 0.2
    %v1068 = vmax.f32 %v1062, %v1067
    %v1069 = vld [vmem:[%s2 + $0x5] sm:$0x1]
    %v1070 = vlaneseq
    %v1071 = vshrl.u32 %v1070, 7
    %v1072 = vsub.s32 0, %v1071
    %v1073 = vrot.slane %v1069, %v1072
    %v1074 = vadd.f32 %v1068, %v1073
    %1075 = vst [vmem:[#allocation5] sm:$0xf] 0.0
    %1076 = vst [vmem:[#allocation5 + $0x4] sm:$0xf] 0.0
    %1077 = vst [vmem:[#allocation5 + $0x1] sm:$0x3] %v1074
    %s1078 = scalar_lea.vmem [#allocation5], 4
    %1079 = vst [vmem:[%s1078 - $0x1] sm:$0xc] %v1074
    %v1080 = vld [vmem:[#allocation5] sm:$0x1]
    %v1081 = vld [vmem:[#allocation5 + $0x1] sm:$0x1]
    %v1082 = vld [vmem:[#allocation5 + $0x2] sm:$0x1]
    %v1083 = vld [vmem:[%s1078] sm:$0x1]
    %v1084 = vld [vmem:[%s1078 + $0x1] sm:$0x1]
    %v1085 = vld [vmem:[%s1078 + $0x2] sm:$0x1]
    %v1089 = vrot.slane %v1083, 7
    %v1090 = vrot.slane %v1084, 7
    %v1091 = vrot.slane %v1085, 7
    %vm1095 = vcmask 1040384
    %v1096 = vsel %vm1095, %v1080, %v1089
    %v1097 = vsel %vm1095, %v1081, %v1090
    %v1098 = vsel %vm1095, %v1082, %v1091
    %v1099 = vld [vmem:[#allocation9 + $0x240] sm:$0xf]
    %v1100 = vld [vmem:[#allocation9 + $0x244] sm:$0xf]
    %v1101 = vld [vmem:[#allocation9 + $0x248] sm:$0xf]
    %v1102 = vld [vmem:[#allocation9 + $0x24c] sm:$0xf]
    %v1103 = vld [vmem:[#allocation9 + $0x250] sm:$0xf]
    %v1104 = vld [vmem:[#allocation9 + $0x254] sm:$0xf]
    %v1105 = vld [vmem:[#allocation9 + $0x258] sm:$0xf]
    %v1106 = vld [vmem:[#allocation9 + $0x25c] sm:$0xf]
    %v1107 = vld [vmem:[#allocation9 + $0x260] sm:$0xf]
    %v1108 = vld [vmem:[#allocation9 + $0x264] sm:$0xf]
    %v1109 = vld [vmem:[#allocation9 + $0x268] sm:$0xf]
    %v1110 = vld [vmem:[#allocation9 + $0x26c] sm:$0xf]
    %v1111 = vld [vmem:[#allocation9 + $0x270] sm:$0xf]
    %v1112 = vld [vmem:[#allocation9 + $0x274] sm:$0xf]
    %v1113 = vld [vmem:[#allocation9 + $0x278] sm:$0xf]
    %v1114 = vld [vmem:[#allocation9 + $0x27c] sm:$0xf]
    %v1115 = vld [vmem:[#allocation9 + $0x280] sm:$0xf]
    %v1116 = vld [vmem:[#allocation9 + $0x284] sm:$0xf]
    %v1117 = vld [vmem:[#allocation9 + $0x288] sm:$0xf]
    %v1118 = vld [vmem:[#allocation9 + $0x28c] sm:$0xf]
    %v1119 = vld [vmem:[#allocation9 + $0x290] sm:$0xf]
    %v1120 = vld [vmem:[#allocation9 + $0x294] sm:$0xf]
    %v1121 = vld [vmem:[#allocation9 + $0x298] sm:$0xf]
    %v1122 = vld [vmem:[#allocation9 + $0x29c] sm:$0xf]
    %v1123 = vld [vmem:[#allocation9 + $0x2a0] sm:$0xf]
    %v1124 = vld [vmem:[#allocation9 + $0x2a4] sm:$0xf]
    %v1125 = vld [vmem:[#allocation9 + $0x2a8] sm:$0xf]
    %v1126 = vld [vmem:[#allocation9 + $0x2ac] sm:$0xf]
    %v1127 = vld [vmem:[#allocation9 + $0x2b0] sm:$0xf]
    %v1128 = vld [vmem:[#allocation9 + $0x2b4] sm:$0xf]
    %v1129 = vld [vmem:[#allocation9 + $0x2b8] sm:$0xf]
    %v1130 = vld [vmem:[#allocation9 + $0x2bc] sm:$0xf]
    %v1131 = vld [vmem:[#allocation9 + $0x2c0] sm:$0xf]
    %v1132 = vld [vmem:[#allocation9 + $0x2c4] sm:$0xf]
    %v1133 = vld [vmem:[#allocation9 + $0x2c8] sm:$0xf]
    %v1134 = vld [vmem:[#allocation9 + $0x2cc] sm:$0xf]
    %v1135 = vld [vmem:[#allocation9 + $0x2d0] sm:$0xf]
    %v1136 = vld [vmem:[#allocation9 + $0x2d4] sm:$0xf]
    %v1137 = vld [vmem:[#allocation9 + $0x2d8] sm:$0xf]
    %v1138 = vld [vmem:[#allocation9 + $0x2dc] sm:$0xf]
    %v1139 = vld [vmem:[#allocation9 + $0x2e0] sm:$0xf]
    %v1140 = vld [vmem:[#allocation9 + $0x2e4] sm:$0xf]
    %v1141 = vld [vmem:[#allocation9 + $0x2e8] sm:$0xf]
    %v1142 = vld [vmem:[#allocation9 + $0x2ec] sm:$0xf]
    %v1143 = vld [vmem:[#allocation9 + $0x2f0] sm:$0xf]
    %v1144 = vld [vmem:[#allocation9 + $0x2f4] sm:$0xf]
    %v1145 = vld [vmem:[#allocation9 + $0x2f8] sm:$0xf]
    %v1146 = vld [vmem:[#allocation9 + $0x2fc] sm:$0xf]
    %v1147 = vpack.c.bf16 %v1096, %v1096
    %v1148 = vpack.c.bf16 %v1097, %v1097
    %v1149 = vpack.c.bf16 %v1098, %v1098
    %v1150 = vld [vmem:[%s2 + $0x3] sm:$0x1]
    %v1151 = vlaneseq
    %v1152 = vshrl.u32 %v1151, 7
    %v1153 = vsub.s32 0, %v1152
    %v1154 = vrot.slane %v1150, %v1153
    %v1203 = vunpack.c.l.b16 %v1099
    %v1204 = vunpack.c.l.b16 %v1100
    %v1205 = vunpack.c.l.b16 %v1101
    %v1206 = vunpack.c.l.b16 %v1102
    %v1207 = vunpack.c.l.b16 %v1103
    %v1208 = vunpack.c.l.b16 %v1104
    %v1209 = vunpack.c.l.b16 %v1105
    %v1210 = vunpack.c.l.b16 %v1106
    %v1211 = vunpack.c.l.b16 %v1107
    %v1212 = vunpack.c.l.b16 %v1108
    %v1213 = vunpack.c.l.b16 %v1109
    %v1214 = vunpack.c.l.b16 %v1110
    %v1215 = vunpack.c.l.b16 %v1111
    %v1216 = vunpack.c.l.b16 %v1112
    %v1217 = vunpack.c.l.b16 %v1113
    %v1218 = vunpack.c.l.b16 %v1114
    %v1219 = vunpack.c.l.b16 %v1115
    %v1220 = vunpack.c.l.b16 %v1116
    %v1221 = vunpack.c.l.b16 %v1117
    %v1222 = vunpack.c.l.b16 %v1118
    %v1223 = vunpack.c.l.b16 %v1119
    %v1224 = vunpack.c.l.b16 %v1120
    %v1225 = vunpack.c.l.b16 %v1121
    %v1226 = vunpack.c.l.b16 %v1122
    %v1227 = vunpack.c.l.b16 %v1123
    %v1228 = vunpack.c.l.b16 %v1124
    %v1229 = vunpack.c.l.b16 %v1125
    %v1230 = vunpack.c.l.b16 %v1126
    %v1231 = vunpack.c.l.b16 %v1127
    %v1232 = vunpack.c.l.b16 %v1128
    %v1233 = vunpack.c.l.b16 %v1129
    %v1234 = vunpack.c.l.b16 %v1130
    %v1235 = vunpack.c.l.b16 %v1131
    %v1236 = vunpack.c.l.b16 %v1132
    %v1237 = vunpack.c.l.b16 %v1133
    %v1238 = vunpack.c.l.b16 %v1134
    %v1239 = vunpack.c.l.b16 %v1135
    %v1240 = vunpack.c.l.b16 %v1136
    %v1241 = vunpack.c.l.b16 %v1137
    %v1242 = vunpack.c.l.b16 %v1138
    %v1243 = vunpack.c.l.b16 %v1139
    %v1244 = vunpack.c.l.b16 %v1140
    %v1245 = vunpack.c.l.b16 %v1141
    %v1246 = vunpack.c.l.b16 %v1142
    %v1247 = vunpack.c.l.b16 %v1143
    %v1248 = vunpack.c.l.b16 %v1144
    %v1249 = vunpack.c.l.b16 %v1145
    %v1250 = vunpack.c.l.b16 %v1146
    %v1251 = vpack.c.b16 %v1204, %v1203
    %v1252 = vpack.c.b16 %v1206, %v1205
    %v1253 = vpack.c.b16 %v1208, %v1207
    %v1254 = vpack.c.b16 %v1210, %v1209
    %v1255 = vpack.c.b16 %v1212, %v1211
    %v1256 = vpack.c.b16 %v1214, %v1213
    %v1257 = vpack.c.b16 %v1216, %v1215
    %v1258 = vpack.c.b16 %v1218, %v1217
    %v1259 = vpack.c.b16 %v1220, %v1219
    %v1260 = vpack.c.b16 %v1222, %v1221
    %v1261 = vpack.c.b16 %v1224, %v1223
    %v1262 = vpack.c.b16 %v1226, %v1225
    %v1263 = vpack.c.b16 %v1228, %v1227
    %v1264 = vpack.c.b16 %v1230, %v1229
    %v1265 = vpack.c.b16 %v1232, %v1231
    %v1266 = vpack.c.b16 %v1234, %v1233
    %v1267 = vpack.c.b16 %v1236, %v1235
    %v1268 = vpack.c.b16 %v1238, %v1237
    %v1269 = vpack.c.b16 %v1240, %v1239
    %v1270 = vpack.c.b16 %v1242, %v1241
    %v1271 = vpack.c.b16 %v1244, %v1243
    %v1272 = vpack.c.b16 %v1246, %v1245
    %v1273 = vpack.c.b16 %v1248, %v1247
    %v1274 = vpack.c.b16 %v1250, %v1249
    %1299 = vmatprep.subr.bf16.mxu0 0
    %1300 = vmatpush1.bf16.msra.mxu0 %v1251
    %1301 = vmatprep.subr.bf16.mxu0 0
    %1302 = vmatpush1.bf16.msra.mxu0 %v1252
    %1303 = vmatprep.subr.bf16.mxu0 0
    %1304 = vmatpush1.bf16.msra.mxu0 %v1253
    %1305 = vmatprep.subr.bf16.mxu0 0
    %1306 = vmatpush1.bf16.msra.mxu0 %v1254
    %1307 = vmatprep.subr.bf16.mxu0 0
    %1308 = vmatpush1.bf16.msra.mxu0 %v1255
    %1309 = vmatprep.subr.bf16.mxu0 0
    %1310 = vmatpush1.bf16.msra.mxu0 %v1256
    %1311 = vmatprep.subr.bf16.mxu0 0
    %1312 = vmatpush1.bf16.msra.mxu0 %v1257
    %1313 = vmatprep.subr.bf16.mxu0 0
    %1314 = vmatpush1.bf16.msra.mxu0 %v1258
    %1315 = vmatprep.subr.bf16.mxu0 0
    %1316 = vmatpush1.bf16.msra.mxu0 %v1259
    %1317 = vmatprep.subr.bf16.mxu0 0
    %1318 = vmatpush1.bf16.msra.mxu0 %v1260
    %1319 = vmatprep.subr.bf16.mxu0 0
    %1320 = vmatpush1.bf16.msra.mxu0 %v1261
    %1321 = vmatprep.subr.bf16.mxu0 0
    %1322 = vmatpush1.bf16.msra.mxu0 %v1262
    %1323 = vmatprep.subr.bf16.mxu0 0
    %1324 = vmatpush1.bf16.msra.mxu0 %v1263
    %1325 = vmatprep.subr.bf16.mxu0 0
    %1326 = vmatpush1.bf16.msra.mxu0 %v1264
    %1327 = vmatprep.subr.bf16.mxu0 0
    %1328 = vmatpush1.bf16.msra.mxu0 %v1265
    %1329 = vmatprep.subr.bf16.mxu0 0
    %1330 = vmatpush1.bf16.msra.mxu0 %v1266
    %1331 = vmatprep.mubr.bf16.mxu0 %v1148
    %1332 = vmatmul.mubr.bf16.gmra.mrb[0].mxu0 %v1147
    %v1333 = vpop.f32.mrb[0].mxu0
    %v1334 = vadd.f32 %v1154, %v1333
    %v1335 = vpop.f32.mrb[0].mxu0
    %v1336 = vpop.f32.mrb[0].mxu0
    %v1337 = vpop.f32.mrb[0].mxu0
    %1338 = vdwg.mxu0
    %1339 = vmatprep.subr.bf16.mxu0 0
    %1340 = vmatpush1.bf16.msra.mxu0 %v1267
    %1341 = vmatprep.subr.bf16.mxu0 0
    %1342 = vmatpush1.bf16.msra.mxu0 %v1268
    %1343 = vmatprep.subr.bf16.mxu0 0
    %1344 = vmatpush1.bf16.msra.mxu0 %v1269
    %1345 = vmatprep.subr.bf16.mxu0 0
    %1346 = vmatpush1.bf16.msra.mxu0 %v1270
    %1347 = vmatprep.subr.bf16.mxu0 0
    %1348 = vmatpush1.bf16.msra.mxu0 %v1271
    %1349 = vmatprep.subr.bf16.mxu0 0
    %1350 = vmatpush1.bf16.msra.mxu0 %v1272
    %1351 = vmatprep.subr.bf16.mxu0 0
    %1352 = vmatpush1.bf16.msra.mxu0 %v1273
    %1353 = vmatprep.subr.bf16.mxu0 0
    %1354 = vmatpush1.bf16.msra.mxu0 %v1274
    %1355 = vmatprep.subr.bf16.mxu0 0
    %1356 = vmatpush1.bf16.msra.mxu0 0
    %1357 = vmatprep.subr.bf16.mxu0 0
    %1358 = vmatpush1.bf16.msra.mxu0 0
    %1359 = vmatprep.subr.bf16.mxu0 0
    %1360 = vmatpush1.bf16.msra.mxu0 0
    %1361 = vmatprep.subr.bf16.mxu0 0
    %1362 = vmatpush1.bf16.msra.mxu0 0
    %1363 = vmatprep.subr.bf16.mxu0 0
    %1364 = vmatpush1.bf16.msra.mxu0 0
    %1365 = vmatprep.subr.bf16.mxu0 0
    %1366 = vmatpush1.bf16.msra.mxu0 0
    %1367 = vmatprep.subr.bf16.mxu0 0
    %1368 = vmatpush1.bf16.msra.mxu0 0
    %1369 = vmatprep.subr.bf16.mxu0 0
    %1370 = vmatpush1.bf16.msra.mxu0 0
    %1371 = vmatprep.mubr.bf16.mxu0 0
    %1372 = vmatmul.mubr.bf16.gmra.mrb[0].mxu0 %v1149
    %v1373 = vpop.f32.mrb[0].mxu0
    %v1374 = vadd.f32 %v1334, %v1373
    %v1375 = vpop.f32.mrb[0].mxu0
    %v1376 = vpop.f32.mrb[0].mxu0
    %v1377 = vpop.f32.mrb[0].mxu0
    %1378 = vdwg.mxu0
    %v1379 = vmul.f32 %v1374, 0.2
    %v1380 = vmax.f32 %v1374, %v1379
    %v1381 = vld [vmem:[%s2 + $0x6] sm:$0x1]
    %v1382 = vlaneseq
    %v1383 = vshrl.u32 %v1382, 7
    %v1384 = vsub.s32 0, %v1383
    %v1385 = vrot.slane %v1381, %v1384
    %v1386 = vadd.f32 %v1380, %v1385
    %v1387 = vpack.c.bf16 %v1386, %v1386
    %v1388 = vld [vmem:[%s3] sm:$0xf]
    %v1389 = vld [vmem:[%s3 + $0x4] sm:$0xf]
    %v1390 = vld [vmem:[%s3 + $0x8] sm:$0xf]
    %v1391 = vld [vmem:[%s3 + $0xc] sm:$0xf]
    %v1392 = vld [vmem:[%s3 + $0x10] sm:$0xf]
    %v1393 = vld [vmem:[%s3 + $0x14] sm:$0xf]
    %v1394 = vld [vmem:[%s3 + $0x18] sm:$0xf]
    %v1395 = vld [vmem:[%s3 + $0x1c] sm:$0xf]
    %v1396 = vld [vmem:[%s3 + $0x20] sm:$0xf]
    %v1397 = vld [vmem:[%s3 + $0x24] sm:$0xf]
    %v1398 = vld [vmem:[%s3 + $0x28] sm:$0xf]
    %v1399 = vld [vmem:[%s3 + $0x2c] sm:$0xf]
    %v1400 = vld [vmem:[%s3 + $0x30] sm:$0xf]
    %v1401 = vld [vmem:[%s3 + $0x34] sm:$0xf]
    %v1402 = vld [vmem:[%s3 + $0x38] sm:$0xf]
    %v1403 = vld [vmem:[%s3 + $0x3c] sm:$0xf]
    %v1404 = vld [vmem:[%s2 + $0x7] sm:$0x1]
    %v1405 = vlaneseq
    %v1406 = vshrl.u32 %v1405, 7
    %v1407 = vsub.s32 0, %v1406
    %v1408 = vrot.slane %v1404, %v1407
    %v1425 = vunpack.c.l.b16 %v1388
    %v1426 = vunpack.c.l.b16 %v1389
    %v1427 = vunpack.c.l.b16 %v1390
    %v1428 = vunpack.c.l.b16 %v1391
    %v1429 = vunpack.c.l.b16 %v1392
    %v1430 = vunpack.c.l.b16 %v1393
    %v1431 = vunpack.c.l.b16 %v1394
    %v1432 = vunpack.c.l.b16 %v1395
    %v1433 = vunpack.c.l.b16 %v1396
    %v1434 = vunpack.c.l.b16 %v1397
    %v1435 = vunpack.c.l.b16 %v1398
    %v1436 = vunpack.c.l.b16 %v1399
    %v1437 = vunpack.c.l.b16 %v1400
    %v1438 = vunpack.c.l.b16 %v1401
    %v1439 = vunpack.c.l.b16 %v1402
    %v1440 = vunpack.c.l.b16 %v1403
    %v1441 = vpack.c.b16 %v1426, %v1425
    %v1442 = vpack.c.b16 %v1428, %v1427
    %v1443 = vpack.c.b16 %v1430, %v1429
    %v1444 = vpack.c.b16 %v1432, %v1431
    %v1445 = vpack.c.b16 %v1434, %v1433
    %v1446 = vpack.c.b16 %v1436, %v1435
    %v1447 = vpack.c.b16 %v1438, %v1437
    %v1448 = vpack.c.b16 %v1440, %v1439
    %1457 = vmatprep.subr.bf16.mxu0 0
    %1458 = vmatpush1.bf16.msra.mxu0 %v1441
    %1459 = vmatprep.subr.bf16.mxu0 0
    %1460 = vmatpush1.bf16.msra.mxu0 %v1442
    %1461 = vmatprep.subr.bf16.mxu0 0
    %1462 = vmatpush1.bf16.msra.mxu0 %v1443
    %1463 = vmatprep.subr.bf16.mxu0 0
    %1464 = vmatpush1.bf16.msra.mxu0 %v1444
    %1465 = vmatprep.subr.bf16.mxu0 0
    %1466 = vmatpush1.bf16.msra.mxu0 %v1445
    %1467 = vmatprep.subr.bf16.mxu0 0
    %1468 = vmatpush1.bf16.msra.mxu0 %v1446
    %1469 = vmatprep.subr.bf16.mxu0 0
    %1470 = vmatpush1.bf16.msra.mxu0 %v1447
    %1471 = vmatprep.subr.bf16.mxu0 0
    %1472 = vmatpush1.bf16.msra.mxu0 %v1448
    %1473 = vmatprep.subr.bf16.mxu0 0
    %1474 = vmatpush1.bf16.msra.mxu0 0
    %1475 = vmatprep.subr.bf16.mxu0 0
    %1476 = vmatpush1.bf16.msra.mxu0 0
    %1477 = vmatprep.subr.bf16.mxu0 0
    %1478 = vmatpush1.bf16.msra.mxu0 0
    %1479 = vmatprep.subr.bf16.mxu0 0
    %1480 = vmatpush1.bf16.msra.mxu0 0
    %1481 = vmatprep.subr.bf16.mxu0 0
    %1482 = vmatpush1.bf16.msra.mxu0 0
    %1483 = vmatprep.subr.bf16.mxu0 0
    %1484 = vmatpush1.bf16.msra.mxu0 0
    %1485 = vmatprep.subr.bf16.mxu0 0
    %1486 = vmatpush1.bf16.msra.mxu0 0
    %1487 = vmatprep.subr.bf16.mxu0 0
    %1488 = vmatpush1.bf16.msra.mxu0 0
    %1489 = vmatprep.mubr.bf16.mxu0 0
    %1490 = vmatmul.mubr.bf16.gmra.mrb[0].mxu0 %v1387
    %v1491 = vpop.f32.mrb[0].mxu0
    %v1492 = vadd.f32 %v1408, %v1491
    %v1493 = vpop.f32.mrb[0].mxu0
    %v1494 = vpop.f32.mrb[0].mxu0
    %v1495 = vpop.f32.mrb[0].mxu0
    %1496 = vdwg.mxu0
    %vm1497 = vcmp.ge.f32.partialorder %v1492, 0.0
    %v1498 = vsub.f32 0.0, %v1492
    %v1499 = vsel %vm1497, %v1498, %v1492
    %v1500 = vmul.f32 %v1499, 1.442695
    %v1501 = vpow.pop %v1500
    %v1502 = vadd.f32 %v1501, 1.0
    %v1503 = vrcp.pop %v1502
    %v1504 = vmul.f32 1.0, %v1503
    %v1505 = vmul.f32 %v1501, %v1503
    %v1506 = vsel %vm1497, %v1504, %v1505
    %vm1507 = vcmask 82952
    %v1508 = vsel %vm1507, %v1492, -inf
    %1509 = vmax.xlane.f32.xlu0 %v1508
    %v1510 = vpop.xlane.xlu0 %1509
    %v1511 = vsub.f32 %v1492, %v1510
    %v1512 = vmul.f32 %v1511, 1.442695
    %v1513 = vpow.pop %v1512
    %1515 = vrot.lane.b32.xlu0 %v1513, 127
    %v1516 = vpop.permute.xlu0 %1515
    %vm1518 = vcmask 74752
    %v1519 = vsel %vm1518, %v1516, 0.0
    %1520 = vadd.xlane.f32.xlu0 %v1519
    %v1521 = vpop.xlane.xlu0 %1520
    %v1522 = vrcp.pop %v1521
    %v1523 = vmul.f32 %v1513, %v1522
    %vm1524 = vcmask 7168
    %v1525 = vsel %vm1524, %v1506, %v1523
    %vm1526 = vcmask 82944
    %1527 = vst.msk [vmem:[#allocation11] sm:$0x3] %vm1526, %v1525
    // Predicated region
    $region26: #{tpu_custom_call.1} parent=1 // pred_check
      _
    $region27: #{tpu_custom_call.1} parent=1 // pred_check_branch
      %1529 = sbr.rel (0) target = $region29
    $region28: #{tpu_custom_call.1} parent=1 // pred_region
      %s1531 = ssub.s32 32, 32
      %1532 = vsyncadd [#allocation8], %s1531
      %s1534 = sshll.u32 [#allocation11], 4
      %s1535 = int_to_ptr.vmem [resolvable:$true] %s1534
      %1537 = dma.vmem_to_hbm [thread:$0]  %s1535, 32, %s4, [#allocation8]
    $region29: #{tpu_custom_call.1} parent=1 // pred_fallthru
      _
    // Predicated region
    $region30: #{tpu_custom_call.1} parent=1 // pred_check
      _
    $region31: #{tpu_custom_call.1} parent=1 // pred_check_branch
      %1539 = sbr.rel (0) target = $region33
    $region32: #{tpu_custom_call.1} parent=1 // pred_region
      %1540 = dma.done [#allocation8], 32
    $region33: #{tpu_custom_call.1} parent=1 // pred_fallthru
      _
    %1541 = vsyncpa [#allocation7], 1
    %1542 = vsyncpa [#allocation10], 1
    %1543 = vsyncpa [#allocation8], 1

// kernel: tpu_custom_call.1
$region0: #{tpu_custom_call.1}
  #allocation0 [shape = 'u32[]', space=smem, size = 0x4, offset = 0x4, fixed_abs, tag = 'smem constant byte address 0x4 - core index']
  #allocation1 [shape = 'u32[144,128]{1,0:T(1,128)}', space=vmem, size = 0x12000, scoped, tag = 'internal scratch']
  #allocation2 [shape = 'f32[2,18,128]{2,1,0:T(8,128)}', space=vmem, size = 0x6000, scoped, tag = 'scratch operand']
  #allocation3 [shape = 'f32[2,10,128]{2,1,0:T(8,128)}', space=vmem, size = 0x4000, scoped, tag = 'scratch operand']
  #allocation4 [shape = 'f32[2,6,128]{2,1,0:T(8,128)}', space=vmem, size = 0x2000, scoped, tag = 'scratch operand']
  #allocation5 [shape = 'f32[2,4,128]{2,1,0:T(4,128)}', space=vmem, size = 0x1000, scoped, tag = 'scratch operand']
  %s0 = inlined_call_operand.hbm [shape: f32[2,4,16,16], index: 0, kind: input, shape index: {}]
  %s1 = inlined_call_operand.hbm [shape: bf16[1536,128], index: 1, kind: input, shape index: {}]
  %s2 = inlined_call_operand.vmem [shape: f32[8,128], index: 2, kind: input, shape index: {}]
  %s3 = inlined_call_operand.vmem [shape: bf16[128,11], index: 3, kind: input, shape index: {}]
  %s4 = inlined_call_operand.hbm [shape: f32[2,11], index: 4, kind: output, shape index: {}]
  %s5 = sld [smem:[#allocation0]]
  $region34: #{tpu_custom_call.1} parent=0
    _
  %s7 = ssub.s32 1, %s5
  %s8 = scalar_select 0, %s7, %s5
  $region1: #{tpu_custom_call.1} parent=0
    #allocation6 [shape = 'u8[65536]{0}', space=vmem, size = 0x10000, scoped, tag = 'input window, operand 0, single buffered']
    #allocation7 [shape = 's32[1]{0}', space=sflag, size = 0x4, scoped, tag = 'scoped memory for tpu_custom_call.1']
    #allocation8 [shape = 's32[1]{0}', space=sflag, size = 0x4, scoped, tag = 'scoped memory for tpu_custom_call.1']
    #allocation9 [shape = 'u8[393216]{0}', space=vmem, size = 0x60000, scoped, tag = 'input window, operand 1, single buffered']
    #allocation10 [shape = 's32[1]{0}', space=sflag, size = 0x4, scoped, tag = 'scoped memory for tpu_custom_call.1']
    #allocation11 [shape = 'u8[1024]{0}', space=vmem, size = 0x400, scoped, tag = 'output window, operand 0, single buffered']
    %9 = vsyncpa [#allocation7], 0
    %10 = vsyncpa [#allocation10], 0
    %11 = vsyncpa [#allocation8], 0
    // Predicated region
    $region2: #{tpu_custom_call.1} parent=1 // pred_check
      _
    $region3: #{tpu_custom_call.1} parent=1 // pred_check_branch
      %13 = sbr.rel (0) target = $region5
    $region4: #{tpu_custom_call.1} parent=1 // pred_region
      %s15 = ssub.s32 2048, 2048
      %16 = vsyncadd [#allocation7], %s15
      %s17 = sshll.u32 [#allocation6], 4
      %s18 = int_to_ptr.vmem [resolvable:$true] %s17
      %23 = dma.hbm_to_vmem [thread:$0]  %s0, 2048, %s18, [#allocation7], 128, 128, 8
    $region5: #{tpu_custom_call.1} parent=1 // pred_fallthru
      _
    // Predicated region
    $region6: #{tpu_custom_call.1} parent=1 // pred_check
      _
    $region7: #{tpu_custom_call.1} parent=1 // pred_check_branch
      %25 = sbr.rel (0) target = $region9
    $region8: #{tpu_custom_call.1} parent=1 // pred_region
      %s27 = ssub.s32 12288, 12288
      %28 = vsyncadd [#allocation10], %s27
      %s29 = sshll.u32 [#allocation9], 4
      %s30 = int_to_ptr.vmem [resolvable:$true] %s29
      %35 = dma.hbm_to_vmem [thread:$0]  %s1, 12288, %s30, [#allocation10], 64, 64, 4
    $region9: #{tpu_custom_call.1} parent=1 // pred_fallthru
      _
    // Predicated region
    $region10: #{tpu_custom_call.1} parent=1 // pred_check
      _
    $region11: #{tpu_custom_call.1} parent=1 // pred_check_branch
      %37 = sbr.rel (0) target = $region13
    $region12: #{tpu_custom_call.1} parent=1 // pred_region
      _
    $region13: #{tpu_custom_call.1} parent=1 // pred_fallthru
      _
    // Predicated region
    $region14: #{tpu_custom_call.1} parent=1 // pred_check
      _
    $region15: #{tpu_custom_call.1} parent=1 // pred_check_branch
      %39 = sbr.rel (0) target = $region17
    $region16: #{tpu_custom_call.1} parent=1 // pred_region
      _
    $region17: #{tpu_custom_call.1} parent=1 // pred_fallthru
      _
    // Predicated region
    $region18: #{tpu_custom_call.1} parent=1 // pred_check
      _
    $region19: #{tpu_custom_call.1} parent=1 // pred_check_branch
      %41 = sbr.rel (0) target = $region21
    $region20: #{tpu_custom_call.1} parent=1 // pred_region
      %42 = dma.done [#allocation7], 2048
    $region21: #{tpu_custom_call.1} parent=1 // pred_fallthru
      _
    // Predicated region
    $region22: #{tpu_custom_call.1} parent=1 // pred_check
      _
    $region23: #{tpu_custom_call.1} parent=1 // pred_check_branch
      %44 = sbr.rel (0) target = $region25
    $region24: #{tpu_custom_call.1} parent=1 // pred_region
      %45 = dma.done [#allocation10], 12288
    $region25: #{tpu_custom_call.1} parent=1 // pred_fallthru
      _
    %47 = vst [vmem:[#allocation2] sm:$0xff] 0.0
    %48 = vst [vmem:[#allocation2 + $0x8] sm:$0xff] 0.0
    %49 = vst [vmem:[#allocation2 + $0x10] sm:$0x3] 0.0
    %50 = vst [vmem:[#allocation2 + $0x18] sm:$0xff] 0.0
    %51 = vst [vmem:[#allocation2 + $0x20] sm:$0xff] 0.0
    %52 = vst [vmem:[#allocation2 + $0x28] sm:$0x3] 0.0
    %v53 = vld [vmem:[#allocation6] sm:$0xff]
    %v54 = vld [vmem:[#allocation6 + $0x8] sm:$0xff]
    %s55 = scalar_lea.vmem [#allocation6], 16
    %v56 = vld [vmem:[%s55] sm:$0xff]
    %v57 = vld [vmem:[%s55 + $0x8] sm:$0xff]
    %s58 = scalar_lea.vmem [#allocation6], 32
    %v59 = vld [vmem:[%s58] sm:$0xff]
    %v60 = vld [vmem:[%s58 + $0x8] sm:$0xff]
    %s61 = scalar_lea.vmem [#allocation6], 48
    %v62 = vld [vmem:[%s61] sm:$0xff]
    %v63 = vld [vmem:[%s61 + $0x8] sm:$0xff]
    %66 = vrot.lane.b32.xlu0 %v56, 16
    %v67 = vpop.permute.xlu0 %66
    %68 = vrot.lane.b32.xlu0 %v57, 16
    %v69 = vpop.permute.xlu0 %68
    %74 = vrot.lane.b32.xlu0 %v59, 32
    %v75 = vpop.permute.xlu0 %74
    %76 = vrot.lane.b32.xlu0 %v60, 32
    %v77 = vpop.permute.xlu0 %76
    %82 = vrot.lane.b32.xlu0 %v62, 48
    %v83 = vpop.permute.xlu0 %82
    %84 = vrot.lane.b32.xlu0 %v63, 48
    %v85 = vpop.permute.xlu0 %84
    %vm88 = vcmask 130048
    %v89 = vsel %vm88, %v53, %v67
    %v90 = vsel %vm88, %v54, %v69
    %vm91 = vcmask 261120
    %v92 = vsel %vm91, %v89, %v75
    %v93 = vsel %vm91, %v90, %v77
    %vm94 = vcmask 392192
    %v95 = vsel %vm94, %v92, %v83
    %v96 = vsel %vm94, %v93, %v85
    %vm97 = vcmask 523264
    %98 = vst.msk [vmem:[#allocation2 + $0x1] sm:$0xff] %vm97, %v95
    %99 = vst.msk [vmem:[#allocation2 + $0x9] sm:$0xff] %vm97, %v96
    %s100 = scalar_lea.vmem [#allocation6], 64
    %v101 = vld [vmem:[%s100] sm:$0xff]
    %v102 = vld [vmem:[%s100 + $0x8] sm:$0xff]
    %s103 = scalar_lea.vmem [#allocation6], 80
    %v104 = vld [vmem:[%s103] sm:$0xff]
    %v105 = vld [vmem:[%s103 + $0x8] sm:$0xff]
    %s106 = scalar_lea.vmem [#allocation6], 96
    %v107 = vld [vmem:[%s106] sm:$0xff]
    %v108 = vld [vmem:[%s106 + $0x8] sm:$0xff]
    %s109 = scalar_lea.vmem [#allocation6], 112
    %v110 = vld [vmem:[%s109] sm:$0xff]
    %v111 = vld [vmem:[%s109 + $0x8] sm:$0xff]
    %114 = vrot.lane.b32.xlu0 %v104, 16
    %v115 = vpop.permute.xlu0 %114
    %116 = vrot.lane.b32.xlu0 %v105, 16
    %v117 = vpop.permute.xlu0 %116
    %122 = vrot.lane.b32.xlu0 %v107, 32
    %v123 = vpop.permute.xlu0 %122
    %124 = vrot.lane.b32.xlu0 %v108, 32
    %v125 = vpop.permute.xlu0 %124
    %130 = vrot.lane.b32.xlu0 %v110, 48
    %v131 = vpop.permute.xlu0 %130
    %132 = vrot.lane.b32.xlu0 %v111, 48
    %v133 = vpop.permute.xlu0 %132
    %v136 = vsel %vm88, %v101, %v115
    %v137 = vsel %vm88, %v102, %v117
    %v138 = vsel %vm91, %v136, %v123
    %v139 = vsel %vm91, %v137, %v125
    %v140 = vsel %vm94, %v138, %v131
    %v141 = vsel %vm94, %v139, %v133
    %s142 = scalar_lea.vmem [#allocation2], 24
    %143 = vst.msk [vmem:[%s142 + $0x1] sm:$0xff] %vm97, %v140
    %144 = vst.msk [vmem:[%s142 + $0x9] sm:$0xff] %vm97, %v141
    %v145 = vld [vmem:[#allocation2] sm:$0x1]
    %v146 = vld [vmem:[#allocation2 + $0x2] sm:$0x1]
    %v147 = vld [vmem:[#allocation2 + $0x4] sm:$0x1]
    %v148 = vld [vmem:[#allocation2 + $0x6] sm:$0x1]
    %v149 = vld [vmem:[#allocation2 + $0x8] sm:$0x1]
    %v150 = vld [vmem:[#allocation2 + $0xa] sm:$0x1]
    %v151 = vld [vmem:[#allocation2 + $0xc] sm:$0x1]
    %v152 = vld [vmem:[#allocation2 + $0xe] sm:$0x1]
    %v154 = vrot.slane %v146, 7
    %v157 = vrot.slane %v147, 6
    %v160 = vrot.slane %v148, 5
    %v163 = vrot.slane %v149, 4
    %v166 = vrot.slane %v150, 3
    %v169 = vrot.slane %v151, 2
    %v172 = vrot.slane %v152, 1
    %vm174 = vcmask 1040384
    %v175 = vsel %vm174, %v145, %v154
    %vm176 = vcmask 1041408
    %v177 = vsel %vm176, %v175, %v157
    %vm178 = vcmask 1042432
    %v179 = vsel %vm178, %v177, %v160
    %vm180 = vcmask 1043456
    %v181 = vsel %vm180, %v179, %v163
    %vm182 = vcmask 1044480
    %v183 = vsel %vm182, %v181, %v166
    %vm184 = vcmask 1045504
    %v185 = vsel %vm184, %v183, %v169
    %vm186 = vcmask 1046528
    %v187 = vsel %vm186, %v185, %v172
    %v188 = vld [vmem:[#allocation2 + $0x1] sm:$0x1]
    %v189 = vld [vmem:[#allocation2 + $0x3] sm:$0x1]
    %v190 = vld [vmem:[#allocation2 + $0x5] sm:$0x1]
    %v191 = vld [vmem:[#allocation2 + $0x7] sm:$0x1]
    %v192 = vld [vmem:[#allocation2 + $0x9] sm:$0x1]
    %v193 = vld [vmem:[#allocation2 + $0xb] sm:$0x1]
    %v194 = vld [vmem:[#allocation2 + $0xd] sm:$0x1]
    %v195 = vld [vmem:[#allocation2 + $0xf] sm:$0x1]
    %v197 = vrot.slane %v189, 7
    %v200 = vrot.slane %v190, 6
    %v203 = vrot.slane %v191, 5
    %v206 = vrot.slane %v192, 4
    %v209 = vrot.slane %v193, 3
    %v212 = vrot.slane %v194, 2
    %v215 = vrot.slane %v195, 1
    %v217 = vsel %vm174, %v188, %v197
    %v218 = vsel %vm176, %v217, %v200
    %v219 = vsel %vm178, %v218, %v203
    %v220 = vsel %vm180, %v219, %v206
    %v221 = vsel %vm182, %v220, %v209
    %v222 = vsel %vm184, %v221, %v212
    %v223 = vsel %vm186, %v222, %v215
    %v224 = vld [vmem:[#allocation2 + $0x10] sm:$0x1]
    %v225 = vrot.slane %v147, 7
    %v227 = vrot.slane %v148, 6
    %v229 = vrot.slane %v149, 5
    %v231 = vrot.slane %v150, 4
    %v233 = vrot.slane %v151, 3
    %v235 = vrot.slane %v152, 2
    %v238 = vrot.slane %v224, 1
    %v240 = vsel %vm174, %v146, %v225
    %v241 = vsel %vm176, %v240, %v227
    %v242 = vsel %vm178, %v241, %v229
    %v243 = vsel %vm180, %v242, %v231
    %v244 = vsel %vm182, %v243, %v233
    %v245 = vsel %vm184, %v244, %v235
    %v246 = vsel %vm186, %v245, %v238
    %v247 = vld [vmem:[%s142] sm:$0x1]
    %v248 = vld [vmem:[%s142 + $0x2] sm:$0x1]
    %v249 = vld [vmem:[%s142 + $0x4] sm:$0x1]
    %v250 = vld [vmem:[%s142 + $0x6] sm:$0x1]
    %v251 = vld [vmem:[%s142 + $0x8] sm:$0x1]
    %v252 = vld [vmem:[%s142 + $0xa] sm:$0x1]
    %v253 = vld [vmem:[%s142 + $0xc] sm:$0x1]
    %v254 = vld [vmem:[%s142 + $0xe] sm:$0x1]
    %v256 = vrot.slane %v248, 7
    %v259 = vrot.slane %v249, 6
    %v262 = vrot.slane %v250, 5
    %v265 = vrot.slane %v251, 4
    %v268 = vrot.slane %v252, 3
    %v271 = vrot.slane %v253, 2
    %v274 = vrot.slane %v254, 1
    %v276 = vsel %vm174, %v247, %v256
    %v277 = vsel %vm176, %v276, %v259
    %v278 = vsel %vm178, %v277, %v262
    %v279 = vsel %vm180, %v278, %v265
    %v280 = vsel %vm182, %v279, %v268
    %v281 = vsel %vm184, %v280, %v271
    %v282 = vsel %vm186, %v281, %v274
    %v283 = vld [vmem:[%s142 + $0x1] sm:$0x1]
    %v284 = vld [vmem:[%s142 + $0x3] sm:$0x1]
    %v285 = vld [vmem:[%s142 + $0x5] sm:$0x1]
    %v286 = vld [vmem:[%s142 + $0x7] sm:$0x1]
    %v287 = vld [vmem:[%s142 + $0x9] sm:$0x1]
    %v288 = vld [vmem:[%s142 + $0xb] sm:$0x1]
    %v289 = vld [vmem:[%s142 + $0xd] sm:$0x1]
    %v290 = vld [vmem:[%s142 + $0xf] sm:$0x1]
    %v292 = vrot.slane %v284, 7
    %v295 = vrot.slane %v285, 6
    %v298 = vrot.slane %v286, 5
    %v301 = vrot.slane %v287, 4
    %v304 = vrot.slane %v288, 3
    %v307 = vrot.slane %v289, 2
    %v310 = vrot.slane %v290, 1
    %v312 = vsel %vm174, %v283, %v292
    %v313 = vsel %vm176, %v312, %v295
    %v314 = vsel %vm178, %v313, %v298
    %v315 = vsel %vm180, %v314, %v301
    %v316 = vsel %vm182, %v315, %v304
    %v317 = vsel %vm184, %v316, %v307
    %v318 = vsel %vm186, %v317, %v310
    %v319 = vld [vmem:[%s142 + $0x10] sm:$0x1]
    %v320 = vrot.slane %v249, 7
    %v322 = vrot.slane %v250, 6
    %v324 = vrot.slane %v251, 5
    %v326 = vrot.slane %v252, 4
    %v328 = vrot.slane %v253, 3
    %v330 = vrot.slane %v254, 2
    %v333 = vrot.slane %v319, 1
    %v335 = vsel %vm174, %v248, %v320
    %v336 = vsel %vm176, %v335, %v322
    %v337 = vsel %vm178, %v336, %v324
    %v338 = vsel %vm180, %v337, %v326
    %v339 = vsel %vm182, %v338, %v328
    %v340 = vsel %vm184, %v339, %v330
    %v341 = vsel %vm186, %v340, %v333
    %v342 = vld [vmem:[#allocation9] sm:$0xf]
    %v343 = vld [vmem:[#allocation9 + $0x4] sm:$0xf]
    %v344 = vld [vmem:[#allocation9 + $0x8] sm:$0xf]
    %v345 = vld [vmem:[#allocation9 + $0xc] sm:$0xf]
    %v346 = vld [vmem:[#allocation9 + $0x10] sm:$0xf]
    %v347 = vld [vmem:[#allocation9 + $0x14] sm:$0xf]
    %v348 = vld [vmem:[#allocation9 + $0x18] sm:$0xf]
    %v349 = vld [vmem:[#allocation9 + $0x1c] sm:$0xf]
    %v350 = vld [vmem:[#allocation9 + $0x20] sm:$0xf]
    %v351 = vld [vmem:[#allocation9 + $0x24] sm:$0xf]
    %v352 = vld [vmem:[#allocation9 + $0x28] sm:$0xf]
    %v353 = vld [vmem:[#allocation9 + $0x2c] sm:$0xf]
    %v354 = vld [vmem:[#allocation9 + $0x30] sm:$0xf]
    %v355 = vld [vmem:[#allocation9 + $0x34] sm:$0xf]
    %v356 = vld [vmem:[#allocation9 + $0x38] sm:$0xf]
    %v357 = vld [vmem:[#allocation9 + $0x3c] sm:$0xf]
    %v358 = vld [vmem:[#allocation9 + $0x40] sm:$0xf]
    %v359 = vld [vmem:[#allocation9 + $0x44] sm:$0xf]
    %v360 = vld [vmem:[#allocation9 + $0x48] sm:$0xf]
    %v361 = vld [vmem:[#allocation9 + $0x4c] sm:$0xf]
    %v362 = vld [vmem:[#allocation9 + $0x50] sm:$0xf]
    %v363 = vld [vmem:[#allocation9 + $0x54] sm:$0xf]
    %v364 = vld [vmem:[#allocation9 + $0x58] sm:$0xf]
    %v365 = vld [vmem:[#allocation9 + $0x5c] sm:$0xf]
    %v366 = vld [vmem:[#allocation9 + $0x60] sm:$0xf]
    %v367 = vld [vmem:[#allocation9 + $0x64] sm:$0xf]
    %v368 = vld [vmem:[#allocation9 + $0x68] sm:$0xf]
    %v369 = vld [vmem:[#allocation9 + $0x6c] sm:$0xf]
    %v370 = vld [vmem:[#allocation9 + $0x70] sm:$0xf]
    %v371 = vld [vmem:[#allocation9 + $0x74] sm:$0xf]
    %v372 = vld [vmem:[#allocation9 + $0x78] sm:$0xf]
    %v373 = vld [vmem:[#allocation9 + $0x7c] sm:$0xf]
    %v374 = vld [vmem:[#allocation9 + $0x80] sm:$0xf]
    %v375 = vld [vmem:[#allocation9 + $0x84] sm:$0xf]
    %v376 = vld [vmem:[#allocation9 + $0x88] sm:$0xf]
    %v377 = vld [vmem:[#allocation9 + $0x8c] sm:$0xf]
    %v378 = vld [vmem:[#allocation9 + $0x90] sm:$0xf]
    %v379 = vld [vmem:[#allocation9 + $0x94] sm:$0xf]
    %v380 = vld [vmem:[#allocation9 + $0x98] sm:$0xf]
    %v381 = vld [vmem:[#allocation9 + $0x9c] sm:$0xf]
    %v382 = vld [vmem:[#allocation9 + $0xa0] sm:$0xf]
    %v383 = vld [vmem:[#allocation9 + $0xa4] sm:$0xf]
    %v384 = vld [vmem:[#allocation9 + $0xa8] sm:$0xf]
    %v385 = vld [vmem:[#allocation9 + $0xac] sm:$0xf]
    %v386 = vld [vmem:[#allocation9 + $0xb0] sm:$0xf]
    %v387 = vld [vmem:[#allocation9 + $0xb4] sm:$0xf]
    %v388 = vld [vmem:[#allocation9 + $0xb8] sm:$0xf]
    %v389 = vld [vmem:[#allocation9 + $0xbc] sm:$0xf]
    %v390 = vpack.c.bf16 %v282, %v187
    %v391 = vpack.c.bf16 %v318, %v223
    %v392 = vpack.c.bf16 %v341, %v246
    %v393 = vld [vmem:[%s2] sm:$0x1]
    %v394 = vlaneseq
    %v395 = vshrl.u32 %v394, 7
    %v396 = vsub.s32 0, %v395
    %v397 = vrot.slane %v393, %v396
    %v446 = vunpack.c.l.b16 %v342
    %v447 = vunpack.c.l.b16 %v343
    %v448 = vunpack.c.l.b16 %v344
    %v449 = vunpack.c.l.b16 %v345
    %v450 = vunpack.c.l.b16 %v346
    %v451 = vunpack.c.l.b16 %v347
    %v452 = vunpack.c.l.b16 %v348
    %v453 = vunpack.c.l.b16 %v349
    %v454 = vunpack.c.l.b16 %v350
    %v455 = vunpack.c.l.b16 %v351
    %v456 = vunpack.c.l.b16 %v352
    %v457 = vunpack.c.l.b16 %v353
    %v458 = vunpack.c.l.b16 %v354
    %v459 = vunpack.c.l.b16 %v355
    %v460 = vunpack.c.l.b16 %v356
    %v461 = vunpack.c.l.b16 %v357
    %v462 = vunpack.c.l.b16 %v358
    %v463 = vunpack.c.l.b16 %v359
    %v464 = vunpack.c.l.b16 %v360
    %v465 = vunpack.c.l.b16 %v361
    %v466 = vunpack.c.l.b16 %v362
    %v467 = vunpack.c.l.b16 %v363
    %v468 = vunpack.c.l.b16 %v364
    %v469 = vunpack.c.l.b16 %v365
    %v470 = vunpack.c.l.b16 %v366
    %v471 = vunpack.c.l.b16 %v367
    %v472 = vunpack.c.l.b16 %v368
    %v473 = vunpack.c.l.b16 %v369
    %v474 = vunpack.c.l.b16 %v370
    %v475 = vunpack.c.l.b16 %v371
    %v476 = vunpack.c.l.b16 %v372
    %v477 = vunpack.c.l.b16 %v373
    %v478 = vunpack.c.l.b16 %v374
    %v479 = vunpack.c.l.b16 %v375
    %v480 = vunpack.c.l.b16 %v376
    %v481 = vunpack.c.l.b16 %v377
    %v482 = vunpack.c.l.b16 %v378
    %v483 = vunpack.c.l.b16 %v379
    %v484 = vunpack.c.l.b16 %v380
    %v485 = vunpack.c.l.b16 %v381
    %v486 = vunpack.c.l.b16 %v382
    %v487 = vunpack.c.l.b16 %v383
    %v488 = vunpack.c.l.b16 %v384
    %v489 = vunpack.c.l.b16 %v385
    %v490 = vunpack.c.l.b16 %v386
    %v491 = vunpack.c.l.b16 %v387
    %v492 = vunpack.c.l.b16 %v388
    %v493 = vunpack.c.l.b16 %v389
    %v494 = vpack.c.b16 %v447, %v446
    %v495 = vpack.c.b16 %v449, %v448
    %v496 = vpack.c.b16 %v451, %v450
    %v497 = vpack.c.b16 %v453, %v452
    %v498 = vpack.c.b16 %v455, %v454
    %v499 = vpack.c.b16 %v457, %v456
    %v500 = vpack.c.b16 %v459, %v458
    %v501 = vpack.c.b16 %v461, %v460
    %v502 = vpack.c.b16 %v463, %v462
    %v503 = vpack.c.b16 %v465, %v464
    %v504 = vpack.c.b16 %v467, %v466
    %v505 = vpack.c.b16 %v469, %v468
    %v506 = vpack.c.b16 %v471, %v470
    %v507 = vpack.c.b16 %v473, %v472
    %v508 = vpack.c.b16 %v475, %v474
    %v509 = vpack.c.b16 %v477, %v476
    %v510 = vpack.c.b16 %v479, %v478
    %v511 = vpack.c.b16 %v481, %v480
    %v512 = vpack.c.b16 %v483, %v482
    %v513 = vpack.c.b16 %v485, %v484
    %v514 = vpack.c.b16 %v487, %v486
    %v515 = vpack.c.b16 %v489, %v488
    %v516 = vpack.c.b16 %v491, %v490
    %v517 = vpack.c.b16 %v493, %v492
    %542 = vmatprep.subr.bf16.mxu0 0
    %543 = vmatpush1.bf16.msra.mxu0 %v494
    %544 = vmatprep.subr.bf16.mxu0 0
    %545 = vmatpush1.bf16.msra.mxu0 %v495
    %546 = vmatprep.subr.bf16.mxu0 0
    %547 = vmatpush1.bf16.msra.mxu0 %v496
    %548 = vmatprep.subr.bf16.mxu0 0
    %549 = vmatpush1.bf16.msra.mxu0 %v497
    %550 = vmatprep.subr.bf16.mxu0 0
    %551 = vmatpush1.bf16.msra.mxu0 %v498
    %552 = vmatprep.subr.bf16.mxu0 0
    %553 = vmatpush1.bf16.msra.mxu0 %v499
    %554 = vmatprep.subr.bf16.mxu0 0
    %555 = vmatpush1.bf16.msra.mxu0 %v500
    %556 = vmatprep.subr.bf16.mxu0 0
    %557 = vmatpush1.bf16.msra.mxu0 %v501
    %558 = vmatprep.subr.bf16.mxu0 0
    %559 = vmatpush1.bf16.msra.mxu0 %v502
    %560 = vmatprep.subr.bf16.mxu0 0
    %561 = vmatpush1.bf16.msra.mxu0 %v503
    %562 = vmatprep.subr.bf16.mxu0 0
    %563 = vmatpush1.bf16.msra.mxu0 %v504
    %564 = vmatprep.subr.bf16.mxu0 0
    %565 = vmatpush1.bf16.msra.mxu0 %v505
    %566 = vmatprep.subr.bf16.mxu0 0
    %567 = vmatpush1.bf16.msra.mxu0 %v506
    %568 = vmatprep.subr.bf16.mxu0 0
    %569 = vmatpush1.bf16.msra.mxu0 %v507
    %570 = vmatprep.subr.bf16.mxu0 0
    %571 = vmatpush1.bf16.msra.mxu0 %v508
    %572 = vmatprep.subr.bf16.mxu0 0
    %573 = vmatpush1.bf16.msra.mxu0 %v509
    %574 = vmatprep.mubr.bf16.mxu0 %v391
    %575 = vmatmul.mubr.bf16.gmra.mrb[0].mxu0 %v390
    %v576 = vpop.f32.mrb[0].mxu0
    %v577 = vadd.f32 %v397, %v576
    %v578 = vpop.f32.mrb[0].mxu0
    %v579 = vpop.f32.mrb[0].mxu0
    %v580 = vadd.f32 %v397, %v579
    %v581 = vpop.f32.mrb[0].mxu0
    %582 = vdwg.mxu0
    %583 = vmatprep.subr.bf16.mxu0 0
    %584 = vmatpush1.bf16.msra.mxu0 %v510
    %585 = vmatprep.subr.bf16.mxu0 0
    %586 = vmatpush1.bf16.msra.mxu0 %v511
    %587 = vmatprep.subr.bf16.mxu0 0
    %588 = vmatpush1.bf16.msra.mxu0 %v512
    %589 = vmatprep.subr.bf16.mxu0 0
    %590 = vmatpush1.bf16.msra.mxu0 %v513
    %591 = vmatprep.subr.bf16.mxu0 0
    %592 = vmatpush1.bf16.msra.mxu0 %v514
    %593 = vmatprep.subr.bf16.mxu0 0
    %594 = vmatpush1.bf16.msra.mxu0 %v515
    %595 = vmatprep.subr.bf16.mxu0 0
    %596 = vmatpush1.bf16.msra.mxu0 %v516
    %597 = vmatprep.subr.bf16.mxu0 0
    %598 = vmatpush1.bf16.msra.mxu0 %v517
    %599 = vmatprep.subr.bf16.mxu0 0
    %600 = vmatpush1.bf16.msra.mxu0 0
    %601 = vmatprep.subr.bf16.mxu0 0
    %602 = vmatpush1.bf16.msra.mxu0 0
    %603 = vmatprep.subr.bf16.mxu0 0
    %604 = vmatpush1.bf16.msra.mxu0 0
    %605 = vmatprep.subr.bf16.mxu0 0
    %606 = vmatpush1.bf16.msra.mxu0 0
    %607 = vmatprep.subr.bf16.mxu0 0
    %608 = vmatpush1.bf16.msra.mxu0 0
    %609 = vmatprep.subr.bf16.mxu0 0
    %610 = vmatpush1.bf16.msra.mxu0 0
    %611 = vmatprep.subr.bf16.mxu0 0
    %612 = vmatpush1.bf16.msra.mxu0 0
    %613 = vmatprep.subr.bf16.mxu0 0
    %614 = vmatpush1.bf16.msra.mxu0 0
    %615 = vmatprep.mubr.bf16.mxu0 0
    %616 = vmatmul.mubr.bf16.gmra.mrb[0].mxu0 %v392
    %v617 = vpop.f32.mrb[0].mxu0
    %v618 = vadd.f32 %v577, %v617
    %v619 = vpop.f32.mrb[0].mxu0
    %v620 = vpop.f32.mrb[0].mxu0
    %v621 = vadd.f32 %v580, %v620
    %v622 = vpop.f32.mrb[0].mxu0
    %623 = vdwg.mxu0
    %v624 = vmul.f32 %v618, 0.2
    %v625 = vmul.f32 %v621, 0.2
    %v626 = vmax.f32 %v618, %v624
    %v627 = vmax.f32 %v621, %v625
    %628 = vst [vmem:[#allocation3] sm:$0xff] 0.0
    %629 = vst [vmem:[#allocation3 + $0x8] sm:$0x3] 0.0
    %630 = vst [vmem:[#allocation3 + $0x10] sm:$0xff] 0.0
    %631 = vst [vmem:[#allocation3 + $0x18] sm:$0x3] 0.0
    %632 = vst [vmem:[#allocation3 + $0x1] sm:$0xff] %v626
    %s633 = scalar_lea.vmem [#allocation3], 16
    %634 = vst [vmem:[%s633 + $0x1] sm:$0xff] %v627
    %v635 = vld [vmem:[#allocation3] sm:$0x1]
    %v636 = vld [vmem:[#allocation3 + $0x2] sm:$0x1]
    %v637 = vld [vmem:[#allocation3 + $0x4] sm:$0x1]
    %v638 = vld [vmem:[#allocation3 + $0x6] sm:$0x1]
    %v640 = vrot.slane %v636, 7
    %v643 = vrot.slane %v637, 6
    %v646 = vrot.slane %v638, 5
    %v648 = vsel %vm174, %v635, %v640
    %v649 = vsel %vm176, %v648, %v643
    %v650 = vsel %vm178, %v649, %v646
    %v651 = vld [vmem:[#allocation3 + $0x1] sm:$0x1]
    %v652 = vld [vmem:[#allocation3 + $0x3] sm:$0x1]
    %v653 = vld [vmem:[#allocation3 + $0x5] sm:$0x1]
    %v654 = vld [vmem:[#allocation3 + $0x7] sm:$0x1]
    %v656 = vrot.slane %v652, 7
    %v659 = vrot.slane %v653, 6
    %v662 = vrot.slane %v654, 5
    %v664 = vsel %vm174, %v651, %v656
    %v665 = vsel %vm176, %v664, %v659
    %v666 = vsel %vm178, %v665, %v662
    %v667 = vld [vmem:[#allocation3 + $0x8] sm:$0x1]
    %v668 = vrot.slane %v637, 7
    %v670 = vrot.slane %v638, 6
    %v673 = vrot.slane %v667, 5
    %v675 = vsel %vm174, %v636, %v668
    %v676 = vsel %vm176, %v675, %v670
    %v677 = vsel %vm178, %v676, %v673
    %v678 = vld [vmem:[%s633] sm:$0x1]
    %v679 = vld [vmem:[%s633 + $0x2] sm:$0x1]
    %v680 = vld [vmem:[%s633 + $0x4] sm:$0x1]
    %v681 = vld [vmem:[%s633 + $0x6] sm:$0x1]
    %v683 = vrot.slane %v679, 7
    %v686 = vrot.slane %v680, 6
    %v689 = vrot.slane %v681, 5
    %v691 = vsel %vm174, %v678, %v683
    %v692 = vsel %vm176, %v691, %v686
    %v693 = vsel %vm178, %v692, %v689
    %v694 = vld [vmem:[%s633 + $0x1] sm:$0x1]
    %v695 = vld [vmem:[%s633 + $0x3] sm:$0x1]
    %v696 = vld [vmem:[%s633 + $0x5] sm:$0x1]
    %v697 = vld [vmem:[%s633 + $0x7] sm:$0x1]
    %v699 = vrot.slane %v695, 7
    %v702 = vrot.slane %v696, 6
    %v705 = vrot.slane %v697, 5
    %v707 = vsel %vm174, %v694, %v699
    %v708 = vsel %vm176, %v707, %v702
    %v709 = vsel %vm178, %v708, %v705
    %v710 = vld [vmem:[%s633 + $0x8] sm:$0x1]
    %v711 = vrot.slane %v680, 7
    %v713 = vrot.slane %v681, 6
    %v716 = vrot.slane %v710, 5
    %v718 = vsel %vm174, %v679, %v711
    %v719 = vsel %vm176, %v718, %v713
    %v720 = vsel %vm178, %v719, %v716
    %v724 = vrot.slane %v693, 4
    %v725 = vrot.slane %v709, 4
    %v726 = vrot.slane %v720, 4
    %v730 = vsel %vm180, %v650, %v724
    %v731 = vsel %vm180, %v666, %v725
    %v732 = vsel %vm180, %v677, %v726
    %v733 = vld [vmem:[#allocation9 + $0xc0] sm:$0xf]
    %v734 = vld [vmem:[#allocation9 + $0xc4] sm:$0xf]
    %v735 = vld [vmem:[#allocation9 + $0xc8] sm:$0xf]
    %v736 = vld [vmem:[#allocation9 + $0xcc] sm:$0xf]
    %v737 = vld [vmem:[#allocation9 + $0xd0] sm:$0xf]
    %v738 = vld [vmem:[#allocation9 + $0xd4] sm:$0xf]
    %v739 = vld [vmem:[#allocation9 + $0xd8] sm:$0xf]
    %v740 = vld [vmem:[#allocation9 + $0xdc] sm:$0xf]
    %v741 = vld [vmem:[#allocation9 + $0xe0] sm:$0xf]
    %v742 = vld [vmem:[#allocation9 + $0xe4] sm:$0xf]
    %v743 = vld [vmem:[#allocation9 + $0xe8] sm:$0xf]
    %v744 = vld [vmem:[#allocation9 + $0xec] sm:$0xf]
    %v745 = vld [vmem:[#allocation9 + $0xf0] sm:$0xf]
    %v746 = vld [vmem:[#allocation9 + $0xf4] sm:$0xf]
    %v747 = vld [vmem:[#allocation9 + $0xf8] sm:$0xf]
    %v748 = vld [vmem:[#allocation9 + $0xfc] sm:$0xf]
    %v749 = vld [vmem:[#allocation9 + $0x100] sm:$0xf]
    %v750 = vld [vmem:[#allocation9 + $0x104] sm:$0xf]
    %v751 = vld [vmem:[#allocation9 + $0x108] sm:$0xf]
    %v752 = vld [vmem:[#allocation9 + $0x10c] sm:$0xf]
    %v753 = vld [vmem:[#allocation9 + $0x110] sm:$0xf]
    %v754 = vld [vmem:[#allocation9 + $0x114] sm:$0xf]
    %v755 = vld [vmem:[#allocation9 + $0x118] sm:$0xf]
    %v756 = vld [vmem:[#allocation9 + $0x11c] sm:$0xf]
    %v757 = vld [vmem:[#allocation9 + $0x120] sm:$0xf]
    %v758 = vld [vmem:[#allocation9 + $0x124] sm:$0xf]
    %v759 = vld [vmem:[#allocation9 + $0x128] sm:$0xf]
    %v760 = vld [vmem:[#allocation9 + $0x12c] sm:$0xf]
    %v761 = vld [vmem:[#allocation9 + $0x130] sm:$0xf]
    %v762 = vld [vmem:[#allocation9 + $0x134] sm:$0xf]
    %v763 = vld [vmem:[#allocation9 + $0x138] sm:$0xf]
    %v764 = vld [vmem:[#allocation9 + $0x13c] sm:$0xf]
    %v765 = vld [vmem:[#allocation9 + $0x140] sm:$0xf]
    %v766 = vld [vmem:[#allocation9 + $0x144] sm:$0xf]
    %v767 = vld [vmem:[#allocation9 + $0x148] sm:$0xf]
    %v768 = vld [vmem:[#allocation9 + $0x14c] sm:$0xf]
    %v769 = vld [vmem:[#allocation9 + $0x150] sm:$0xf]
    %v770 = vld [vmem:[#allocation9 + $0x154] sm:$0xf]
    %v771 = vld [vmem:[#allocation9 + $0x158] sm:$0xf]
    %v772 = vld [vmem:[#allocation9 + $0x15c] sm:$0xf]
    %v773 = vld [vmem:[#allocation9 + $0x160] sm:$0xf]
    %v774 = vld [vmem:[#allocation9 + $0x164] sm:$0xf]
    %v775 = vld [vmem:[#allocation9 + $0x168] sm:$0xf]
    %v776 = vld [vmem:[#allocation9 + $0x16c] sm:$0xf]
    %v777 = vld [vmem:[#allocation9 + $0x170] sm:$0xf]
    %v778 = vld [vmem:[#allocation9 + $0x174] sm:$0xf]
    %v779 = vld [vmem:[#allocation9 + $0x178] sm:$0xf]
    %v780 = vld [vmem:[#allocation9 + $0x17c] sm:$0xf]
    %v781 = vpack.c.bf16 %v730, %v730
    %v782 = vpack.c.bf16 %v731, %v731
    %v783 = vpack.c.bf16 %v732, %v732
    %v784 = vld [vmem:[%s2 + $0x1] sm:$0x1]
    %v785 = vlaneseq
    %v786 = vshrl.u32 %v785, 7
    %v787 = vsub.s32 0, %v786
    %v788 = vrot.slane %v784, %v787
    %v837 = vunpack.c.l.b16 %v733
    %v838 = vunpack.c.l.b16 %v734
    %v839 = vunpack.c.l.b16 %v735
    %v840 = vunpack.c.l.b16 %v736
    %v841 = vunpack.c.l.b16 %v737
    %v842 = vunpack.c.l.b16 %v738
    %v843 = vunpack.c.l.b16 %v739
    %v844 = vunpack.c.l.b16 %v740
    %v845 = vunpack.c.l.b16 %v741
    %v846 = vunpack.c.l.b16 %v742
    %v847 = vunpack.c.l.b16 %v743
    %v848 = vunpack.c.l.b16 %v744
    %v849 = vunpack.c.l.b16 %v745
    %v850 = vunpack.c.l.b16 %v746
    %v851 = vunpack.c.l.b16 %v747
    %v852 = vunpack.c.l.b16 %v748
    %v853 = vunpack.c.l.b16 %v749
    %v854 = vunpack.c.l.b16 %v750
    %v855 = vunpack.c.l.b16 %v751
    %v856 = vunpack.c.l.b16 %v752
    %v857 = vunpack.c.l.b16 %v753
    %v858 = vunpack.c.l.b16 %v754
    %v859 = vunpack.c.l.b16 %v755
    %v860 = vunpack.c.l.b16 %v756
    %v861 = vunpack.c.l.b16 %v757
    %v862 = vunpack.c.l.b16 %v758
    %v863 = vunpack.c.l.b16 %v759
    %v864 = vunpack.c.l.b16 %v760
    %v865 = vunpack.c.l.b16 %v761
    %v866 = vunpack.c.l.b16 %v762
    %v867 = vunpack.c.l.b16 %v763
    %v868 = vunpack.c.l.b16 %v764
    %v869 = vunpack.c.l.b16 %v765
    %v870 = vunpack.c.l.b16 %v766
    %v871 = vunpack.c.l.b16 %v767
    %v872 = vunpack.c.l.b16 %v768
    %v873 = vunpack.c.l.b16 %v769
    %v874 = vunpack.c.l.b16 %v770
    %v875 = vunpack.c.l.b16 %v771
    %v876 = vunpack.c.l.b16 %v772
    %v877 = vunpack.c.l.b16 %v773
    %v878 = vunpack.c.l.b16 %v774
    %v879 = vunpack.c.l.b16 %v775
    %v880 = vunpack.c.l.b16 %v776
    %v881 = vunpack.c.l.b16 %v777
    %v882 = vunpack.c.l.b16 %v778
    %v883 = vunpack.c.l.b16 %v779
    %v884 = vunpack.c.l.b16 %v780
    %v885 = vpack.c.b16 %v838, %v837
    %v886 = vpack.c.b16 %v840, %v839
    %v887 = vpack.c.b16 %v842, %v841
    %v888 = vpack.c.b16 %v844, %v843
    %v889 = vpack.c.b16 %v846, %v845
    %v890 = vpack.c.b16 %v848, %v847
    %v891 = vpack.c.b16 %v850, %v849
    %v892 = vpack.c.b16 %v852, %v851
    %v893 = vpack.c.b16 %v854, %v853
    %v894 = vpack.c.b16 %v856, %v855
    %v895 = vpack.c.b16 %v858, %v857
    %v896 = vpack.c.b16 %v860, %v859
    %v897 = vpack.c.b16 %v862, %v861
    %v898 = vpack.c.b16 %v864, %v863
    %v899 = vpack.c.b16 %v866, %v865
    %v900 = vpack.c.b16 %v868, %v867
    %v901 = vpack.c.b16 %v870, %v869
    %v902 = vpack.c.b16 %v872, %v871
    %v903 = vpack.c.b16 %v874, %v873
    %v904 = vpack.c.b16 %v876, %v875
    %v905 = vpack.c.b16 %v878, %v877
    %v906 = vpack.c.b16 %v880, %v879
    %v907 = vpack.c.b16 %v882, %v881
    %v908 = vpack.c.b16 %v884, %v883
    %933 = vmatprep.subr.bf16.mxu0 0
    %934 = vmatpush1.bf16.msra.mxu0 %v885
    %935 = vmatprep.subr.bf16.mxu0 0
    %936 = vmatpush1.bf16.msra.mxu0 %v886
    %937 = vmatprep.subr.bf16.mxu0 0
    %938 = vmatpush1.bf16.msra.mxu0 %v887
    %939 = vmatprep.subr.bf16.mxu0 0
    %940 = vmatpush1.bf16.msra.mxu0 %v888
    %941 = vmatprep.subr.bf16.mxu0 0
    %942 = vmatpush1.bf16.msra.mxu0 %v889
    %943 = vmatprep.subr.bf16.mxu0 0
    %944 = vmatpush1.bf16.msra.mxu0 %v890
    %945 = vmatprep.subr.bf16.mxu0 0
    %946 = vmatpush1.bf16.msra.mxu0 %v891
    %947 = vmatprep.subr.bf16.mxu0 0
    %948 = vmatpush1.bf16.msra.mxu0 %v892
    %949 = vmatprep.subr.bf16.mxu0 0
    %950 = vmatpush1.bf16.msra.mxu0 %v893
    %951 = vmatprep.subr.bf16.mxu0 0
    %952 = vmatpush1.bf16.msra.mxu0 %v894
    %953 = vmatprep.subr.bf16.mxu0 0
    %954 = vmatpush1.bf16.msra.mxu0 %v895
    %955 = vmatprep.subr.bf16.mxu0 0
    %956 = vmatpush1.bf16.msra.mxu0 %v896
    %957 = vmatprep.subr.bf16.mxu0 0
    %958 = vmatpush1.bf16.msra.mxu0 %v897
    %959 = vmatprep.subr.bf16.mxu0 0
    %960 = vmatpush1.bf16.msra.mxu0 %v898
    %961 = vmatprep.subr.bf16.mxu0 0
    %962 = vmatpush1.bf16.msra.mxu0 %v899
    %963 = vmatprep.subr.bf16.mxu0 0
    %964 = vmatpush1.bf16.msra.mxu0 %v900
    %965 = vmatprep.mubr.bf16.mxu0 %v782
    %966 = vmatmul.mubr.bf16.gmra.mrb[0].mxu0 %v781
    %v967 = vpop.f32.mrb[0].mxu0
    %v968 = vadd.f32 %v788, %v967
    %v969 = vpop.f32.mrb[0].mxu0
    %v970 = vpop.f32.mrb[0].mxu0
    %v971 = vpop.f32.mrb[0].mxu0
    %972 = vdwg.mxu0
    %973 = vmatprep.subr.bf16.mxu0 0
    %974 = vmatpush1.bf16.msra.mxu0 %v901
    %975 = vmatprep.subr.bf16.mxu0 0
    %976 = vmatpush1.bf16.msra.mxu0 %v902
    %977 = vmatprep.subr.bf16.mxu0 0
    %978 = vmatpush1.bf16.msra.mxu0 %v903
    %979 = vmatprep.subr.bf16.mxu0 0
    %980 = vmatpush1.bf16.msra.mxu0 %v904
    %981 = vmatprep.subr.bf16.mxu0 0
    %982 = vmatpush1.bf16.msra.mxu0 %v905
    %983 = vmatprep.subr.bf16.mxu0 0
    %984 = vmatpush1.bf16.msra.mxu0 %v906
    %985 = vmatprep.subr.bf16.mxu0 0
    %986 = vmatpush1.bf16.msra.mxu0 %v907
    %987 = vmatprep.subr.bf16.mxu0 0
    %988 = vmatpush1.bf16.msra.mxu0 %v908
    %989 = vmatprep.subr.bf16.mxu0 0
    %990 = vmatpush1.bf16.msra.mxu0 0
    %991 = vmatprep.subr.bf16.mxu0 0
    %992 = vmatpush1.bf16.msra.mxu0 0
    %993 = vmatprep.subr.bf16.mxu0 0
    %994 = vmatpush1.bf16.msra.mxu0 0
    %995 = vmatprep.subr.bf16.mxu0 0
    %996 = vmatpush1.bf16.msra.mxu0 0
    %997 = vmatprep.subr.bf16.mxu0 0
    %998 = vmatpush1.bf16.msra.mxu0 0
    %999 = vmatprep.subr.bf16.mxu0 0
    %1000 = vmatpush1.bf16.msra.mxu0 0
    %1001 = vmatprep.subr.bf16.mxu0 0
    %1002 = vmatpush1.bf16.msra.mxu0 0
    %1003 = vmatprep.subr.bf16.mxu0 0
    %1004 = vmatpush1.bf16.msra.mxu0 0
    %1005 = vmatprep.mubr.bf16.mxu0 0
    %1006 = vmatmul.mubr.bf16.gmra.mrb[0].mxu0 %v783
    %v1007 = vpop.f32.mrb[0].mxu0
    %v1008 = vadd.f32 %v968, %v1007
    %v1009 = vpop.f32.mrb[0].mxu0
    %v1010 = vpop.f32.mrb[0].mxu0
    %v1011 = vpop.f32.mrb[0].mxu0
    %1012 = vdwg.mxu0
    %v1013 = vmul.f32 %v1008, 0.2
    %v1014 = vmax.f32 %v1008, %v1013
    %v1015 = vld [vmem:[%s2 + $0x4] sm:$0x1]
    %v1016 = vlaneseq
    %v1017 = vshrl.u32 %v1016, 7
    %v1018 = vsub.s32 0, %v1017
    %v1019 = vrot.slane %v1015, %v1018
    %v1020 = vadd.f32 %v1014, %v1019
    %1021 = vst [vmem:[#allocation4] sm:$0x3f] 0.0
    %1022 = vst [vmem:[#allocation4 + $0x8] sm:$0x3f] 0.0
    %1023 = vst [vmem:[#allocation4 + $0x1] sm:$0xf] %v1020
    %s1024 = scalar_lea.vmem [#allocation4], 8
    %1025 = vst [vmem:[%s1024 - $0x3] sm:$0xf0] %v1020
    %v1026 = vld [vmem:[#allocation4] sm:$0x1]
    %v1027 = vld [vmem:[#allocation4 + $0x2] sm:$0x1]
    %v1029 = vrot.slane %v1027, 7
    %v1031 = vsel %vm174, %v1026, %v1029
    %v1032 = vld [vmem:[#allocation4 + $0x1] sm:$0x1]
    %v1033 = vld [vmem:[#allocation4 + $0x3] sm:$0x1]
    %v1035 = vrot.slane %v1033, 7
    %v1037 = vsel %vm174, %v1032, %v1035
    %v1038 = vld [vmem:[#allocation4 + $0x4] sm:$0x1]
    %v1040 = vrot.slane %v1038, 7
    %v1042 = vsel %vm174, %v1027, %v1040
    %v1043 = vld [vmem:[%s1024] sm:$0x1]
    %v1044 = vld [vmem:[%s1024 + $0x2] sm:$0x1]
    %v1046 = vrot.slane %v1044, 7
    %v1048 = vsel %vm174, %v1043, %v1046
    %v1049 = vld [vmem:[%s1024 + $0x1] sm:$0x1]
    %v1050 = vld [vmem:[%s1024 + $0x3] sm:$0x1]
    %v1052 = vrot.slane %v1050, 7
    %v1054 = vsel %vm174, %v1049, %v1052
    %v1055 = vld [vmem:[%s1024 + $0x4] sm:$0x1]
    %v1057 = vrot.slane %v1055, 7
    %v1059 = vsel %vm174, %v1044, %v1057
    %v1063 = vrot.slane %v1048, 6
    %v1064 = vrot.slane %v1054, 6
    %v1065 = vrot.slane %v1059, 6
    %v1069 = vsel %vm176, %v1031, %v1063
    %v1070 = vsel %vm176, %v1037, %v1064
    %v1071 = vsel %vm176, %v1042, %v1065
    %v1072 = vld [vmem:[#allocation9 + $0x180] sm:$0xf]
    %v1073 = vld [vmem:[#allocation9 + $0x184] sm:$0xf]
    %v1074 = vld [vmem:[#allocation9 + $0x188] sm:$0xf]
    %v1075 = vld [vmem:[#allocation9 + $0x18c] sm:$0xf]
    %v1076 = vld [vmem:[#allocation9 + $0x190] sm:$0xf]
    %v1077 = vld [vmem:[#allocation9 + $0x194] sm:$0xf]
    %v1078 = vld [vmem:[#allocation9 + $0x198] sm:$0xf]
    %v1079 = vld [vmem:[#allocation9 + $0x19c] sm:$0xf]
    %v1080 = vld [vmem:[#allocation9 + $0x1a0] sm:$0xf]
    %v1081 = vld [vmem:[#allocation9 + $0x1a4] sm:$0xf]
    %v1082 = vld [vmem:[#allocation9 + $0x1a8] sm:$0xf]
    %v1083 = vld [vmem:[#allocation9 + $0x1ac] sm:$0xf]
    %v1084 = vld [vmem:[#allocation9 + $0x1b0] sm:$0xf]
    %v1085 = vld [vmem:[#allocation9 + $0x1b4] sm:$0xf]
    %v1086 = vld [vmem:[#allocation9 + $0x1b8] sm:$0xf]
    %v1087 = vld [vmem:[#allocation9 + $0x1bc] sm:$0xf]
    %v1088 = vld [vmem:[#allocation9 + $0x1c0] sm:$0xf]
    %v1089 = vld [vmem:[#allocation9 + $0x1c4] sm:$0xf]
    %v1090 = vld [vmem:[#allocation9 + $0x1c8] sm:$0xf]
    %v1091 = vld [vmem:[#allocation9 + $0x1cc] sm:$0xf]
    %v1092 = vld [vmem:[#allocation9 + $0x1d0] sm:$0xf]
    %v1093 = vld [vmem:[#allocation9 + $0x1d4] sm:$0xf]
    %v1094 = vld [vmem:[#allocation9 + $0x1d8] sm:$0xf]
    %v1095 = vld [vmem:[#allocation9 + $0x1dc] sm:$0xf]
    %v1096 = vld [vmem:[#allocation9 + $0x1e0] sm:$0xf]
    %v1097 = vld [vmem:[#allocation9 + $0x1e4] sm:$0xf]
    %v1098 = vld [vmem:[#allocation9 + $0x1e8] sm:$0xf]
    %v1099 = vld [vmem:[#allocation9 + $0x1ec] sm:$0xf]
    %v1100 = vld [vmem:[#allocation9 + $0x1f0] sm:$0xf]
    %v1101 = vld [vmem:[#allocation9 + $0x1f4] sm:$0xf]
    %v1102 = vld [vmem:[#allocation9 + $0x1f8] sm:$0xf]
    %v1103 = vld [vmem:[#allocation9 + $0x1fc] sm:$0xf]
    %v1104 = vld [vmem:[#allocation9 + $0x200] sm:$0xf]
    %v1105 = vld [vmem:[#allocation9 + $0x204] sm:$0xf]
    %v1106 = vld [vmem:[#allocation9 + $0x208] sm:$0xf]
    %v1107 = vld [vmem:[#allocation9 + $0x20c] sm:$0xf]
    %v1108 = vld [vmem:[#allocation9 + $0x210] sm:$0xf]
    %v1109 = vld [vmem:[#allocation9 + $0x214] sm:$0xf]
    %v1110 = vld [vmem:[#allocation9 + $0x218] sm:$0xf]
    %v1111 = vld [vmem:[#allocation9 + $0x21c] sm:$0xf]
    %v1112 = vld [vmem:[#allocation9 + $0x220] sm:$0xf]
    %v1113 = vld [vmem:[#allocation9 + $0x224] sm:$0xf]
    %v1114 = vld [vmem:[#allocation9 + $0x228] sm:$0xf]
    %v1115 = vld [vmem:[#allocation9 + $0x22c] sm:$0xf]
    %v1116 = vld [vmem:[#allocation9 + $0x230] sm:$0xf]
    %v1117 = vld [vmem:[#allocation9 + $0x234] sm:$0xf]
    %v1118 = vld [vmem:[#allocation9 + $0x238] sm:$0xf]
    %v1119 = vld [vmem:[#allocation9 + $0x23c] sm:$0xf]
    %v1120 = vpack.c.bf16 %v1069, %v1069
    %v1121 = vpack.c.bf16 %v1070, %v1070
    %v1122 = vpack.c.bf16 %v1071, %v1071
    %v1123 = vld [vmem:[%s2 + $0x2] sm:$0x1]
    %v1124 = vlaneseq
    %v1125 = vshrl.u32 %v1124, 7
    %v1126 = vsub.s32 0, %v1125
    %v1127 = vrot.slane %v1123, %v1126
    %v1176 = vunpack.c.l.b16 %v1072
    %v1177 = vunpack.c.l.b16 %v1073
    %v1178 = vunpack.c.l.b16 %v1074
    %v1179 = vunpack.c.l.b16 %v1075
    %v1180 = vunpack.c.l.b16 %v1076
    %v1181 = vunpack.c.l.b16 %v1077
    %v1182 = vunpack.c.l.b16 %v1078
    %v1183 = vunpack.c.l.b16 %v1079
    %v1184 = vunpack.c.l.b16 %v1080
    %v1185 = vunpack.c.l.b16 %v1081
    %v1186 = vunpack.c.l.b16 %v1082
    %v1187 = vunpack.c.l.b16 %v1083
    %v1188 = vunpack.c.l.b16 %v1084
    %v1189 = vunpack.c.l.b16 %v1085
    %v1190 = vunpack.c.l.b16 %v1086
    %v1191 = vunpack.c.l.b16 %v1087
    %v1192 = vunpack.c.l.b16 %v1088
    %v1193 = vunpack.c.l.b16 %v1089
    %v1194 = vunpack.c.l.b16 %v1090
    %v1195 = vunpack.c.l.b16 %v1091
    %v1196 = vunpack.c.l.b16 %v1092
    %v1197 = vunpack.c.l.b16 %v1093
    %v1198 = vunpack.c.l.b16 %v1094
    %v1199 = vunpack.c.l.b16 %v1095
    %v1200 = vunpack.c.l.b16 %v1096
    %v1201 = vunpack.c.l.b16 %v1097
    %v1202 = vunpack.c.l.b16 %v1098
    %v1203 = vunpack.c.l.b16 %v1099
    %v1204 = vunpack.c.l.b16 %v1100
    %v1205 = vunpack.c.l.b16 %v1101
    %v1206 = vunpack.c.l.b16 %v1102
    %v1207 = vunpack.c.l.b16 %v1103
    %v1208 = vunpack.c.l.b16 %v1104
    %v1209 = vunpack.c.l.b16 %v1105
    %v1210 = vunpack.c.l.b16 %v1106
    %v1211 = vunpack.c.l.b16 %v1107
    %v1212 = vunpack.c.l.b16 %v1108
    %v1213 = vunpack.c.l.b16 %v1109
    %v1214 = vunpack.c.l.b16 %v1110
    %v1215 = vunpack.c.l.b16 %v1111
    %v1216 = vunpack.c.l.b16 %v1112
    %v1217 = vunpack.c.l.b16 %v1113
    %v1218 = vunpack.c.l.b16 %v1114
    %v1219 = vunpack.c.l.b16 %v1115
    %v1220 = vunpack.c.l.b16 %v1116
    %v1221 = vunpack.c.l.b16 %v1117
    %v1222 = vunpack.c.l.b16 %v1118
    %v1223 = vunpack.c.l.b16 %v1119
    %v1224 = vpack.c.b16 %v1177, %v1176
    %v1225 = vpack.c.b16 %v1179, %v1178
    %v1226 = vpack.c.b16 %v1181, %v1180
    %v1227 = vpack.c.b16 %v1183, %v1182
    %v1228 = vpack.c.b16 %v1185, %v1184
    %v1229 = vpack.c.b16 %v1187, %v1186
    %v1230 = vpack.c.b16 %v1189, %v1188
    %v1231 = vpack.c.b16 %v1191, %v1190
    %v1232 = vpack.c.b16 %v1193, %v1192
    %v1233 = vpack.c.b16 %v1195, %v1194
    %v1234 = vpack.c.b16 %v1197, %v1196
    %v1235 = vpack.c.b16 %v1199, %v1198
    %v1236 = vpack.c.b16 %v1201, %v1200
    %v1237 = vpack.c.b16 %v1203, %v1202
    %v1238 = vpack.c.b16 %v1205, %v1204
    %v1239 = vpack.c.b16 %v1207, %v1206
    %v1240 = vpack.c.b16 %v1209, %v1208
    %v1241 = vpack.c.b16 %v1211, %v1210
    %v1242 = vpack.c.b16 %v1213, %v1212
    %v1243 = vpack.c.b16 %v1215, %v1214
    %v1244 = vpack.c.b16 %v1217, %v1216
    %v1245 = vpack.c.b16 %v1219, %v1218
    %v1246 = vpack.c.b16 %v1221, %v1220
    %v1247 = vpack.c.b16 %v1223, %v1222
    %1272 = vmatprep.subr.bf16.mxu0 0
    %1273 = vmatpush1.bf16.msra.mxu0 %v1224
    %1274 = vmatprep.subr.bf16.mxu0 0
    %1275 = vmatpush1.bf16.msra.mxu0 %v1225
    %1276 = vmatprep.subr.bf16.mxu0 0
    %1277 = vmatpush1.bf16.msra.mxu0 %v1226
    %1278 = vmatprep.subr.bf16.mxu0 0
    %1279 = vmatpush1.bf16.msra.mxu0 %v1227
    %1280 = vmatprep.subr.bf16.mxu0 0
    %1281 = vmatpush1.bf16.msra.mxu0 %v1228
    %1282 = vmatprep.subr.bf16.mxu0 0
    %1283 = vmatpush1.bf16.msra.mxu0 %v1229
    %1284 = vmatprep.subr.bf16.mxu0 0
    %1285 = vmatpush1.bf16.msra.mxu0 %v1230
    %1286 = vmatprep.subr.bf16.mxu0 0
    %1287 = vmatpush1.bf16.msra.mxu0 %v1231
    %1288 = vmatprep.subr.bf16.mxu0 0
    %1289 = vmatpush1.bf16.msra.mxu0 %v1232
    %1290 = vmatprep.subr.bf16.mxu0 0
    %1291 = vmatpush1.bf16.msra.mxu0 %v1233
    %1292 = vmatprep.subr.bf16.mxu0 0
    %1293 = vmatpush1.bf16.msra.mxu0 %v1234
    %1294 = vmatprep.subr.bf16.mxu0 0
    %1295 = vmatpush1.bf16.msra.mxu0 %v1235
    %1296 = vmatprep.subr.bf16.mxu0 0
    %1297 = vmatpush1.bf16.msra.mxu0 %v1236
    %1298 = vmatprep.subr.bf16.mxu0 0
    %1299 = vmatpush1.bf16.msra.mxu0 %v1237
    %1300 = vmatprep.subr.bf16.mxu0 0
    %1301 = vmatpush1.bf16.msra.mxu0 %v1238
    %1302 = vmatprep.subr.bf16.mxu0 0
    %1303 = vmatpush1.bf16.msra.mxu0 %v1239
    %1304 = vmatprep.mubr.bf16.mxu0 %v1121
    %1305 = vmatmul.mubr.bf16.gmra.mrb[0].mxu0 %v1120
    %v1306 = vpop.f32.mrb[0].mxu0
    %v1307 = vadd.f32 %v1127, %v1306
    %v1308 = vpop.f32.mrb[0].mxu0
    %v1309 = vpop.f32.mrb[0].mxu0
    %v1310 = vpop.f32.mrb[0].mxu0
    %1311 = vdwg.mxu0
    %1312 = vmatprep.subr.bf16.mxu0 0
    %1313 = vmatpush1.bf16.msra.mxu0 %v1240
    %1314 = vmatprep.subr.bf16.mxu0 0
    %1315 = vmatpush1.bf16.msra.mxu0 %v1241
    %1316 = vmatprep.subr.bf16.mxu0 0
    %1317 = vmatpush1.bf16.msra.mxu0 %v1242
    %1318 = vmatprep.subr.bf16.mxu0 0
    %1319 = vmatpush1.bf16.msra.mxu0 %v1243
    %1320 = vmatprep.subr.bf16.mxu0 0
    %1321 = vmatpush1.bf16.msra.mxu0 %v1244
    %1322 = vmatprep.subr.bf16.mxu0 0
    %1323 = vmatpush1.bf16.msra.mxu0 %v1245
    %1324 = vmatprep.subr.bf16.mxu0 0
    %1325 = vmatpush1.bf16.msra.mxu0 %v1246
    %1326 = vmatprep.subr.bf16.mxu0 0
    %1327 = vmatpush1.bf16.msra.mxu0 %v1247
    %1328 = vmatprep.subr.bf16.mxu0 0
    %1329 = vmatpush1.bf16.msra.mxu0 0
    %1330 = vmatprep.subr.bf16.mxu0 0
    %1331 = vmatpush1.bf16.msra.mxu0 0
    %1332 = vmatprep.subr.bf16.mxu0 0
    %1333 = vmatpush1.bf16.msra.mxu0 0
    %1334 = vmatprep.subr.bf16.mxu0 0
    %1335 = vmatpush1.bf16.msra.mxu0 0
    %1336 = vmatprep.subr.bf16.mxu0 0
    %1337 = vmatpush1.bf16.msra.mxu0 0
    %1338 = vmatprep.subr.bf16.mxu0 0
    %1339 = vmatpush1.bf16.msra.mxu0 0
    %1340 = vmatprep.subr.bf16.mxu0 0
    %1341 = vmatpush1.bf16.msra.mxu0 0
    %1342 = vmatprep.subr.bf16.mxu0 0
    %1343 = vmatpush1.bf16.msra.mxu0 0
    %1344 = vmatprep.mubr.bf16.mxu0 0
    %1345 = vmatmul.mubr.bf16.gmra.mrb[0].mxu0 %v1122
    %v1346 = vpop.f32.mrb[0].mxu0
    %v1347 = vadd.f32 %v1307, %v1346
    %v1348 = vpop.f32.mrb[0].mxu0
    %v1349 = vpop.f32.mrb[0].mxu0
    %v1350 = vpop.f32.mrb[0].mxu0
    %1351 = vdwg.mxu0
    %v1352 = vmul.f32 %v1347, 0.2
    %v1353 = vmax.f32 %v1347, %v1352
    %v1354 = vld [vmem:[%s2 + $0x5] sm:$0x1]
    %v1355 = vlaneseq
    %v1356 = vshrl.u32 %v1355, 7
    %v1357 = vsub.s32 0, %v1356
    %v1358 = vrot.slane %v1354, %v1357
    %v1359 = vadd.f32 %v1353, %v1358
    %1360 = vst [vmem:[#allocation5] sm:$0xf] 0.0
    %1361 = vst [vmem:[#allocation5 + $0x4] sm:$0xf] 0.0
    %1362 = vst [vmem:[#allocation5 + $0x1] sm:$0x3] %v1359
    %s1363 = scalar_lea.vmem [#allocation5], 4
    %1364 = vst [vmem:[%s1363 - $0x1] sm:$0xc] %v1359
    %v1365 = vld [vmem:[#allocation5] sm:$0x1]
    %v1366 = vld [vmem:[#allocation5 + $0x1] sm:$0x1]
    %v1367 = vld [vmem:[#allocation5 + $0x2] sm:$0x1]
    %v1368 = vld [vmem:[%s1363] sm:$0x1]
    %v1369 = vld [vmem:[%s1363 + $0x1] sm:$0x1]
    %v1370 = vld [vmem:[%s1363 + $0x2] sm:$0x1]
    %v1374 = vrot.slane %v1368, 7
    %v1375 = vrot.slane %v1369, 7
    %v1376 = vrot.slane %v1370, 7
    %v1380 = vsel %vm174, %v1365, %v1374
    %v1381 = vsel %vm174, %v1366, %v1375
    %v1382 = vsel %vm174, %v1367, %v1376
    %v1383 = vld [vmem:[#allocation9 + $0x240] sm:$0xf]
    %v1384 = vld [vmem:[#allocation9 + $0x244] sm:$0xf]
    %v1385 = vld [vmem:[#allocation9 + $0x248] sm:$0xf]
    %v1386 = vld [vmem:[#allocation9 + $0x24c] sm:$0xf]
    %v1387 = vld [vmem:[#allocation9 + $0x250] sm:$0xf]
    %v1388 = vld [vmem:[#allocation9 + $0x254] sm:$0xf]
    %v1389 = vld [vmem:[#allocation9 + $0x258] sm:$0xf]
    %v1390 = vld [vmem:[#allocation9 + $0x25c] sm:$0xf]
    %v1391 = vld [vmem:[#allocation9 + $0x260] sm:$0xf]
    %v1392 = vld [vmem:[#allocation9 + $0x264] sm:$0xf]
    %v1393 = vld [vmem:[#allocation9 + $0x268] sm:$0xf]
    %v1394 = vld [vmem:[#allocation9 + $0x26c] sm:$0xf]
    %v1395 = vld [vmem:[#allocation9 + $0x270] sm:$0xf]
    %v1396 = vld [vmem:[#allocation9 + $0x274] sm:$0xf]
    %v1397 = vld [vmem:[#allocation9 + $0x278] sm:$0xf]
    %v1398 = vld [vmem:[#allocation9 + $0x27c] sm:$0xf]
    %v1399 = vld [vmem:[#allocation9 + $0x280] sm:$0xf]
    %v1400 = vld [vmem:[#allocation9 + $0x284] sm:$0xf]
    %v1401 = vld [vmem:[#allocation9 + $0x288] sm:$0xf]
    %v1402 = vld [vmem:[#allocation9 + $0x28c] sm:$0xf]
    %v1403 = vld [vmem:[#allocation9 + $0x290] sm:$0xf]
    %v1404 = vld [vmem:[#allocation9 + $0x294] sm:$0xf]
    %v1405 = vld [vmem:[#allocation9 + $0x298] sm:$0xf]
    %v1406 = vld [vmem:[#allocation9 + $0x29c] sm:$0xf]
    %v1407 = vld [vmem:[#allocation9 + $0x2a0] sm:$0xf]
    %v1408 = vld [vmem:[#allocation9 + $0x2a4] sm:$0xf]
    %v1409 = vld [vmem:[#allocation9 + $0x2a8] sm:$0xf]
    %v1410 = vld [vmem:[#allocation9 + $0x2ac] sm:$0xf]
    %v1411 = vld [vmem:[#allocation9 + $0x2b0] sm:$0xf]
    %v1412 = vld [vmem:[#allocation9 + $0x2b4] sm:$0xf]
    %v1413 = vld [vmem:[#allocation9 + $0x2b8] sm:$0xf]
    %v1414 = vld [vmem:[#allocation9 + $0x2bc] sm:$0xf]
    %v1415 = vld [vmem:[#allocation9 + $0x2c0] sm:$0xf]
    %v1416 = vld [vmem:[#allocation9 + $0x2c4] sm:$0xf]
    %v1417 = vld [vmem:[#allocation9 + $0x2c8] sm:$0xf]
    %v1418 = vld [vmem:[#allocation9 + $0x2cc] sm:$0xf]
    %v1419 = vld [vmem:[#allocation9 + $0x2d0] sm:$0xf]
    %v1420 = vld [vmem:[#allocation9 + $0x2d4] sm:$0xf]
    %v1421 = vld [vmem:[#allocation9 + $0x2d8] sm:$0xf]
    %v1422 = vld [vmem:[#allocation9 + $0x2dc] sm:$0xf]
    %v1423 = vld [vmem:[#allocation9 + $0x2e0] sm:$0xf]
    %v1424 = vld [vmem:[#allocation9 + $0x2e4] sm:$0xf]
    %v1425 = vld [vmem:[#allocation9 + $0x2e8] sm:$0xf]
    %v1426 = vld [vmem:[#allocation9 + $0x2ec] sm:$0xf]
    %v1427 = vld [vmem:[#allocation9 + $0x2f0] sm:$0xf]
    %v1428 = vld [vmem:[#allocation9 + $0x2f4] sm:$0xf]
    %v1429 = vld [vmem:[#allocation9 + $0x2f8] sm:$0xf]
    %v1430 = vld [vmem:[#allocation9 + $0x2fc] sm:$0xf]
    %v1431 = vpack.c.bf16 %v1380, %v1380
    %v1432 = vpack.c.bf16 %v1381, %v1381
    %v1433 = vpack.c.bf16 %v1382, %v1382
    %v1434 = vld [vmem:[%s2 + $0x3] sm:$0x1]
    %v1435 = vlaneseq
    %v1436 = vshrl.u32 %v1435, 7
    %v1437 = vsub.s32 0, %v1436
    %v1438 = vrot.slane %v1434, %v1437
    %v1487 = vunpack.c.l.b16 %v1383
    %v1488 = vunpack.c.l.b16 %v1384
    %v1489 = vunpack.c.l.b16 %v1385
    %v1490 = vunpack.c.l.b16 %v1386
    %v1491 = vunpack.c.l.b16 %v1387
    %v1492 = vunpack.c.l.b16 %v1388
    %v1493 = vunpack.c.l.b16 %v1389
    %v1494 = vunpack.c.l.b16 %v1390
    %v1495 = vunpack.c.l.b16 %v1391
    %v1496 = vunpack.c.l.b16 %v1392
    %v1497 = vunpack.c.l.b16 %v1393
    %v1498 = vunpack.c.l.b16 %v1394
    %v1499 = vunpack.c.l.b16 %v1395
    %v1500 = vunpack.c.l.b16 %v1396
    %v1501 = vunpack.c.l.b16 %v1397
    %v1502 = vunpack.c.l.b16 %v1398
    %v1503 = vunpack.c.l.b16 %v1399
    %v1504 = vunpack.c.l.b16 %v1400
    %v1505 = vunpack.c.l.b16 %v1401
    %v1506 = vunpack.c.l.b16 %v1402
    %v1507 = vunpack.c.l.b16 %v1403
    %v1508 = vunpack.c.l.b16 %v1404
    %v1509 = vunpack.c.l.b16 %v1405
    %v1510 = vunpack.c.l.b16 %v1406
    %v1511 = vunpack.c.l.b16 %v1407
    %v1512 = vunpack.c.l.b16 %v1408
    %v1513 = vunpack.c.l.b16 %v1409
    %v1514 = vunpack.c.l.b16 %v1410
    %v1515 = vunpack.c.l.b16 %v1411
    %v1516 = vunpack.c.l.b16 %v1412
    %v1517 = vunpack.c.l.b16 %v1413
    %v1518 = vunpack.c.l.b16 %v1414
    %v1519 = vunpack.c.l.b16 %v1415
    %v1520 = vunpack.c.l.b16 %v1416
    %v1521 = vunpack.c.l.b16 %v1417
    %v1522 = vunpack.c.l.b16 %v1418
    %v1523 = vunpack.c.l.b16 %v1419
    %v1524 = vunpack.c.l.b16 %v1420
    %v1525 = vunpack.c.l.b16 %v1421
    %v1526 = vunpack.c.l.b16 %v1422
    %v1527 = vunpack.c.l.b16 %v1423
    %v1528 = vunpack.c.l.b16 %v1424
    %v1529 = vunpack.c.l.b16 %v1425
    %v1530 = vunpack.c.l.b16 %v1426
    %v1531 = vunpack.c.l.b16 %v1427
    %v1532 = vunpack.c.l.b16 %v1428
    %v1533 = vunpack.c.l.b16 %v1429
    %v1534 = vunpack.c.l.b16 %v1430
    %v1535 = vpack.c.b16 %v1488, %v1487
    %v1536 = vpack.c.b16 %v1490, %v1489
    %v1537 = vpack.c.b16 %v1492, %v1491
    %v1538 = vpack.c.b16 %v1494, %v1493
    %v1539 = vpack.c.b16 %v1496, %v1495
    %v1540 = vpack.c.b16 %v1498, %v1497
    %v1541 = vpack.c.b16 %v1500, %v1499
    %v1542 = vpack.c.b16 %v1502, %v1501
    %v1543 = vpack.c.b16 %v1504, %v1503
    %v1544 = vpack.c.b16 %v1506, %v1505
    %v1545 = vpack.c.b16 %v1508, %v1507
    %v1546 = vpack.c.b16 %v1510, %v1509
    %v1547 = vpack.c.b16 %v1512, %v1511
    %v1548 = vpack.c.b16 %v1514, %v1513
    %v1549 = vpack.c.b16 %v1516, %v1515
    %v1550 = vpack.c.b16 %v1518, %v1517
    %v1551 = vpack.c.b16 %v1520, %v1519
    %v1552 = vpack.c.b16 %v1522, %v1521
    %v1553 = vpack.c.b16 %v1524, %v1523
    %v1554 = vpack.c.b16 %v1526, %v1525
    %v1555 = vpack.c.b16 %v1528, %v1527
    %v1556 = vpack.c.b16 %v1530, %v1529
    %v1557 = vpack.c.b16 %v1532, %v1531
    %v1558 = vpack.c.b16 %v1534, %v1533
    %1583 = vmatprep.subr.bf16.mxu0 0
    %1584 = vmatpush1.bf16.msra.mxu0 %v1535
    %1585 = vmatprep.subr.bf16.mxu0 0
    %1586 = vmatpush1.bf16.msra.mxu0 %v1536
    %1587 = vmatprep.subr.bf16.mxu0 0
    %1588 = vmatpush1.bf16.msra.mxu0 %v1537
    %1589 = vmatprep.subr.bf16.mxu0 0
    %1590 = vmatpush1.bf16.msra.mxu0 %v1538
    %1591 = vmatprep.subr.bf16.mxu0 0
    %1592 = vmatpush1.bf16.msra.mxu0 %v1539
    %1593 = vmatprep.subr.bf16.mxu0 0
    %1594 = vmatpush1.bf16.msra.mxu0 %v1540
    %1595 = vmatprep.subr.bf16.mxu0 0
    %1596 = vmatpush1.bf16.msra.mxu0 %v1541
    %1597 = vmatprep.subr.bf16.mxu0 0
    %1598 = vmatpush1.bf16.msra.mxu0 %v1542
    %1599 = vmatprep.subr.bf16.mxu0 0
    %1600 = vmatpush1.bf16.msra.mxu0 %v1543
    %1601 = vmatprep.subr.bf16.mxu0 0
    %1602 = vmatpush1.bf16.msra.mxu0 %v1544
    %1603 = vmatprep.subr.bf16.mxu0 0
    %1604 = vmatpush1.bf16.msra.mxu0 %v1545
    %1605 = vmatprep.subr.bf16.mxu0 0
    %1606 = vmatpush1.bf16.msra.mxu0 %v1546
    %1607 = vmatprep.subr.bf16.mxu0 0
    %1608 = vmatpush1.bf16.msra.mxu0 %v1547
    %1609 = vmatprep.subr.bf16.mxu0 0
    %1610 = vmatpush1.bf16.msra.mxu0 %v1548
    %1611 = vmatprep.subr.bf16.mxu0 0
    %1612 = vmatpush1.bf16.msra.mxu0 %v1549
    %1613 = vmatprep.subr.bf16.mxu0 0
    %1614 = vmatpush1.bf16.msra.mxu0 %v1550
    %1615 = vmatprep.mubr.bf16.mxu0 %v1432
    %1616 = vmatmul.mubr.bf16.gmra.mrb[0].mxu0 %v1431
    %v1617 = vpop.f32.mrb[0].mxu0
    %v1618 = vadd.f32 %v1438, %v1617
    %v1619 = vpop.f32.mrb[0].mxu0
    %v1620 = vpop.f32.mrb[0].mxu0
    %v1621 = vpop.f32.mrb[0].mxu0
    %1622 = vdwg.mxu0
    %1623 = vmatprep.subr.bf16.mxu0 0
    %1624 = vmatpush1.bf16.msra.mxu0 %v1551
    %1625 = vmatprep.subr.bf16.mxu0 0
    %1626 = vmatpush1.bf16.msra.mxu0 %v1552
    %1627 = vmatprep.subr.bf16.mxu0 0
    %1628 = vmatpush1.bf16.msra.mxu0 %v1553
    %1629 = vmatprep.subr.bf16.mxu0 0
    %1630 = vmatpush1.bf16.msra.mxu0 %v1554
    %1631 = vmatprep.subr.bf16.mxu0 0
    %1632 = vmatpush1.bf16.msra.mxu0 %v1555
    %1633 = vmatprep.subr.bf16.mxu0 0
    %1634 = vmatpush1.bf16.msra.mxu0 %v1556
    %1635 = vmatprep.subr.bf16.mxu0 0
    %1636 = vmatpush1.bf16.msra.mxu0 %v1557
    %1637 = vmatprep.subr.bf16.mxu0 0
    %1638 = vmatpush1.bf16.msra.mxu0 %v1558
    %1639 = vmatprep.subr.bf16.mxu0 0
    %1640 = vmatpush1.bf16.msra.mxu0 0
    %1641 = vmatprep.subr.bf16.mxu0 0
    %1642 = vmatpush1.bf16.msra.mxu0 0
    %1643 = vmatprep.subr.bf16.mxu0 0
    %1644 = vmatpush1.bf16.msra.mxu0 0
    %1645 = vmatprep.subr.bf16.mxu0 0
    %1646 = vmatpush1.bf16.msra.mxu0 0
    %1647 = vmatprep.subr.bf16.mxu0 0
    %1648 = vmatpush1.bf16.msra.mxu0 0
    %1649 = vmatprep.subr.bf16.mxu0 0
    %1650 = vmatpush1.bf16.msra.mxu0 0
    %1651 = vmatprep.subr.bf16.mxu0 0
    %1652 = vmatpush1.bf16.msra.mxu0 0
    %1653 = vmatprep.subr.bf16.mxu0 0
    %1654 = vmatpush1.bf16.msra.mxu0 0
    %1655 = vmatprep.mubr.bf16.mxu0 0
    %1656 = vmatmul.mubr.bf16.gmra.mrb[0].mxu0 %v1433
    %v1657 = vpop.f32.mrb[0].mxu0
    %v1658 = vadd.f32 %v1618, %v1657
    %v1659 = vpop.f32.mrb[0].mxu0
    %v1660 = vpop.f32.mrb[0].mxu0
    %v1661 = vpop.f32.mrb[0].mxu0
    %1662 = vdwg.mxu0
    %v1663 = vmul.f32 %v1658, 0.2
    %v1664 = vmax.f32 %v1658, %v1663
    %v1665 = vld [vmem:[%s2 + $0x6] sm:$0x1]
    %v1666 = vlaneseq
    %v1667 = vshrl.u32 %v1666, 7
    %v1668 = vsub.s32 0, %v1667
    %v1669 = vrot.slane %v1665, %v1668
    %v1670 = vadd.f32 %v1664, %v1669
    %v1671 = vpack.c.bf16 %v1670, %v1670
    %v1672 = vld [vmem:[%s3] sm:$0xf]
    %v1673 = vld [vmem:[%s3 + $0x4] sm:$0xf]
    %v1674 = vld [vmem:[%s3 + $0x8] sm:$0xf]
    %v1675 = vld [vmem:[%s3 + $0xc] sm:$0xf]
    %v1676 = vld [vmem:[%s3 + $0x10] sm:$0xf]
    %v1677 = vld [vmem:[%s3 + $0x14] sm:$0xf]
    %v1678 = vld [vmem:[%s3 + $0x18] sm:$0xf]
    %v1679 = vld [vmem:[%s3 + $0x1c] sm:$0xf]
    %v1680 = vld [vmem:[%s3 + $0x20] sm:$0xf]
    %v1681 = vld [vmem:[%s3 + $0x24] sm:$0xf]
    %v1682 = vld [vmem:[%s3 + $0x28] sm:$0xf]
    %v1683 = vld [vmem:[%s3 + $0x2c] sm:$0xf]
    %v1684 = vld [vmem:[%s3 + $0x30] sm:$0xf]
    %v1685 = vld [vmem:[%s3 + $0x34] sm:$0xf]
    %v1686 = vld [vmem:[%s3 + $0x38] sm:$0xf]
    %v1687 = vld [vmem:[%s3 + $0x3c] sm:$0xf]
    %v1688 = vld [vmem:[%s2 + $0x7] sm:$0x1]
    %v1689 = vlaneseq
    %v1690 = vshrl.u32 %v1689, 7
    %v1691 = vsub.s32 0, %v1690
    %v1692 = vrot.slane %v1688, %v1691
    %v1709 = vunpack.c.l.b16 %v1672
    %v1710 = vunpack.c.l.b16 %v1673
    %v1711 = vunpack.c.l.b16 %v1674
    %v1712 = vunpack.c.l.b16 %v1675
    %v1713 = vunpack.c.l.b16 %v1676
    %v1714 = vunpack.c.l.b16 %v1677
    %v1715 = vunpack.c.l.b16 %v1678
    %v1716 = vunpack.c.l.b16 %v1679
    %v1717 = vunpack.c.l.b16 %v1680
    %v1718 = vunpack.c.l.b16 %v1681
    %v1719 = vunpack.c.l.b16 %v1682
    %v1720 = vunpack.c.l.b16 %v1683
    %v1721 = vunpack.c.l.b16 %v1684
    %v1722 = vunpack.c.l.b16 %v1685
    %v1723 = vunpack.c.l.b16 %v1686
    %v1724 = vunpack.c.l.b16 %v1687
    %v1725 = vpack.c.b16 %v1710, %v1709
    %v1726 = vpack.c.b16 %v1712, %v1711
    %v1727 = vpack.c.b16 %v1714, %v1713
    %v1728 = vpack.c.b16 %v1716, %v1715
    %v1729 = vpack.c.b16 %v1718, %v1717
    %v1730 = vpack.c.b16 %v1720, %v1719
    %v1731 = vpack.c.b16 %v1722, %v1721
    %v1732 = vpack.c.b16 %v1724, %v1723
    %1741 = vmatprep.subr.bf16.mxu0 0
    %1742 = vmatpush1.bf16.msra.mxu0 %v1725
    %1743 = vmatprep.subr.bf16.mxu0 0
    %1744 = vmatpush1.bf16.msra.mxu0 %v1726
    %1745 = vmatprep.subr.bf16.mxu0 0
    %1746 = vmatpush1.bf16.msra.mxu0 %v1727
    %1747 = vmatprep.subr.bf16.mxu0 0
    %1748 = vmatpush1.bf16.msra.mxu0 %v1728
    %1749 = vmatprep.subr.bf16.mxu0 0
    %1750 = vmatpush1.bf16.msra.mxu0 %v1729
    %1751 = vmatprep.subr.bf16.mxu0 0
    %1752 = vmatpush1.bf16.msra.mxu0 %v1730
    %1753 = vmatprep.subr.bf16.mxu0 0
    %1754 = vmatpush1.bf16.msra.mxu0 %v1731
    %1755 = vmatprep.subr.bf16.mxu0 0
    %1756 = vmatpush1.bf16.msra.mxu0 %v1732
    %1757 = vmatprep.subr.bf16.mxu0 0
    %1758 = vmatpush1.bf16.msra.mxu0 0
    %1759 = vmatprep.subr.bf16.mxu0 0
    %1760 = vmatpush1.bf16.msra.mxu0 0
    %1761 = vmatprep.subr.bf16.mxu0 0
    %1762 = vmatpush1.bf16.msra.mxu0 0
    %1763 = vmatprep.subr.bf16.mxu0 0
    %1764 = vmatpush1.bf16.msra.mxu0 0
    %1765 = vmatprep.subr.bf16.mxu0 0
    %1766 = vmatpush1.bf16.msra.mxu0 0
    %1767 = vmatprep.subr.bf16.mxu0 0
    %1768 = vmatpush1.bf16.msra.mxu0 0
    %1769 = vmatprep.subr.bf16.mxu0 0
    %1770 = vmatpush1.bf16.msra.mxu0 0
    %1771 = vmatprep.subr.bf16.mxu0 0
    %1772 = vmatpush1.bf16.msra.mxu0 0
    %1773 = vmatprep.mubr.bf16.mxu0 0
    %1774 = vmatmul.mubr.bf16.gmra.mrb[0].mxu0 %v1671
    %v1775 = vpop.f32.mrb[0].mxu0
    %v1776 = vadd.f32 %v1692, %v1775
    %v1777 = vpop.f32.mrb[0].mxu0
    %v1778 = vpop.f32.mrb[0].mxu0
    %v1779 = vpop.f32.mrb[0].mxu0
    %1780 = vdwg.mxu0
    %vm1781 = vcmp.ge.f32.partialorder %v1776, 0.0
    %v1782 = vsub.f32 0.0, %v1776
    %v1783 = vsel %vm1781, %v1782, %v1776
    %v1784 = vmul.f32 %v1783, 1.442695
    %v1785 = vpow.pop %v1784
    %v1786 = vadd.f32 %v1785, 1.0
    %v1787 = vrcp.pop %v1786
    %v1788 = vmul.f32 1.0, %v1787
    %v1789 = vmul.f32 %v1785, %v1787
    %v1790 = vsel %vm1781, %v1788, %v1789
    %vm1791 = vcmask 82952
    %v1792 = vsel %vm1791, %v1776, -inf
    %1793 = vmax.xlane.f32.xlu0 %v1792
    %v1794 = vpop.xlane.xlu0 %1793
    %v1795 = vsub.f32 %v1776, %v1794
    %v1796 = vmul.f32 %v1795, 1.442695
    %v1797 = vpow.pop %v1796
    %1799 = vrot.lane.b32.xlu0 %v1797, 127
    %v1800 = vpop.permute.xlu0 %1799
    %vm1802 = vcmask 74752
    %v1803 = vsel %vm1802, %v1800, 0.0
    %1804 = vadd.xlane.f32.xlu0 %v1803
    %v1805 = vpop.xlane.xlu0 %1804
    %v1806 = vrcp.pop %v1805
    %v1807 = vmul.f32 %v1797, %v1806
    %vm1808 = vcmask 7168
    %v1809 = vsel %vm1808, %v1790, %v1807
    %vm1810 = vcmask 82944
    %1811 = vst.msk [vmem:[#allocation11] sm:$0x3] %vm1810, %v1809
    // Predicated region
    $region26: #{tpu_custom_call.1} parent=1 // pred_check
      _
    $region27: #{tpu_custom_call.1} parent=1 // pred_check_branch
      %1813 = sbr.rel (0) target = $region29
    $region28: #{tpu_custom_call.1} parent=1 // pred_region
      %s1815 = ssub.s32 32, 32
      %1816 = vsyncadd [#allocation8], %s1815
      %s1818 = sshll.u32 [#allocation11], 4
      %s1819 = int_to_ptr.vmem [resolvable:$true] %s1818
      %1821 = dma.vmem_to_hbm [thread:$0]  %s1819, 32, %s4, [#allocation8]
    $region29: #{tpu_custom_call.1} parent=1 // pred_fallthru
      _
    // Predicated region
    $region30: #{tpu_custom_call.1} parent=1 // pred_check
      _
    $region31: #{tpu_custom_call.1} parent=1 // pred_check_branch
      %1823 = sbr.rel (0) target = $region33
    $region32: #{tpu_custom_call.1} parent=1 // pred_region
      %1824 = dma.done [#allocation8], 32
    $region33: #{tpu_custom_call.1} parent=1 // pred_fallthru
      _
    %1825 = vsyncpa [#allocation7], 1
    %1826 = vsyncpa [#allocation10], 1
    %1827 = vsyncpa [#allocation8], 1

</llo_original>
